<compile_context>
chip_gen: v6e
topology: v6e:2x2x1
jax: 0.10.0
libtpu: 0.0.40
codegen_flags: <defaults>
</compile_context>

<pallas_src>
import numpy as np
import jax
import jax.numpy as jnp
from jax.experimental import pallas as pl
from jax.experimental.pallas import tpu as pltpu

N = 120                 # neuron_size == pixel_number of the square grid (DFT size)
NP = 128                # lane-padded size used inside the kernel
WAVELENGTH = 1.55e-6    # m
PIXEL_LENGTH = 8e-7     # m  (grid spacing from create_square_grid_pattern)
DZ = 1e-5               # m  (z_next - z_coordinate for every layer)
NUM_PHASE_LAYERS = 5
NUM_STEPS = NUM_PHASE_LAYERS + 1   # input propagation + 5 layer propagations


# ----------------------------- Pallas kernel --------------------------------
def _d2nn_kernel(x_ref, flb_ref, frb_ref, glb_ref, grb_ref, ff_ref,
                 hr_ref, hi_ref, tr_ref, ti_ref, o_ref, sv_ref, sh_ref):
    """One propagation step per grid iteration.

    sv_ref : (2*NP, NP) f32 scratch — vertical stack [Re; Im] (field / pre-left-DFT)
    sh_ref : (NP, 2*NP) f32 scratch — horizontal stack [Re | Im] (between L/R DFTs)
    The complex field persists in sv_ref across grid steps.
    """
    f32 = jnp.float32
    bf16 = jnp.bfloat16
    s = pl.program_id(0)
    last = pl.num_programs(0) - 1

    # ---- stage 1: left forward DFT  [Vr; Vi] = F_block @ [Ur; Ui]  -> sh ----
    @pl.when(s == 0)
    def _():
        # InputDiffractiveLayer: field is purely real, so only the stacked
        # [Fr; Fi] constant is needed (half the K of the general block matmul).
        rv = jnp.dot(ff_ref[...], x_ref[...].astype(bf16),
                     preferred_element_type=f32)
        sh_ref[:, :NP] = rv[:NP, :]
        sh_ref[:, NP:] = rv[NP:, :]

    @pl.when(s > 0)
    def _():
        # DiffractiveLayer (l = s-1): phase-only modulation exp(i*2pi*sigmoid(W)),
        # applied in f32 on the VPU, written straight into the vertical stack.
        ur = sv_ref[:NP, :]
        ui = sv_ref[NP:, :]
        tr = tr_ref[0]
        ti = ti_ref[0]
        sv_ref[:NP, :] = ur * tr - ui * ti
        sv_ref[NP:, :] = ur * ti + ui * tr
        rv = jnp.dot(flb_ref[...], sv_ref[...].astype(bf16),
                     preferred_element_type=f32)
        sh_ref[:, :NP] = rv[:NP, :]
        sh_ref[:, NP:] = rv[NP:, :]

    # ---- stage 2: right forward DFT  [Vr | Vi] = sh @ F_block ----
    rh = jnp.dot(sh_ref[...].astype(bf16), frb_ref[...],
                 preferred_element_type=f32)
    vr = rh[:, :NP]
    vi = rh[:, NP:]

    # ---- stage 3: angular-spectrum transfer function (elementwise, f32) ----
    hr = hr_ref[...]
    hi = hi_ref[...]
    sv_ref[:NP, :] = vr * hr - vi * hi
    sv_ref[NP:, :] = vr * hi + vi * hr

    # ---- stage 4: left inverse DFT  -> sh ----
    rv2 = jnp.dot(glb_ref[...], sv_ref[...].astype(bf16),
                  preferred_element_type=f32)
    sh_ref[:, :NP] = rv2[:NP, :]
    sh_ref[:, NP:] = rv2[NP:, :]

    # ---- stage 5: right inverse DFT -> new field in sv ----
    rh2 = jnp.dot(sh_ref[...].astype(bf16), grb_ref[...],
                  preferred_element_type=f32)
    sv_ref[:NP, :] = rh2[:, :NP]
    sv_ref[NP:, :] = rh2[:, NP:]

    # ---- DetectorLayer on the last step: intensity |U|^2 ----
    @pl.when(s == last)
    def _():
        ur = sv_ref[:NP, :]
        ui = sv_ref[NP:, :]
        # TODO(synk): pyonn's DetectorLayer may additionally normalize the intensity map.
        o_ref[...] = ur * ur + ui * ui


# ------------------------------ host-side glue ------------------------------
def _dft_block_matrices(n, npad):
    """Block-real DFT / inverse-DFT matrices, zero-padded n->npad (float64 host)."""
    idx = np.arange(n)
    ang = 2.0 * np.pi * np.outer(idx, idx) / n
    fr = np.zeros((npad, npad), np.float64); fr[:n, :n] = np.cos(ang)        # F = exp(-2pi*i*km/n)
    fi = np.zeros((npad, npad), np.float64); fi[:n, :n] = -np.sin(ang)
    gr = np.zeros((npad, npad), np.float64); gr[:n, :n] = np.cos(ang) / n    # G = conj(F)/n
    gi = np.zeros((npad, npad), np.float64); gi[:n, :n] = np.sin(ang) / n

    def block_left(r, i):   # applied as  BL @ [Ur; Ui]
        return np.block([[r, -i], [i, r]])

    def block_right(r, i):  # applied as  [Ur | Ui] @ BR
        return np.block([[r, i], [-i, r]])

    ffirst = np.concatenate([fr, fi], axis=0)     # (2*npad, npad), for Ui == 0
    return (block_left(fr, fi), block_right(fr, fi),
            block_left(gr, gi), block_right(gr, gi), ffirst)


def _transfer_function(n, npad, dx, wavelength, dz):
    # H(kx,ky) = exp(i*kz*dz), kz = sqrt(k^2 - kx^2 - ky^2); evanescent -> exp(-|kz|*dz)
    fx = np.fft.fftfreq(n, d=dx)
    kx = 2.0 * np.pi * fx
    kxx, kyy = np.meshgrid(kx, kx, indexing="ij")
    k = 2.0 * np.pi / wavelength
    arg = k * k - kxx * kxx - kyy * kyy
    prop = arg >= 0.0
    kz = np.sqrt(np.where(prop, arg, 0.0))
    kappa = np.sqrt(np.where(prop, 0.0, -arg))
    hr = np.zeros((npad, npad), np.float32)
    hi = np.zeros((npad, npad), np.float32)
    hr[:n, :n] = np.where(prop, np.cos(kz * dz), np.exp(-kappa * dz))
    hi[:n, :n] = np.where(prop, np.sin(kz * dz), 0.0)
    return hr, hi


@jax.jit
def five_layer_diffractive_nn(x, phase_weights):
    """x: (120,120) f32 input amplitude. phase_weights: (5,120,120) f32 raw weights."""
    flb, frb, glb, grb, ffirst = _dft_block_matrices(N, NP)
    hr, hi = _transfer_function(N, NP, PIXEL_LENGTH, WAVELENGTH, DZ)

    bf16 = jnp.bfloat16
    flb = jnp.asarray(flb, dtype=bf16)
    frb = jnp.asarray(frb, dtype=bf16)
    glb = jnp.asarray(glb, dtype=bf16)
    grb = jnp.asarray(grb, dtype=bf16)
    ffirst = jnp.asarray(ffirst, dtype=bf16)
    hr = jnp.asarray(hr)
    hi = jnp.asarray(hi)

    # DiffractiveLayer transmission: exp(i * 2*pi * sigmoid(W)); zero-pad to (5,128,128)
    phase = 2.0 * jnp.pi * jax.nn.sigmoid(phase_weights.astype(jnp.float32))
    pad3 = ((0, 0), (0, NP - N), (0, NP - N))
    tr = jnp.pad(jnp.cos(phase), pad3)
    ti = jnp.pad(jnp.sin(phase), pad3)

    # zero-pad the input field to a lane-dense (128,128)
    xp = jnp.pad(x.astype(jnp.float32), ((0, NP - N), (0, NP - N)))

    def const_spec(shape):
        return pl.BlockSpec(shape, lambda s: (0,) * len(shape))

    # per-step phase plane: layer l = s-1 (clamped; plane 0 is fetched-but-unused at s=0)
    def phase_spec():
        return pl.BlockSpec((1, NP, NP), lambda s: (jnp.maximum(s - 1, 0), 0, 0))

    grid_spec = pltpu.PrefetchScalarGridSpec(
        num_scalar_prefetch=0,
        grid=(NUM_STEPS,),
        in_specs=[
            const_spec((NP, NP)),            # x
            const_spec((2 * NP, 2 * NP)),    # flb  (left  forward DFT block)
            const_spec((2 * NP, 2 * NP)),    # frb  (right forward DFT block)
            const_spec((2 * NP, 2 * NP)),    # glb  (left  inverse DFT block)
            const_spec((2 * NP, 2 * NP)),    # grb  (right inverse DFT block)
            const_spec((2 * NP, NP)),        # ffirst = [Fr; Fi] for the real input
            const_spec((NP, NP)),            # hr
            const_spec((NP, NP)),            # hi
            phase_spec(),                    # tr
            phase_spec(),                    # ti
        ],
        out_specs=pl.BlockSpec((NP, NP), lambda s: (0, 0)),
        scratch_shapes=[
            pltpu.VMEM((2 * NP, NP), jnp.float32),   # vertical stack [Re; Im]
            pltpu.VMEM((NP, 2 * NP), jnp.float32),   # horizontal stack [Re | Im]
        ],
    )

    out = pl.pallas_call(
        _d2nn_kernel,
        out_shape=jax.ShapeDtypeStruct((NP, NP), jnp.float32),
        grid_spec=grid_spec,
        compiler_params=pltpu.CompilerParams(
            dimension_semantics=("arbitrary",)),
        cost_estimate=pl.CostEstimate(
            flops=int(4.0e8), bytes_accessed=int(1.7e6), transcendentals=0),
    )(xp, flb, frb, glb, grb, ffirst, hr, hi, tr, ti)

    # crop the zero pad back to the module's 120x120 detector plane
    return out[:N, :N]


if __name__ == "__main__":
    key = jax.random.PRNGKey(0)
    k_x, k_w = jax.random.split(key)

    # deterministic synthetic input amplitude map and layer weights (torch.rand-like U[0,1))
    x = jax.random.uniform(k_x, (N, N), dtype=jnp.float32)
    phase_weights = jax.random.uniform(
        k_w, (NUM_PHASE_LAYERS, N, N), dtype=jnp.float32)

    out = five_layer_diffractive_nn(x, phase_weights)
    out = jax.block_until_ready(out)

    assert out.shape == (N, N) and out.dtype == jnp.float32
    assert bool(jnp.all(jnp.isfinite(out)))
    print("KERNEL_OK")
</pallas_src>

<mosaic_0001>
module attributes {stable_mosaic.version = 11 : i64} {
  func.func @_d2nn_kernel(%arg0: i32, %arg1: memref<128x128xf32, #tpu.memory_space<vmem>>, %arg2: memref<256x256xbf16, #tpu.memory_space<vmem>>, %arg3: memref<256x256xbf16, #tpu.memory_space<vmem>>, %arg4: memref<256x256xbf16, #tpu.memory_space<vmem>>, %arg5: memref<256x256xbf16, #tpu.memory_space<vmem>>, %arg6: memref<256x128xbf16, #tpu.memory_space<vmem>>, %arg7: memref<128x128xf32, #tpu.memory_space<vmem>>, %arg8: memref<128x128xf32, #tpu.memory_space<vmem>>, %arg9: memref<1x128x128xf32, #tpu.memory_space<vmem>>, %arg10: memref<1x128x128xf32, #tpu.memory_space<vmem>>, %arg11: memref<128x128xf32, #tpu.memory_space<vmem>>, %arg12: memref<256x128xf32, #tpu.memory_space<vmem>>, %arg13: memref<128x256xf32, #tpu.memory_space<vmem>>) attributes {dimension_semantics = [#tpu.dimension_semantics<arbitrary>], iteration_bounds = array<i64: 6>, scalar_prefetch = 0 : i64, scratch_operands = 2 : i64, tpu.core_type = #tpu.core_type<tc>, window_params = [{pipeline_mode = #tpu.pipeline_mode<synchronous>, transform_indices = @transform_0, window_bounds = array<i64: 128, 128>}, {pipeline_mode = #tpu.pipeline_mode<synchronous>, transform_indices = @transform_1, window_bounds = array<i64: 256, 256>}, {pipeline_mode = #tpu.pipeline_mode<synchronous>, transform_indices = @transform_2, window_bounds = array<i64: 256, 256>}, {pipeline_mode = #tpu.pipeline_mode<synchronous>, transform_indices = @transform_3, window_bounds = array<i64: 256, 256>}, {pipeline_mode = #tpu.pipeline_mode<synchronous>, transform_indices = @transform_4, window_bounds = array<i64: 256, 256>}, {pipeline_mode = #tpu.pipeline_mode<synchronous>, transform_indices = @transform_5, window_bounds = array<i64: 256, 128>}, {pipeline_mode = #tpu.pipeline_mode<synchronous>, transform_indices = @transform_6, window_bounds = array<i64: 128, 128>}, {pipeline_mode = #tpu.pipeline_mode<synchronous>, transform_indices = @transform_7, window_bounds = array<i64: 128, 128>}, {transform_indices = @transform_8, window_bounds = array<i64: 1, 128, 128>}, {transform_indices = @transform_9, window_bounds = array<i64: 1, 128, 128>}, {pipeline_mode = #tpu.pipeline_mode<synchronous>, transform_indices = @transform_10, window_bounds = array<i64: 128, 128>}]} {
    %c0_i32 = arith.constant 0 : i32
    %0 = arith.cmpi eq, %arg0, %c0_i32 : i32
    %1 = arith.extui %0 : i1 to i32
    %c0_i32_0 = arith.constant 0 : i32
    %2 = arith.cmpi ne, %1, %c0_i32_0 : i32
    scf.if %2 {
      %c0_32 = arith.constant 0 : index
      %c0_33 = arith.constant 0 : index
      %41 = vector.load %arg6[%c0_32, %c0_33] : memref<256x128xbf16, #tpu.memory_space<vmem>>, vector<256x128xbf16>
      %c0_34 = arith.constant 0 : index
      %c0_35 = arith.constant 0 : index
      %42 = vector.load %arg1[%c0_34, %c0_35] : memref<128x128xf32, #tpu.memory_space<vmem>>, vector<128x128xf32>
      %43 = arith.truncf %42 : vector<128x128xf32> to vector<128x128xbf16>
      %cst_36 = arith.constant dense<0.000000e+00> : vector<256x128xf32>
      %44 = tpu.matmul %41, %43, %cst_36 {dimension_numbers = #tpu.dot_dimension_numbers<[1], [0], [0], [1], [0, 0, 1, 1], [], []>} : vector<256x128xbf16>, vector<128x128xbf16>, vector<256x128xf32> -> vector<256x128xf32>
      %45 = vector.extract_strided_slice %44 {offsets = [0, 0], sizes = [128, 128], strides = [1, 1]} : vector<256x128xf32> to vector<128x128xf32>
      %c0_37 = arith.constant 0 : index
      %c0_38 = arith.constant 0 : index
      %46 = vector.load %arg13[%c0_37, %c0_38] : memref<128x256xf32, #tpu.memory_space<vmem>>, vector<128x128xf32>
      tpu.vector_store %arg13[%c0_37, %c0_38], %45 {strides = array<i32>} : memref<128x256xf32, #tpu.memory_space<vmem>>, vector<128x128xf32>,
      %47 = vector.extract_strided_slice %44 {offsets = [128, 0], sizes = [128, 128], strides = [1, 1]} : vector<256x128xf32> to vector<128x128xf32>
      %c0_39 = arith.constant 0 : index
      %c128_40 = arith.constant 128 : index
      %48 = vector.load %arg13[%c0_39, %c128_40] : memref<128x256xf32, #tpu.memory_space<vmem>>, vector<128x128xf32>
      tpu.vector_store %arg13[%c0_39, %c128_40], %47 {strides = array<i32>} : memref<128x256xf32, #tpu.memory_space<vmem>>, vector<128x128xf32>,
    } else {
    }
    %c0_i32_1 = arith.constant 0 : i32
    %3 = arith.cmpi sgt, %arg0, %c0_i32_1 : i32
    %4 = arith.extui %3 : i1 to i32
    %c0_i32_2 = arith.constant 0 : i32
    %5 = arith.cmpi ne, %4, %c0_i32_2 : i32
    scf.if %5 {
      %c0_32 = arith.constant 0 : index
      %c0_33 = arith.constant 0 : index
      %41 = vector.load %arg12[%c0_32, %c0_33] : memref<256x128xf32, #tpu.memory_space<vmem>>, vector<128x128xf32>
      %c128_34 = arith.constant 128 : index
      %c0_35 = arith.constant 0 : index
      %42 = vector.load %arg12[%c128_34, %c0_35] : memref<256x128xf32, #tpu.memory_space<vmem>>, vector<128x128xf32>
      %c0_36 = arith.constant 0 : index
      %c0_37 = arith.constant 0 : index
      %c0_38 = arith.constant 0 : index
      %43 = vector.load %arg9[%c0_36, %c0_37, %c0_38] : memref<1x128x128xf32, #tpu.memory_space<vmem>>, vector<1x128x128xf32>
      %44 = vector.shape_cast %43 : vector<1x128x128xf32> to vector<128x128xf32>
      %c0_39 = arith.constant 0 : index
      %c0_40 = arith.constant 0 : index
      %c0_41 = arith.constant 0 : index
      %45 = vector.load %arg10[%c0_39, %c0_40, %c0_41] : memref<1x128x128xf32, #tpu.memory_space<vmem>>, vector<1x128x128xf32>
      %46 = vector.shape_cast %45 : vector<1x128x128xf32> to vector<128x128xf32>
      %47 = arith.mulf %41, %44 : vector<128x128xf32>
      %48 = arith.mulf %42, %46 : vector<128x128xf32>
      %49 = arith.subf %47, %48 : vector<128x128xf32>
      %c0_42 = arith.constant 0 : index
      %c0_43 = arith.constant 0 : index
      %50 = vector.load %arg12[%c0_42, %c0_43] : memref<256x128xf32, #tpu.memory_space<vmem>>, vector<128x128xf32>
      tpu.vector_store %arg12[%c0_42, %c0_43], %49 {strides = array<i32>} : memref<256x128xf32, #tpu.memory_space<vmem>>, vector<128x128xf32>,
      %51 = arith.mulf %41, %46 : vector<128x128xf32>
      %52 = arith.mulf %42, %44 : vector<128x128xf32>
      %53 = arith.addf %51, %52 : vector<128x128xf32>
      %c128_44 = arith.constant 128 : index
      %c0_45 = arith.constant 0 : index
      %54 = vector.load %arg12[%c128_44, %c0_45] : memref<256x128xf32, #tpu.memory_space<vmem>>, vector<128x128xf32>
      tpu.vector_store %arg12[%c128_44, %c0_45], %53 {strides = array<i32>} : memref<256x128xf32, #tpu.memory_space<vmem>>, vector<128x128xf32>,
      %c0_46 = arith.constant 0 : index
      %c0_47 = arith.constant 0 : index
      %55 = vector.load %arg2[%c0_46, %c0_47] : memref<256x256xbf16, #tpu.memory_space<vmem>>, vector<256x256xbf16>
      %c0_48 = arith.constant 0 : index
      %c0_49 = arith.constant 0 : index
      %56 = vector.load %arg12[%c0_48, %c0_49] : memref<256x128xf32, #tpu.memory_space<vmem>>, vector<256x128xf32>
      %57 = arith.truncf %56 : vector<256x128xf32> to vector<256x128xbf16>
      %cst_50 = arith.constant dense<0.000000e+00> : vector<256x128xf32>
      %58 = tpu.matmul %55, %57, %cst_50 {dimension_numbers = #tpu.dot_dimension_numbers<[1], [0], [0], [1], [0, 0, 1, 1], [], []>} : vector<256x256xbf16>, vector<256x128xbf16>, vector<256x128xf32> -> vector<256x128xf32>
      %59 = vector.extract_strided_slice %58 {offsets = [0, 0], sizes = [128, 128], strides = [1, 1]} : vector<256x128xf32> to vector<128x128xf32>
      %c0_51 = arith.constant 0 : index
      %c0_52 = arith.constant 0 : index
      %60 = vector.load %arg13[%c0_51, %c0_52] : memref<128x256xf32, #tpu.memory_space<vmem>>, vector<128x128xf32>
      tpu.vector_store %arg13[%c0_51, %c0_52], %59 {strides = array<i32>} : memref<128x256xf32, #tpu.memory_space<vmem>>, vector<128x128xf32>,
      %61 = vector.extract_strided_slice %58 {offsets = [128, 0], sizes = [128, 128], strides = [1, 1]} : vector<256x128xf32> to vector<128x128xf32>
      %c0_53 = arith.constant 0 : index
      %c128_54 = arith.constant 128 : index
      %62 = vector.load %arg13[%c0_53, %c128_54] : memref<128x256xf32, #tpu.memory_space<vmem>>, vector<128x128xf32>
      tpu.vector_store %arg13[%c0_53, %c128_54], %61 {strides = array<i32>} : memref<128x256xf32, #tpu.memory_space<vmem>>, vector<128x128xf32>,
    } else {
    }
    %c0 = arith.constant 0 : index
    %c0_3 = arith.constant 0 : index
    %6 = vector.load %arg13[%c0, %c0_3] : memref<128x256xf32, #tpu.memory_space<vmem>>, vector<128x256xf32>
    %7 = arith.truncf %6 : vector<128x256xf32> to vector<128x256xbf16>
    %c0_4 = arith.constant 0 : index
    %c0_5 = arith.constant 0 : index
    %8 = vector.load %arg3[%c0_4, %c0_5] : memref<256x256xbf16, #tpu.memory_space<vmem>>, vector<256x256xbf16>
    %cst = arith.constant dense<0.000000e+00> : vector<128x256xf32>
    %9 = tpu.matmul %7, %8, %cst {dimension_numbers = #tpu.dot_dimension_numbers<[1], [0], [0], [1], [0, 0, 1, 1], [], []>} : vector<128x256xbf16>, vector<256x256xbf16>, vector<128x256xf32> -> vector<128x256xf32>
    %10 = vector.extract_strided_slice %9 {offsets = [0, 0], sizes = [128, 128], strides = [1, 1]} : vector<128x256xf32> to vector<128x128xf32>
    %11 = vector.extract_strided_slice %9 {offsets = [0, 128], sizes = [128, 128], strides = [1, 1]} : vector<128x256xf32> to vector<128x128xf32>
    %c0_6 = arith.constant 0 : index
    %c0_7 = arith.constant 0 : index
    %12 = vector.load %arg7[%c0_6, %c0_7] : memref<128x128xf32, #tpu.memory_space<vmem>>, vector<128x128xf32>
    %c0_8 = arith.constant 0 : index
    %c0_9 = arith.constant 0 : index
    %13 = vector.load %arg8[%c0_8, %c0_9] : memref<128x128xf32, #tpu.memory_space<vmem>>, vector<128x128xf32>
    %14 = arith.mulf %10, %12 : vector<128x128xf32>
    %15 = arith.mulf %11, %13 : vector<128x128xf32>
    %16 = arith.subf %14, %15 : vector<128x128xf32>
    %c0_10 = arith.constant 0 : index
    %c0_11 = arith.constant 0 : index
    %17 = vector.load %arg12[%c0_10, %c0_11] : memref<256x128xf32, #tpu.memory_space<vmem>>, vector<128x128xf32>
    tpu.vector_store %arg12[%c0_10, %c0_11], %16 {strides = array<i32>} : memref<256x128xf32, #tpu.memory_space<vmem>>, vector<128x128xf32>,
    %18 = arith.mulf %10, %13 : vector<128x128xf32>
    %19 = arith.mulf %11, %12 : vector<128x128xf32>
    %20 = arith.addf %18, %19 : vector<128x128xf32>
    %c128 = arith.constant 128 : index
    %c0_12 = arith.constant 0 : index
    %21 = vector.load %arg12[%c128, %c0_12] : memref<256x128xf32, #tpu.memory_space<vmem>>, vector<128x128xf32>
    tpu.vector_store %arg12[%c128, %c0_12], %20 {strides = array<i32>} : memref<256x128xf32, #tpu.memory_space<vmem>>, vector<128x128xf32>,
    %c0_13 = arith.constant 0 : index
    %c0_14 = arith.constant 0 : index
    %22 = vector.load %arg4[%c0_13, %c0_14] : memref<256x256xbf16, #tpu.memory_space<vmem>>, vector<256x256xbf16>
    %c0_15 = arith.constant 0 : index
    %c0_16 = arith.constant 0 : index
    %23 = vector.load %arg12[%c0_15, %c0_16] : memref<256x128xf32, #tpu.memory_space<vmem>>, vector<256x128xf32>
    %24 = arith.truncf %23 : vector<256x128xf32> to vector<256x128xbf16>
    %cst_17 = arith.constant dense<0.000000e+00> : vector<256x128xf32>
    %25 = tpu.matmul %22, %24, %cst_17 {dimension_numbers = #tpu.dot_dimension_numbers<[1], [0], [0], [1], [0, 0, 1, 1], [], []>} : vector<256x256xbf16>, vector<256x128xbf16>, vector<256x128xf32> -> vector<256x128xf32>
    %26 = vector.extract_strided_slice %25 {offsets = [0, 0], sizes = [128, 128], strides = [1, 1]} : vector<256x128xf32> to vector<128x128xf32>
    %c0_18 = arith.constant 0 : index
    %c0_19 = arith.constant 0 : index
    %27 = vector.load %arg13[%c0_18, %c0_19] : memref<128x256xf32, #tpu.memory_space<vmem>>, vector<128x128xf32>
    tpu.vector_store %arg13[%c0_18, %c0_19], %26 {strides = array<i32>} : memref<128x256xf32, #tpu.memory_space<vmem>>, vector<128x128xf32>,
    %28 = vector.extract_strided_slice %25 {offsets = [128, 0], sizes = [128, 128], strides = [1, 1]} : vector<256x128xf32> to vector<128x128xf32>
    %c0_20 = arith.constant 0 : index
    %c128_21 = arith.constant 128 : index
    %29 = vector.load %arg13[%c0_20, %c128_21] : memref<128x256xf32, #tpu.memory_space<vmem>>, vector<128x128xf32>
    tpu.vector_store %arg13[%c0_20, %c128_21], %28 {strides = array<i32>} : memref<128x256xf32, #tpu.memory_space<vmem>>, vector<128x128xf32>,
    %c0_22 = arith.constant 0 : index
    %c0_23 = arith.constant 0 : index
    %30 = vector.load %arg13[%c0_22, %c0_23] : memref<128x256xf32, #tpu.memory_space<vmem>>, vector<128x256xf32>
    %31 = arith.truncf %30 : vector<128x256xf32> to vector<128x256xbf16>
    %c0_24 = arith.constant 0 : index
    %c0_25 = arith.constant 0 : index
    %32 = vector.load %arg5[%c0_24, %c0_25] : memref<256x256xbf16, #tpu.memory_space<vmem>>, vector<256x256xbf16>
    %cst_26 = arith.constant dense<0.000000e+00> : vector<128x256xf32>
    %33 = tpu.matmul %31, %32, %cst_26 {dimension_numbers = #tpu.dot_dimension_numbers<[1], [0], [0], [1], [0, 0, 1, 1], [], []>} : vector<128x256xbf16>, vector<256x256xbf16>, vector<128x256xf32> -> vector<128x256xf32>
    %34 = vector.extract_strided_slice %33 {offsets = [0, 0], sizes = [128, 128], strides = [1, 1]} : vector<128x256xf32> to vector<128x128xf32>
    %c0_27 = arith.constant 0 : index
    %c0_28 = arith.constant 0 : index
    %35 = vector.load %arg12[%c0_27, %c0_28] : memref<256x128xf32, #tpu.memory_space<vmem>>, vector<128x128xf32>
    tpu.vector_store %arg12[%c0_27, %c0_28], %34 {strides = array<i32>} : memref<256x128xf32, #tpu.memory_space<vmem>>, vector<128x128xf32>,
    %36 = vector.extract_strided_slice %33 {offsets = [0, 128], sizes = [128, 128], strides = [1, 1]} : vector<128x256xf32> to vector<128x128xf32>
    %c128_29 = arith.constant 128 : index
    %c0_30 = arith.constant 0 : index
    %37 = vector.load %arg12[%c128_29, %c0_30] : memref<256x128xf32, #tpu.memory_space<vmem>>, vector<128x128xf32>
    tpu.vector_store %arg12[%c128_29, %c0_30], %36 {strides = array<i32>} : memref<256x128xf32, #tpu.memory_space<vmem>>, vector<128x128xf32>,
    %c5_i32 = arith.constant 5 : i32
    %38 = arith.cmpi eq, %arg0, %c5_i32 : i32
    %39 = arith.extui %38 : i1 to i32
    %c0_i32_31 = arith.constant 0 : i32
    %40 = arith.cmpi ne, %39, %c0_i32_31 : i32
    scf.if %40 {
      %c0_32 = arith.constant 0 : index
      %c0_33 = arith.constant 0 : index
      %41 = vector.load %arg12[%c0_32, %c0_33] : memref<256x128xf32, #tpu.memory_space<vmem>>, vector<128x128xf32>
      %c128_34 = arith.constant 128 : index
      %c0_35 = arith.constant 0 : index
      %42 = vector.load %arg12[%c128_34, %c0_35] : memref<256x128xf32, #tpu.memory_space<vmem>>, vector<128x128xf32>
      %43 = arith.mulf %41, %41 : vector<128x128xf32>
      %44 = arith.mulf %42, %42 : vector<128x128xf32>
      %45 = arith.addf %43, %44 : vector<128x128xf32>
      %c0_36 = arith.constant 0 : index
      %c0_37 = arith.constant 0 : index
      %46 = vector.load %arg11[%c0_36, %c0_37] : memref<128x128xf32, #tpu.memory_space<vmem>>, vector<128x128xf32>
      tpu.vector_store %arg11[%c0_36, %c0_37], %45 {strides = array<i32>} : memref<128x128xf32, #tpu.memory_space<vmem>>, vector<128x128xf32>,
    } else {
    }
    return
  }
  func.func @transform_0(%arg0: i32) -> (i32, i32) {
    %c0_i32 = arith.constant 0 : i32
    %c0_i32_0 = arith.constant 0 : i32
    %c0_i32_1 = arith.constant 0 : i32
    return %c0_i32, %c0_i32_0 : i32, i32
  }
  func.func @transform_1(%arg0: i32) -> (i32, i32) {
    %c0_i32 = arith.constant 0 : i32
    %c0_i32_0 = arith.constant 0 : i32
    %c0_i32_1 = arith.constant 0 : i32
    return %c0_i32, %c0_i32_0 : i32, i32
  }
  func.func @transform_2(%arg0: i32) -> (i32, i32) {
    %c0_i32 = arith.constant 0 : i32
    %c0_i32_0 = arith.constant 0 : i32
    %c0_i32_1 = arith.constant 0 : i32
    return %c0_i32, %c0_i32_0 : i32, i32
  }
  func.func @transform_3(%arg0: i32) -> (i32, i32) {
    %c0_i32 = arith.constant 0 : i32
    %c0_i32_0 = arith.constant 0 : i32
    %c0_i32_1 = arith.constant 0 : i32
    return %c0_i32, %c0_i32_0 : i32, i32
  }
  func.func @transform_4(%arg0: i32) -> (i32, i32) {
    %c0_i32 = arith.constant 0 : i32
    %c0_i32_0 = arith.constant 0 : i32
    %c0_i32_1 = arith.constant 0 : i32
    return %c0_i32, %c0_i32_0 : i32, i32
  }
  func.func @transform_5(%arg0: i32) -> (i32, i32) {
    %c0_i32 = arith.constant 0 : i32
    %c0_i32_0 = arith.constant 0 : i32
    %c0_i32_1 = arith.constant 0 : i32
    return %c0_i32, %c0_i32_0 : i32, i32
  }
  func.func @transform_6(%arg0: i32) -> (i32, i32) {
    %c0_i32 = arith.constant 0 : i32
    %c0_i32_0 = arith.constant 0 : i32
    %c0_i32_1 = arith.constant 0 : i32
    return %c0_i32, %c0_i32_0 : i32, i32
  }
  func.func @transform_7(%arg0: i32) -> (i32, i32) {
    %c0_i32 = arith.constant 0 : i32
    %c0_i32_0 = arith.constant 0 : i32
    %c0_i32_1 = arith.constant 0 : i32
    return %c0_i32, %c0_i32_0 : i32, i32
  }
  func.func @transform_8(%arg0: i32) -> (i32, i32, i32) {
    %c1_i32 = arith.constant 1 : i32
    %0 = arith.subi %arg0, %c1_i32 : i32
    %c0_i32 = arith.constant 0 : i32
    %1 = arith.maxsi %0, %c0_i32 : i32
    %c0_i32_0 = arith.constant 0 : i32
    %c0_i32_1 = arith.constant 0 : i32
    %c0_i32_2 = arith.constant 0 : i32
    return %1, %c0_i32_0, %c0_i32_1 : i32, i32, i32
  }
  func.func @transform_9(%arg0: i32) -> (i32, i32, i32) {
    %c1_i32 = arith.constant 1 : i32
    %0 = arith.subi %arg0, %c1_i32 : i32
    %c0_i32 = arith.constant 0 : i32
    %1 = arith.maxsi %0, %c0_i32 : i32
    %c0_i32_0 = arith.constant 0 : i32
    %c0_i32_1 = arith.constant 0 : i32
    %c0_i32_2 = arith.constant 0 : i32
    return %1, %c0_i32_0, %c0_i32_1 : i32, i32, i32
  }
  func.func @transform_10(%arg0: i32) -> (i32, i32) {
    %c0_i32 = arith.constant 0 : i32
    %c0_i32_0 = arith.constant 0 : i32
    %c0_i32_1 = arith.constant 0 : i32
    return %c0_i32, %c0_i32_0 : i32, i32
  }
}

</mosaic_0001>

<llo_original>
// kernel: five_layer_diffractive_nn.1
$region0: #{five_layer_diffractive_nn.1}
  #allocation0 [shape = 'u32[]', space=smem, size = 0x4, offset = 0x4, fixed_abs, tag = 'smem constant byte address 0x4 - core index']
  #allocation1 [shape = 'u32[144,128]{1,0:T(1,128)}', space=vmem, size = 0x12000, scoped, tag = 'internal scratch']
  #allocation2 [shape = 'f32[256,128]{1,0:T(8,128)}', space=vmem, size = 0x20000, scoped, tag = 'scratch operand']
  #allocation3 [shape = 'f32[128,256]{1,0:T(8,128)}', space=vmem, size = 0x20000, scoped, tag = 'scratch operand']
  %s0 = inlined_call_operand.vmem [shape: f32[128,128], index: 0, kind: input, shape index: {}]
  %s1 = inlined_call_operand.vmem [shape: bf16[256,256], index: 1, kind: input, shape index: {}]
  %s2 = inlined_call_operand.vmem [shape: bf16[256,256], index: 2, kind: input, shape index: {}]
  %s3 = inlined_call_operand.vmem [shape: bf16[256,256], index: 3, kind: input, shape index: {}]
  %s4 = inlined_call_operand.vmem [shape: bf16[256,256], index: 4, kind: input, shape index: {}]
  %s5 = inlined_call_operand.vmem [shape: bf16[256,128], index: 5, kind: input, shape index: {}]
  %s6 = inlined_call_operand.vmem [shape: f32[128,128], index: 6, kind: input, shape index: {}]
  %s7 = inlined_call_operand.vmem [shape: f32[128,128], index: 7, kind: input, shape index: {}]
  %s8 = inlined_call_operand.vmem [shape: f32[5,128,128], index: 8, kind: input, shape index: {}]
  %s9 = inlined_call_operand.vmem [shape: f32[5,128,128], index: 9, kind: input, shape index: {}]
  %s10 = inlined_call_operand.vmem [shape: f32[128,128], index: 10, kind: output, shape index: {}]
  %s11 = sld [smem:[#allocation0]]
  $region85: #{five_layer_diffractive_nn.1} parent=0
    _
  %s13 = ssub.s32 1, %s11
  %s14 = scalar_select 0, %s13, %s11
  loop: start=0, step=1, limit=8
  $region2: #{five_layer_diffractive_nn.1} parent=0 // loop_pre_header
    _
  $region3: #{five_layer_diffractive_nn.1} parent=0 // loop_header
    %s16 = sphi 0, %s20
    %p17 = scmp.ge.s32.totalorder %s16, 8
    %s24 = sphi 0, %s24
    %s26 = sphi 0, %s24
    %s27 = sphi 0, %s26
    %s41 = sphi 0, %s27
    %s45 = sphi 0, %s45
    %s47 = sphi 0, %s45
    %s48 = sphi 0, %s47
    %s62 = sphi 0, %s48
    %s66 = sphi 0, %s66
    %s68 = sphi 0, %s66
    %s69 = sphi 0, %s68
    %s83 = sphi 0, %s69
    %s87 = sphi 0, %s87
    %s89 = sphi 0, %s87
    %s90 = sphi 0, %s89
    %s104 = sphi 0, %s90
    %s108 = sphi 0, %s108
    %s110 = sphi 0, %s108
    %s111 = sphi 0, %s110
    %s125 = sphi 0, %s111
    %s129 = sphi 0, %s129
    %s131 = sphi 0, %s129
    %s132 = sphi 0, %s131
    %s146 = sphi 0, %s132
    %s150 = sphi 0, %s150
    %s152 = sphi 0, %s150
    %s153 = sphi 0, %s152
    %s167 = sphi 0, %s153
    %s171 = sphi 0, %s171
    %s173 = sphi 0, %s171
    %s174 = sphi 0, %s173
    %s188 = sphi 0, %s174
    %s200 = sphi 0, %s202
    %s203 = sphi 0, %s200
    %s204 = sphi 0, %s203
    %s220 = sphi 0, %s204
    %s232 = sphi 0, %s234
    %s235 = sphi 0, %s232
    %s236 = sphi 0, %s235
    %s252 = sphi 0, %s236
    %s256 = sphi 0, %s256
    %s258 = sphi 0, %s256
    %s259 = sphi 0, %s258
    %s273 = sphi 0, %s259
  $region4: #{five_layer_diffractive_nn.1} parent=0 // loop_header_branch
    %19 = sbr.rel (%p17) target = $region8
  $region5: #{five_layer_diffractive_nn.1} parent=0 // loop_body
    %s21 = ssub.s32 %s16, 1
    %s22 = ssub.s32 %s16, 2
    %s23 = sadd.s32 %s16, 1
    %s25 = sadd.s32 %s24, 1
    %p28 = scmp.eq.s32.totalorder %s16, 5
    %p29 = scmp.ne.s32.totalorder %s24, %s26
    %p30 = scmp.eq.s32.totalorder %s16, 0
    %p31 = por %p29, %p30
    %p32 = scmp.ne.s32.totalorder %s24, %s26
    %p33 = scmp.eq.s32.totalorder %s21, 5
    %p34 = por %p32, %p33
    %p35 = scmp.ne.s32.totalorder %s26, %s27
    %p36 = scmp.eq.s32.totalorder %s21, 0
    %p37 = por %p35, %p36
    %p38 = scmp.ne.s32.totalorder %s26, %s27
    %p39 = scmp.eq.s32.totalorder %s22, 5
    %p40 = por %p38, %p39
    %p42 = scmp.ne.s32.totalorder %s27, %s41
    %p43 = scmp.eq.s32.totalorder %s22, 0
    %p44 = por %p42, %p43
    %s46 = sadd.s32 %s45, 1
    %p49 = scmp.eq.s32.totalorder %s16, 5
    %p50 = scmp.ne.s32.totalorder %s45, %s47
    %p51 = scmp.eq.s32.totalorder %s16, 0
    %p52 = por %p50, %p51
    %p53 = scmp.ne.s32.totalorder %s45, %s47
    %p54 = scmp.eq.s32.totalorder %s21, 5
    %p55 = por %p53, %p54
    %p56 = scmp.ne.s32.totalorder %s47, %s48
    %p57 = scmp.eq.s32.totalorder %s21, 0
    %p58 = por %p56, %p57
    %p59 = scmp.ne.s32.totalorder %s47, %s48
    %p60 = scmp.eq.s32.totalorder %s22, 5
    %p61 = por %p59, %p60
    %p63 = scmp.ne.s32.totalorder %s48, %s62
    %p64 = scmp.eq.s32.totalorder %s22, 0
    %p65 = por %p63, %p64
    %s67 = sadd.s32 %s66, 1
    %p70 = scmp.eq.s32.totalorder %s16, 5
    %p71 = scmp.ne.s32.totalorder %s66, %s68
    %p72 = scmp.eq.s32.totalorder %s16, 0
    %p73 = por %p71, %p72
    %p74 = scmp.ne.s32.totalorder %s66, %s68
    %p75 = scmp.eq.s32.totalorder %s21, 5
    %p76 = por %p74, %p75
    %p77 = scmp.ne.s32.totalorder %s68, %s69
    %p78 = scmp.eq.s32.totalorder %s21, 0
    %p79 = por %p77, %p78
    %p80 = scmp.ne.s32.totalorder %s68, %s69
    %p81 = scmp.eq.s32.totalorder %s22, 5
    %p82 = por %p80, %p81
    %p84 = scmp.ne.s32.totalorder %s69, %s83
    %p85 = scmp.eq.s32.totalorder %s22, 0
    %p86 = por %p84, %p85
    %s88 = sadd.s32 %s87, 1
    %p91 = scmp.eq.s32.totalorder %s16, 5
    %p92 = scmp.ne.s32.totalorder %s87, %s89
    %p93 = scmp.eq.s32.totalorder %s16, 0
    %p94 = por %p92, %p93
    %p95 = scmp.ne.s32.totalorder %s87, %s89
    %p96 = scmp.eq.s32.totalorder %s21, 5
    %p97 = por %p95, %p96
    %p98 = scmp.ne.s32.totalorder %s89, %s90
    %p99 = scmp.eq.s32.totalorder %s21, 0
    %p100 = por %p98, %p99
    %p101 = scmp.ne.s32.totalorder %s89, %s90
    %p102 = scmp.eq.s32.totalorder %s22, 5
    %p103 = por %p101, %p102
    %p105 = scmp.ne.s32.totalorder %s90, %s104
    %p106 = scmp.eq.s32.totalorder %s22, 0
    %p107 = por %p105, %p106
    %s109 = sadd.s32 %s108, 1
    %p112 = scmp.eq.s32.totalorder %s16, 5
    %p113 = scmp.ne.s32.totalorder %s108, %s110
    %p114 = scmp.eq.s32.totalorder %s16, 0
    %p115 = por %p113, %p114
    %p116 = scmp.ne.s32.totalorder %s108, %s110
    %p117 = scmp.eq.s32.totalorder %s21, 5
    %p118 = por %p116, %p117
    %p119 = scmp.ne.s32.totalorder %s110, %s111
    %p120 = scmp.eq.s32.totalorder %s21, 0
    %p121 = por %p119, %p120
    %p122 = scmp.ne.s32.totalorder %s110, %s111
    %p123 = scmp.eq.s32.totalorder %s22, 5
    %p124 = por %p122, %p123
    %p126 = scmp.ne.s32.totalorder %s111, %s125
    %p127 = scmp.eq.s32.totalorder %s22, 0
    %p128 = por %p126, %p127
    %s130 = sadd.s32 %s129, 1
    %p133 = scmp.eq.s32.totalorder %s16, 5
    %p134 = scmp.ne.s32.totalorder %s129, %s131
    %p135 = scmp.eq.s32.totalorder %s16, 0
    %p136 = por %p134, %p135
    %p137 = scmp.ne.s32.totalorder %s129, %s131
    %p138 = scmp.eq.s32.totalorder %s21, 5
    %p139 = por %p137, %p138
    %p140 = scmp.ne.s32.totalorder %s131, %s132
    %p141 = scmp.eq.s32.totalorder %s21, 0
    %p142 = por %p140, %p141
    %p143 = scmp.ne.s32.totalorder %s131, %s132
    %p144 = scmp.eq.s32.totalorder %s22, 5
    %p145 = por %p143, %p144
    %p147 = scmp.ne.s32.totalorder %s132, %s146
    %p148 = scmp.eq.s32.totalorder %s22, 0
    %p149 = por %p147, %p148
    %s151 = sadd.s32 %s150, 1
    %p154 = scmp.eq.s32.totalorder %s16, 5
    %p155 = scmp.ne.s32.totalorder %s150, %s152
    %p156 = scmp.eq.s32.totalorder %s16, 0
    %p157 = por %p155, %p156
    %p158 = scmp.ne.s32.totalorder %s150, %s152
    %p159 = scmp.eq.s32.totalorder %s21, 5
    %p160 = por %p158, %p159
    %p161 = scmp.ne.s32.totalorder %s152, %s153
    %p162 = scmp.eq.s32.totalorder %s21, 0
    %p163 = por %p161, %p162
    %p164 = scmp.ne.s32.totalorder %s152, %s153
    %p165 = scmp.eq.s32.totalorder %s22, 5
    %p166 = por %p164, %p165
    %p168 = scmp.ne.s32.totalorder %s153, %s167
    %p169 = scmp.eq.s32.totalorder %s22, 0
    %p170 = por %p168, %p169
    %s172 = sadd.s32 %s171, 1
    %p175 = scmp.eq.s32.totalorder %s16, 5
    %p176 = scmp.ne.s32.totalorder %s171, %s173
    %p177 = scmp.eq.s32.totalorder %s16, 0
    %p178 = por %p176, %p177
    %p179 = scmp.ne.s32.totalorder %s171, %s173
    %p180 = scmp.eq.s32.totalorder %s21, 5
    %p181 = por %p179, %p180
    %p182 = scmp.ne.s32.totalorder %s173, %s174
    %p183 = scmp.eq.s32.totalorder %s21, 0
    %p184 = por %p182, %p183
    %p185 = scmp.ne.s32.totalorder %s173, %s174
    %p186 = scmp.eq.s32.totalorder %s22, 5
    %p187 = por %p185, %p186
    %p189 = scmp.ne.s32.totalorder %s174, %s188
    %p190 = scmp.eq.s32.totalorder %s22, 0
    %p191 = por %p189, %p190
    %s192 = ssub.s32 %s16, 1
    %p193 = scmp.gt.s32.totalorder %s192, 0
    %s194 = scalar_select %p193, %s192, 0
    %s195 = ssub.s32 %s23, 1
    %p196 = scmp.gt.s32.totalorder %s195, 0
    %s197 = scalar_select %p196, %s195, 0
    %s198 = ssub.s32 %s194, %s197
    %p199 = scmp.eq.s32.totalorder %s198, 0
    %s201 = sadd.s32 %s200, 1
    %s202 = scalar_select %p199, %s200, %s201
    %p205 = pneg %p199
    %p206 = scmp.eq.s32.totalorder %s16, 5
    %p207 = por %p205, %p206
    %p208 = scmp.ne.s32.totalorder %s200, %s203
    %p209 = scmp.eq.s32.totalorder %s16, 0
    %p210 = por %p208, %p209
    %p211 = scmp.ne.s32.totalorder %s200, %s203
    %p212 = scmp.eq.s32.totalorder %s21, 5
    %p213 = por %p211, %p212
    %p214 = scmp.ne.s32.totalorder %s203, %s204
    %p215 = scmp.eq.s32.totalorder %s21, 0
    %p216 = por %p214, %p215
    %p217 = scmp.ne.s32.totalorder %s203, %s204
    %p218 = scmp.eq.s32.totalorder %s22, 5
    %p219 = por %p217, %p218
    %p221 = scmp.ne.s32.totalorder %s204, %s220
    %p222 = scmp.eq.s32.totalorder %s22, 0
    %p223 = por %p221, %p222
    %s224 = ssub.s32 %s16, 1
    %p225 = scmp.gt.s32.totalorder %s224, 0
    %s226 = scalar_select %p225, %s224, 0
    %s227 = ssub.s32 %s23, 1
    %p228 = scmp.gt.s32.totalorder %s227, 0
    %s229 = scalar_select %p228, %s227, 0
    %s230 = ssub.s32 %s226, %s229
    %p231 = scmp.eq.s32.totalorder %s230, 0
    %s233 = sadd.s32 %s232, 1
    %s234 = scalar_select %p231, %s232, %s233
    %p237 = pneg %p231
    %p238 = scmp.eq.s32.totalorder %s16, 5
    %p239 = por %p237, %p238
    %p240 = scmp.ne.s32.totalorder %s232, %s235
    %p241 = scmp.eq.s32.totalorder %s16, 0
    %p242 = por %p240, %p241
    %p243 = scmp.ne.s32.totalorder %s232, %s235
    %p244 = scmp.eq.s32.totalorder %s21, 5
    %p245 = por %p243, %p244
    %p246 = scmp.ne.s32.totalorder %s235, %s236
    %p247 = scmp.eq.s32.totalorder %s21, 0
    %p248 = por %p246, %p247
    %p249 = scmp.ne.s32.totalorder %s235, %s236
    %p250 = scmp.eq.s32.totalorder %s22, 5
    %p251 = por %p249, %p250
    %p253 = scmp.ne.s32.totalorder %s236, %s252
    %p254 = scmp.eq.s32.totalorder %s22, 0
    %p255 = por %p253, %p254
    %s257 = sadd.s32 %s256, 1
    %p260 = scmp.eq.s32.totalorder %s16, 5
    %p261 = scmp.ne.s32.totalorder %s256, %s258
    %p262 = scmp.eq.s32.totalorder %s16, 0
    %p263 = por %p261, %p262
    %p264 = scmp.ne.s32.totalorder %s256, %s258
    %p265 = scmp.eq.s32.totalorder %s21, 5
    %p266 = por %p264, %p265
    %p267 = scmp.ne.s32.totalorder %s258, %s259
    %p268 = scmp.eq.s32.totalorder %s21, 0
    %p269 = por %p267, %p268
    %p270 = scmp.ne.s32.totalorder %s258, %s259
    %p271 = scmp.eq.s32.totalorder %s22, 5
    %p272 = por %p270, %p271
    %p274 = scmp.ne.s32.totalorder %s259, %s273
    %p275 = scmp.eq.s32.totalorder %s22, 0
    %p276 = por %p274, %p275
    %p277 = scmp.le.s32.totalorder 1, %s16
    %p278 = scmp.lt.s32.totalorder %s16, 7
    %p279 = pnand %p277, %p278
    %p280 = pneg %p279
    // Predicated region
    $region9: #{five_layer_diffractive_nn.1} parent=5 // pred_check
      _
    $region10: #{five_layer_diffractive_nn.1} parent=5 // pred_check_branch
      %282 = sbr.rel (%p279) target = $region12
    $region11: #{five_layer_diffractive_nn.1} parent=5 // pred_region
      %s283 = ssub.s32 %s16, 1
      // Predicated region
      $region13: #{five_layer_diffractive_nn.1} parent=11 // pred_check
        %p284 = pneg %p37
      $region14: #{five_layer_diffractive_nn.1} parent=11 // pred_check_branch
        %286 = sbr.rel (%p284) target = $region16
      $region15: #{five_layer_diffractive_nn.1} parent=11 // pred_region
        _
      $region16: #{five_layer_diffractive_nn.1} parent=11 // pred_fallthru
        _
      // Predicated region
      $region17: #{five_layer_diffractive_nn.1} parent=11 // pred_check
        %p287 = pneg %p58
      $region18: #{five_layer_diffractive_nn.1} parent=11 // pred_check_branch
        %289 = sbr.rel (%p287) target = $region20
      $region19: #{five_layer_diffractive_nn.1} parent=11 // pred_region
        _
      $region20: #{five_layer_diffractive_nn.1} parent=11 // pred_fallthru
        _
      // Predicated region
      $region21: #{five_layer_diffractive_nn.1} parent=11 // pred_check
        %p290 = pneg %p79
      $region22: #{five_layer_diffractive_nn.1} parent=11 // pred_check_branch
        %292 = sbr.rel (%p290) target = $region24
      $region23: #{five_layer_diffractive_nn.1} parent=11 // pred_region
        _
      $region24: #{five_layer_diffractive_nn.1} parent=11 // pred_fallthru
        _
      // Predicated region
      $region25: #{five_layer_diffractive_nn.1} parent=11 // pred_check
        %p293 = pneg %p100
      $region26: #{five_layer_diffractive_nn.1} parent=11 // pred_check_branch
        %295 = sbr.rel (%p293) target = $region28
      $region27: #{five_layer_diffractive_nn.1} parent=11 // pred_region
        _
      $region28: #{five_layer_diffractive_nn.1} parent=11 // pred_fallthru
        _
      // Predicated region
      $region29: #{five_layer_diffractive_nn.1} parent=11 // pred_check
        %p296 = pneg %p121
      $region30: #{five_layer_diffractive_nn.1} parent=11 // pred_check_branch
        %298 = sbr.rel (%p296) target = $region32
      $region31: #{five_layer_diffractive_nn.1} parent=11 // pred_region
        _
      $region32: #{five_layer_diffractive_nn.1} parent=11 // pred_fallthru
        _
      // Predicated region
      $region33: #{five_layer_diffractive_nn.1} parent=11 // pred_check
        %p299 = pneg %p142
      $region34: #{five_layer_diffractive_nn.1} parent=11 // pred_check_branch
        %301 = sbr.rel (%p299) target = $region36
      $region35: #{five_layer_diffractive_nn.1} parent=11 // pred_region
        _
      $region36: #{five_layer_diffractive_nn.1} parent=11 // pred_fallthru
        _
      // Predicated region
      $region37: #{five_layer_diffractive_nn.1} parent=11 // pred_check
        %p302 = pneg %p163
      $region38: #{five_layer_diffractive_nn.1} parent=11 // pred_check_branch
        %304 = sbr.rel (%p302) target = $region40
      $region39: #{five_layer_diffractive_nn.1} parent=11 // pred_region
        _
      $region40: #{five_layer_diffractive_nn.1} parent=11 // pred_fallthru
        _
      // Predicated region
      $region41: #{five_layer_diffractive_nn.1} parent=11 // pred_check
        %p305 = pneg %p184
      $region42: #{five_layer_diffractive_nn.1} parent=11 // pred_check_branch
        %307 = sbr.rel (%p305) target = $region44
      $region43: #{five_layer_diffractive_nn.1} parent=11 // pred_region
        _
      $region44: #{five_layer_diffractive_nn.1} parent=11 // pred_fallthru
        _
    $region12: #{five_layer_diffractive_nn.1} parent=5 // pred_fallthru
      _
    %p308 = scmp.lt.s32.totalorder %s16, 6
    // Predicated region
    $region45: #{five_layer_diffractive_nn.1} parent=5 // pred_check
      %p309 = pneg %p308
    $region46: #{five_layer_diffractive_nn.1} parent=5 // pred_check_branch
      %311 = sbr.rel (%p309) target = $region48
    $region47: #{five_layer_diffractive_nn.1} parent=5 // pred_region
      // Predicated region
      $region49: #{five_layer_diffractive_nn.1} parent=47 // pred_check
        %p312 = pneg %p210
      $region50: #{five_layer_diffractive_nn.1} parent=47 // pred_check_branch
        %314 = sbr.rel (%p312) target = $region52
      $region51: #{five_layer_diffractive_nn.1} parent=47 // pred_region
        %s315 = ssub.s32 %s16, 1
        %p316 = scmp.gt.s32.totalorder %s315, 0
        %s317 = scalar_select %p316, %s315, 0
        %p318 = scmp.lt.s32.totalorder %s317, 4
        %s319 = scalar_select %p318, %s317, 4
        %s320 = smul.addr %s319, 16
        %s321 = smul.addr %s320, 8
        %s322 = scalar_lea.vmem %s8, %s321
        %s323 = ssub.s32 %s16, 1
        %p324 = scmp.gt.s32.totalorder %s323, 0
        %s325 = scalar_select %p324, %s323, 0
      $region52: #{five_layer_diffractive_nn.1} parent=47 // pred_fallthru
        _
      // Predicated region
      $region53: #{five_layer_diffractive_nn.1} parent=47 // pred_check
        %p326 = pneg %p242
      $region54: #{five_layer_diffractive_nn.1} parent=47 // pred_check_branch
        %328 = sbr.rel (%p326) target = $region56
      $region55: #{five_layer_diffractive_nn.1} parent=47 // pred_region
        %s329 = ssub.s32 %s16, 1
        %p330 = scmp.gt.s32.totalorder %s329, 0
        %s331 = scalar_select %p330, %s329, 0
        %p332 = scmp.lt.s32.totalorder %s331, 4
        %s333 = scalar_select %p332, %s331, 4
        %s334 = smul.addr %s333, 16
        %s335 = smul.addr %s334, 8
        %s336 = scalar_lea.vmem %s9, %s335
        %s337 = ssub.s32 %s16, 1
        %p338 = scmp.gt.s32.totalorder %s337, 0
        %s339 = scalar_select %p338, %s337, 0
      $region56: #{five_layer_diffractive_nn.1} parent=47 // pred_fallthru
        _
    $region48: #{five_layer_diffractive_nn.1} parent=5 // pred_fallthru
      _
    %p340 = scmp.le.s32.totalorder 1, %s16
    %p341 = scmp.lt.s32.totalorder %s16, 7
    %p342 = pnand %p340, %p341
    %p343 = pneg %p342
    // Predicated region
    $region57: #{five_layer_diffractive_nn.1} parent=5 // pred_check
      _
    $region58: #{five_layer_diffractive_nn.1} parent=5 // pred_check_branch
      %345 = sbr.rel (%p342) target = $region60
    $region59: #{five_layer_diffractive_nn.1} parent=5 // pred_region
      %s346 = ssub.s32 %s16, 1
      %p347 = pneg %p37
      %p348 = pneg %p34
      %p349 = pneg %p58
      %p350 = pneg %p55
      %p351 = pneg %p79
      %p352 = pneg %p76
      %p353 = pneg %p100
      %p354 = pneg %p97
      %p355 = pneg %p121
      %p356 = pneg %p118
      %p357 = pneg %p142
      %p358 = pneg %p139
      %p359 = pneg %p163
      %p360 = pneg %p160
      %p361 = pneg %p184
      %p362 = pneg %p181
      %s363 = ssub.s32 %s21, 1
      %p364 = scmp.gt.s32.totalorder %s363, 0
      %s365 = scalar_select %p364, %s363, 0
      %p366 = scmp.lt.s32.totalorder %s365, 4
      %s367 = scalar_select %p366, %s365, 4
      %s368 = smul.addr %s367, 16
      %s369 = smul.addr %s368, 8
      %s370 = scalar_lea.vmem %s8, %s369
      %p371 = pneg %p216
      %p372 = pneg %p213
      %s373 = ssub.s32 %s21, 1
      %p374 = scmp.gt.s32.totalorder %s373, 0
      %s375 = scalar_select %p374, %s373, 0
      %p376 = scmp.lt.s32.totalorder %s375, 4
      %s377 = scalar_select %p376, %s375, 4
      %s378 = smul.addr %s377, 16
      %s379 = smul.addr %s378, 8
      %s380 = scalar_lea.vmem %s9, %s379
      %p381 = pneg %p248
      %p382 = pneg %p245
      %p383 = pneg %p269
      %p384 = pneg %p266
      %s385 = ssub.s32 %s21, 1
      %p386 = scmp.gt.s32.totalorder %s385, 0
      %s387 = scalar_select %p386, %s385, 0
      %p388 = scmp.lt.s32.totalorder %s387, 4
      %s389 = scalar_select %p388, %s387, 4
      %s390 = smul.addr %s389, 16
      %s391 = smul.addr %s390, 8
      %s392 = scalar_lea.vmem %s8, %s391
      %s393 = ssub.s32 %s21, 1
      %p394 = scmp.gt.s32.totalorder %s393, 0
      %s395 = scalar_select %p394, %s393, 0
      %s396 = ssub.s32 %s21, 1
      %p397 = scmp.gt.s32.totalorder %s396, 0
      %s398 = scalar_select %p397, %s396, 0
      %p399 = scmp.lt.s32.totalorder %s398, 4
      %s400 = scalar_select %p399, %s398, 4
      %s401 = smul.addr %s400, 16
      %s402 = smul.addr %s401, 8
      %s403 = scalar_lea.vmem %s9, %s402
      %s404 = ssub.s32 %s21, 1
      %p405 = scmp.gt.s32.totalorder %s404, 0
      %s406 = scalar_select %p405, %s404, 0
      %p408 = scmp.eq.s32.totalorder %s21, 0
      // Predicated region
      $region61: #{five_layer_diffractive_nn.1} parent=59 // pred_check
        %p409 = pneg %p408
      $region62: #{five_layer_diffractive_nn.1} parent=59 // pred_check_branch
        %411 = sbr.rel (%p409) target = $region64
      $region63: #{five_layer_diffractive_nn.1} parent=59 // pred_region
        %v412 = vld [vmem:[%s5] sm:$0xf]
        %v413 = vld [vmem:[%s5 + $0x4] sm:$0xf]
        %v414 = vld [vmem:[%s5 + $0x8] sm:$0xf]
        %v415 = vld [vmem:[%s5 + $0xc] sm:$0xf]
        %v416 = vld [vmem:[%s5 + $0x10] sm:$0xf]
        %v417 = vld [vmem:[%s5 + $0x14] sm:$0xf]
        %v418 = vld [vmem:[%s5 + $0x18] sm:$0xf]
        %v419 = vld [vmem:[%s5 + $0x1c] sm:$0xf]
        %v420 = vld [vmem:[%s5 + $0x20] sm:$0xf]
        %v421 = vld [vmem:[%s5 + $0x24] sm:$0xf]
        %v422 = vld [vmem:[%s5 + $0x28] sm:$0xf]
        %v423 = vld [vmem:[%s5 + $0x2c] sm:$0xf]
        %v424 = vld [vmem:[%s5 + $0x30] sm:$0xf]
        %v425 = vld [vmem:[%s5 + $0x34] sm:$0xf]
        %v426 = vld [vmem:[%s5 + $0x38] sm:$0xf]
        %v427 = vld [vmem:[%s5 + $0x3c] sm:$0xf]
        %v428 = vld [vmem:[%s5 + $0x40] sm:$0xf]
        %v429 = vld [vmem:[%s5 + $0x44] sm:$0xf]
        %v430 = vld [vmem:[%s5 + $0x48] sm:$0xf]
        %v431 = vld [vmem:[%s5 + $0x4c] sm:$0xf]
        %v432 = vld [vmem:[%s5 + $0x50] sm:$0xf]
        %v433 = vld [vmem:[%s5 + $0x54] sm:$0xf]
        %v434 = vld [vmem:[%s5 + $0x58] sm:$0xf]
        %v435 = vld [vmem:[%s5 + $0x5c] sm:$0xf]
        %v436 = vld [vmem:[%s5 + $0x60] sm:$0xf]
        %v437 = vld [vmem:[%s5 + $0x64] sm:$0xf]
        %v438 = vld [vmem:[%s5 + $0x68] sm:$0xf]
        %v439 = vld [vmem:[%s5 + $0x6c] sm:$0xf]
        %v440 = vld [vmem:[%s5 + $0x70] sm:$0xf]
        %v441 = vld [vmem:[%s5 + $0x74] sm:$0xf]
        %v442 = vld [vmem:[%s5 + $0x78] sm:$0xf]
        %v443 = vld [vmem:[%s5 + $0x7c] sm:$0xf]
        %v444 = vld [vmem:[%s0] sm:$0xff]
        %v445 = vld [vmem:[%s0 + $0x8] sm:$0xff]
        %v446 = vld [vmem:[%s0 + $0x10] sm:$0xff]
        %v447 = vld [vmem:[%s0 + $0x18] sm:$0xff]
        %v448 = vld [vmem:[%s0 + $0x20] sm:$0xff]
        %v449 = vld [vmem:[%s0 + $0x28] sm:$0xff]
        %v450 = vld [vmem:[%s0 + $0x30] sm:$0xff]
        %v451 = vld [vmem:[%s0 + $0x38] sm:$0xff]
        %v452 = vld [vmem:[%s0 + $0x40] sm:$0xff]
        %v453 = vld [vmem:[%s0 + $0x48] sm:$0xff]
        %v454 = vld [vmem:[%s0 + $0x50] sm:$0xff]
        %v455 = vld [vmem:[%s0 + $0x58] sm:$0xff]
        %v456 = vld [vmem:[%s0 + $0x60] sm:$0xff]
        %v457 = vld [vmem:[%s0 + $0x68] sm:$0xff]
        %v458 = vld [vmem:[%s0 + $0x70] sm:$0xff]
        %v459 = vld [vmem:[%s0 + $0x78] sm:$0xff]
        %v460 = vpack.c.bf16 %v445, %v444
        %v461 = vpack.c.bf16 %v447, %v446
        %v462 = vpack.c.bf16 %v449, %v448
        %v463 = vpack.c.bf16 %v451, %v450
        %v464 = vpack.c.bf16 %v453, %v452
        %v465 = vpack.c.bf16 %v455, %v454
        %v466 = vpack.c.bf16 %v457, %v456
        %v467 = vpack.c.bf16 %v459, %v458
        %v500 = vunpack.c.l.b16 %v412
        %v501 = vunpack.c.l.b16 %v413
        %v502 = vunpack.c.l.b16 %v414
        %v503 = vunpack.c.l.b16 %v415
        %v504 = vunpack.c.l.b16 %v416
        %v505 = vunpack.c.l.b16 %v417
        %v506 = vunpack.c.l.b16 %v418
        %v507 = vunpack.c.l.b16 %v419
        %v508 = vunpack.c.l.b16 %v420
        %v509 = vunpack.c.l.b16 %v421
        %v510 = vunpack.c.l.b16 %v422
        %v511 = vunpack.c.l.b16 %v423
        %v512 = vunpack.c.l.b16 %v424
        %v513 = vunpack.c.l.b16 %v425
        %v514 = vunpack.c.l.b16 %v426
        %v515 = vunpack.c.l.b16 %v427
        %v516 = vunpack.c.l.b16 %v428
        %v517 = vunpack.c.l.b16 %v429
        %v518 = vunpack.c.l.b16 %v430
        %v519 = vunpack.c.l.b16 %v431
        %v520 = vunpack.c.l.b16 %v432
        %v521 = vunpack.c.l.b16 %v433
        %v522 = vunpack.c.l.b16 %v434
        %v523 = vunpack.c.l.b16 %v435
        %v524 = vunpack.c.l.b16 %v436
        %v525 = vunpack.c.l.b16 %v437
        %v526 = vunpack.c.l.b16 %v438
        %v527 = vunpack.c.l.b16 %v439
        %v528 = vunpack.c.l.b16 %v440
        %v529 = vunpack.c.l.b16 %v441
        %v530 = vunpack.c.l.b16 %v442
        %v531 = vunpack.c.l.b16 %v443
        %v532 = vpack.c.b16 %v501, %v500
        %v533 = vpack.c.b16 %v503, %v502
        %v534 = vpack.c.b16 %v505, %v504
        %v535 = vpack.c.b16 %v507, %v506
        %v536 = vpack.c.b16 %v509, %v508
        %v537 = vpack.c.b16 %v511, %v510
        %v538 = vpack.c.b16 %v513, %v512
        %v539 = vpack.c.b16 %v515, %v514
        %v540 = vpack.c.b16 %v517, %v516
        %v541 = vpack.c.b16 %v519, %v518
        %v542 = vpack.c.b16 %v521, %v520
        %v543 = vpack.c.b16 %v523, %v522
        %v544 = vpack.c.b16 %v525, %v524
        %v545 = vpack.c.b16 %v527, %v526
        %v546 = vpack.c.b16 %v529, %v528
        %v547 = vpack.c.b16 %v531, %v530
        %564 = vmatprep.subr.bf16.mxu0 0
        %565 = vmatpush1.bf16.msra.mxu0 %v467
        %566 = vmatprep.subr.bf16.mxu0 0
        %567 = vmatpush1.bf16.msra.mxu0 %v466
        %568 = vmatprep.subr.bf16.mxu0 0
        %569 = vmatpush1.bf16.msra.mxu0 %v465
        %570 = vmatprep.subr.bf16.mxu0 0
        %571 = vmatpush1.bf16.msra.mxu0 %v464
        %572 = vmatprep.subr.bf16.mxu0 0
        %573 = vmatpush1.bf16.msra.mxu0 %v463
        %574 = vmatprep.subr.bf16.mxu0 0
        %575 = vmatpush1.bf16.msra.mxu0 %v462
        %576 = vmatprep.subr.bf16.mxu0 0
        %577 = vmatpush1.bf16.msra.mxu0 %v461
        %578 = vmatprep.subr.bf16.mxu0 0
        %579 = vmatpush1.bf16.msra.mxu0 %v460
        %580 = vmatprep.subr.bf16.mxu0 0
        %581 = vmatpush2.bf16.msra.mxu0 0
        %582 = vmatprep.subr.bf16.mxu0 0
        %583 = vmatpush2.bf16.msra.mxu0 0
        %584 = vmatprep.subr.bf16.mxu0 0
        %585 = vmatpush2.bf16.msra.mxu0 0
        %586 = vmatprep.subr.bf16.mxu0 0
        %587 = vmatpush2.bf16.msra.mxu0 0
        %588 = vmatprep.subr.bf16.mxu0 0
        %589 = vmatpush2.bf16.msra.mxu0 0
        %590 = vmatprep.subr.bf16.mxu0 0
        %591 = vmatpush2.bf16.msra.mxu0 0
        %592 = vmatprep.subr.bf16.mxu0 0
        %593 = vmatpush2.bf16.msra.mxu0 0
        %594 = vmatprep.subr.bf16.mxu0 0
        %595 = vmatpush2.bf16.msra.mxu0 0
        %596 = vmatprep.mubr.bf16.mxu0 0
        %597 = vmatmul.mubr.bf16.gmra.mxu0 %v532
        %v598 = vpop.f32.mrf.mxu0
        %v599 = vadd.f32 0.0, %v598
        %v600 = vpop.f32.mrf.mxu0
        %v601 = vpop.f32.mrf.mxu0
        %v602 = vadd.f32 0.0, %v601
        %v603 = vpop.f32.mrf.mxu0
        %604 = vmatprep.mubr.bf16.mxu0 0
        %605 = vmatmul.mubr.bf16.gmra.mxu0 %v533
        %v606 = vpop.f32.mrf.mxu0
        %v607 = vadd.f32 0.0, %v606
        %v608 = vpop.f32.mrf.mxu0
        %v609 = vpop.f32.mrf.mxu0
        %v610 = vadd.f32 0.0, %v609
        %v611 = vpop.f32.mrf.mxu0
        %612 = vmatprep.mubr.bf16.mxu0 0
        %613 = vmatmul.mubr.bf16.gmra.mxu0 %v534
        %v614 = vpop.f32.mrf.mxu0
        %v615 = vadd.f32 0.0, %v614
        %v616 = vpop.f32.mrf.mxu0
        %v617 = vpop.f32.mrf.mxu0
        %v618 = vadd.f32 0.0, %v617
        %v619 = vpop.f32.mrf.mxu0
        %620 = vmatprep.mubr.bf16.mxu0 0
        %621 = vmatmul.mubr.bf16.gmra.mxu0 %v535
        %v622 = vpop.f32.mrf.mxu0
        %v623 = vadd.f32 0.0, %v622
        %v624 = vpop.f32.mrf.mxu0
        %v625 = vpop.f32.mrf.mxu0
        %v626 = vadd.f32 0.0, %v625
        %v627 = vpop.f32.mrf.mxu0
        %628 = vmatprep.mubr.bf16.mxu0 0
        %629 = vmatmul.mubr.bf16.gmra.mxu0 %v536
        %v630 = vpop.f32.mrf.mxu0
        %v631 = vadd.f32 0.0, %v630
        %v632 = vpop.f32.mrf.mxu0
        %v633 = vpop.f32.mrf.mxu0
        %v634 = vadd.f32 0.0, %v633
        %v635 = vpop.f32.mrf.mxu0
        %636 = vmatprep.mubr.bf16.mxu0 0
        %637 = vmatmul.mubr.bf16.gmra.mxu0 %v537
        %v638 = vpop.f32.mrf.mxu0
        %v639 = vadd.f32 0.0, %v638
        %v640 = vpop.f32.mrf.mxu0
        %v641 = vpop.f32.mrf.mxu0
        %v642 = vadd.f32 0.0, %v641
        %v643 = vpop.f32.mrf.mxu0
        %644 = vmatprep.mubr.bf16.mxu0 0
        %645 = vmatmul.mubr.bf16.gmra.mxu0 %v538
        %v646 = vpop.f32.mrf.mxu0
        %v647 = vadd.f32 0.0, %v646
        %v648 = vpop.f32.mrf.mxu0
        %v649 = vpop.f32.mrf.mxu0
        %v650 = vadd.f32 0.0, %v649
        %v651 = vpop.f32.mrf.mxu0
        %652 = vmatprep.mubr.bf16.mxu0 0
        %653 = vmatmul.mubr.bf16.gmra.mxu0 %v539
        %v654 = vpop.f32.mrf.mxu0
        %v655 = vadd.f32 0.0, %v654
        %v656 = vpop.f32.mrf.mxu0
        %v657 = vpop.f32.mrf.mxu0
        %v658 = vadd.f32 0.0, %v657
        %v659 = vpop.f32.mrf.mxu0
        %660 = vmatprep.mubr.bf16.mxu0 0
        %661 = vmatmul.mubr.bf16.gmra.mxu0 %v540
        %v662 = vpop.f32.mrf.mxu0
        %v663 = vadd.f32 0.0, %v662
        %v664 = vpop.f32.mrf.mxu0
        %v665 = vpop.f32.mrf.mxu0
        %v666 = vadd.f32 0.0, %v665
        %v667 = vpop.f32.mrf.mxu0
        %668 = vmatprep.mubr.bf16.mxu0 0
        %669 = vmatmul.mubr.bf16.gmra.mxu0 %v541
        %v670 = vpop.f32.mrf.mxu0
        %v671 = vadd.f32 0.0, %v670
        %v672 = vpop.f32.mrf.mxu0
        %v673 = vpop.f32.mrf.mxu0
        %v674 = vadd.f32 0.0, %v673
        %v675 = vpop.f32.mrf.mxu0
        %676 = vmatprep.mubr.bf16.mxu0 0
        %677 = vmatmul.mubr.bf16.gmra.mxu0 %v542
        %v678 = vpop.f32.mrf.mxu0
        %v679 = vadd.f32 0.0, %v678
        %v680 = vpop.f32.mrf.mxu0
        %v681 = vpop.f32.mrf.mxu0
        %v682 = vadd.f32 0.0, %v681
        %v683 = vpop.f32.mrf.mxu0
        %684 = vmatprep.mubr.bf16.mxu0 0
        %685 = vmatmul.mubr.bf16.gmra.mxu0 %v543
        %v686 = vpop.f32.mrf.mxu0
        %v687 = vadd.f32 0.0, %v686
        %v688 = vpop.f32.mrf.mxu0
        %v689 = vpop.f32.mrf.mxu0
        %v690 = vadd.f32 0.0, %v689
        %v691 = vpop.f32.mrf.mxu0
        %692 = vmatprep.mubr.bf16.mxu0 0
        %693 = vmatmul.mubr.bf16.gmra.mxu0 %v544
        %v694 = vpop.f32.mrf.mxu0
        %v695 = vadd.f32 0.0, %v694
        %v696 = vpop.f32.mrf.mxu0
        %v697 = vpop.f32.mrf.mxu0
        %v698 = vadd.f32 0.0, %v697
        %v699 = vpop.f32.mrf.mxu0
        %700 = vmatprep.mubr.bf16.mxu0 0
        %701 = vmatmul.mubr.bf16.gmra.mxu0 %v545
        %v702 = vpop.f32.mrf.mxu0
        %v703 = vadd.f32 0.0, %v702
        %v704 = vpop.f32.mrf.mxu0
        %v705 = vpop.f32.mrf.mxu0
        %v706 = vadd.f32 0.0, %v705
        %v707 = vpop.f32.mrf.mxu0
        %708 = vmatprep.mubr.bf16.mxu0 0
        %709 = vmatmul.mubr.bf16.gmra.mxu0 %v546
        %v710 = vpop.f32.mrf.mxu0
        %v711 = vadd.f32 0.0, %v710
        %v712 = vpop.f32.mrf.mxu0
        %v713 = vpop.f32.mrf.mxu0
        %v714 = vadd.f32 0.0, %v713
        %v715 = vpop.f32.mrf.mxu0
        %716 = vmatprep.mubr.bf16.mxu0 0
        %717 = vmatmul.mubr.bf16.gmra.mxu0 %v547
        %v718 = vpop.f32.mrf.mxu0
        %v719 = vadd.f32 0.0, %v718
        %v720 = vpop.f32.mrf.mxu0
        %v721 = vpop.f32.mrf.mxu0
        %v722 = vadd.f32 0.0, %v721
        %v723 = vpop.f32.mrf.mxu0
        %724 = vdwg.mxu0
        %725 = vst [vmem:[#allocation3] sm:$0xff] %v599
        %726 = vst [vmem:[#allocation3 + $0x10] sm:$0xff] %v602
        %727 = vst [vmem:[#allocation3 + $0x20] sm:$0xff] %v607
        %728 = vst [vmem:[#allocation3 + $0x30] sm:$0xff] %v610
        %729 = vst [vmem:[#allocation3 + $0x40] sm:$0xff] %v615
        %730 = vst [vmem:[#allocation3 + $0x50] sm:$0xff] %v618
        %731 = vst [vmem:[#allocation3 + $0x60] sm:$0xff] %v623
        %732 = vst [vmem:[#allocation3 + $0x70] sm:$0xff] %v626
        %733 = vst [vmem:[#allocation3 + $0x80] sm:$0xff] %v631
        %734 = vst [vmem:[#allocation3 + $0x90] sm:$0xff] %v634
        %735 = vst [vmem:[#allocation3 + $0xa0] sm:$0xff] %v639
        %736 = vst [vmem:[#allocation3 + $0xb0] sm:$0xff] %v642
        %737 = vst [vmem:[#allocation3 + $0xc0] sm:$0xff] %v647
        %738 = vst [vmem:[#allocation3 + $0xd0] sm:$0xff] %v650
        %739 = vst [vmem:[#allocation3 + $0xe0] sm:$0xff] %v655
        %740 = vst [vmem:[#allocation3 + $0xf0] sm:$0xff] %v658
        %741 = vst [vmem:[#allocation3 + $0x8] sm:$0xff] %v663
        %742 = vst [vmem:[#allocation3 + $0x18] sm:$0xff] %v666
        %743 = vst [vmem:[#allocation3 + $0x28] sm:$0xff] %v671
        %744 = vst [vmem:[#allocation3 + $0x38] sm:$0xff] %v674
        %745 = vst [vmem:[#allocation3 + $0x48] sm:$0xff] %v679
        %746 = vst [vmem:[#allocation3 + $0x58] sm:$0xff] %v682
        %747 = vst [vmem:[#allocation3 + $0x68] sm:$0xff] %v687
        %748 = vst [vmem:[#allocation3 + $0x78] sm:$0xff] %v690
        %749 = vst [vmem:[#allocation3 + $0x88] sm:$0xff] %v695
        %750 = vst [vmem:[#allocation3 + $0x98] sm:$0xff] %v698
        %751 = vst [vmem:[#allocation3 + $0xa8] sm:$0xff] %v703
        %752 = vst [vmem:[#allocation3 + $0xb8] sm:$0xff] %v706
        %753 = vst [vmem:[#allocation3 + $0xc8] sm:$0xff] %v711
        %754 = vst [vmem:[#allocation3 + $0xd8] sm:$0xff] %v714
        %755 = vst [vmem:[#allocation3 + $0xe8] sm:$0xff] %v719
        %756 = vst [vmem:[#allocation3 + $0xf8] sm:$0xff] %v722
      $region64: #{five_layer_diffractive_nn.1} parent=59 // pred_fallthru
        _
      %p757 = scmp.gt.s32.totalorder %s21, 0
      // Predicated region
      $region65: #{five_layer_diffractive_nn.1} parent=59 // pred_check
        %p758 = pneg %p757
      $region66: #{five_layer_diffractive_nn.1} parent=59 // pred_check_branch
        %760 = sbr.rel (%p758) target = $region68
      $region67: #{five_layer_diffractive_nn.1} parent=59 // pred_region
        %v761 = vld [vmem:[#allocation2] sm:$0xff]
        %v762 = vld [vmem:[#allocation2 + $0x8] sm:$0xff]
        %v763 = vld [vmem:[#allocation2 + $0x10] sm:$0xff]
        %v764 = vld [vmem:[#allocation2 + $0x18] sm:$0xff]
        %v765 = vld [vmem:[#allocation2 + $0x20] sm:$0xff]
        %v766 = vld [vmem:[#allocation2 + $0x28] sm:$0xff]
        %v767 = vld [vmem:[#allocation2 + $0x30] sm:$0xff]
        %v768 = vld [vmem:[#allocation2 + $0x38] sm:$0xff]
        %v769 = vld [vmem:[#allocation2 + $0x40] sm:$0xff]
        %v770 = vld [vmem:[#allocation2 + $0x48] sm:$0xff]
        %v771 = vld [vmem:[#allocation2 + $0x50] sm:$0xff]
        %v772 = vld [vmem:[#allocation2 + $0x58] sm:$0xff]
        %v773 = vld [vmem:[#allocation2 + $0x60] sm:$0xff]
        %v774 = vld [vmem:[#allocation2 + $0x68] sm:$0xff]
        %v775 = vld [vmem:[#allocation2 + $0x70] sm:$0xff]
        %v776 = vld [vmem:[#allocation2 + $0x78] sm:$0xff]
        %v777 = vld [vmem:[#allocation2 + $0x80] sm:$0xff]
        %v778 = vld [vmem:[#allocation2 + $0x88] sm:$0xff]
        %v779 = vld [vmem:[#allocation2 + $0x90] sm:$0xff]
        %v780 = vld [vmem:[#allocation2 + $0x98] sm:$0xff]
        %v781 = vld [vmem:[#allocation2 + $0xa0] sm:$0xff]
        %v782 = vld [vmem:[#allocation2 + $0xa8] sm:$0xff]
        %v783 = vld [vmem:[#allocation2 + $0xb0] sm:$0xff]
        %v784 = vld [vmem:[#allocation2 + $0xb8] sm:$0xff]
        %v785 = vld [vmem:[#allocation2 + $0xc0] sm:$0xff]
        %v786 = vld [vmem:[#allocation2 + $0xc8] sm:$0xff]
        %v787 = vld [vmem:[#allocation2 + $0xd0] sm:$0xff]
        %v788 = vld [vmem:[#allocation2 + $0xd8] sm:$0xff]
        %v789 = vld [vmem:[#allocation2 + $0xe0] sm:$0xff]
        %v790 = vld [vmem:[#allocation2 + $0xe8] sm:$0xff]
        %v791 = vld [vmem:[#allocation2 + $0xf0] sm:$0xff]
        %v792 = vld [vmem:[#allocation2 + $0xf8] sm:$0xff]
        %v793 = vld [vmem:[%s392] sm:$0xff]
        %v794 = vld [vmem:[%s392 + $0x8] sm:$0xff]
        %v795 = vld [vmem:[%s392 + $0x10] sm:$0xff]
        %v796 = vld [vmem:[%s392 + $0x18] sm:$0xff]
        %v797 = vld [vmem:[%s392 + $0x20] sm:$0xff]
        %v798 = vld [vmem:[%s392 + $0x28] sm:$0xff]
        %v799 = vld [vmem:[%s392 + $0x30] sm:$0xff]
        %v800 = vld [vmem:[%s392 + $0x38] sm:$0xff]
        %v801 = vld [vmem:[%s392 + $0x40] sm:$0xff]
        %v802 = vld [vmem:[%s392 + $0x48] sm:$0xff]
        %v803 = vld [vmem:[%s392 + $0x50] sm:$0xff]
        %v804 = vld [vmem:[%s392 + $0x58] sm:$0xff]
        %v805 = vld [vmem:[%s392 + $0x60] sm:$0xff]
        %v806 = vld [vmem:[%s392 + $0x68] sm:$0xff]
        %v807 = vld [vmem:[%s392 + $0x70] sm:$0xff]
        %v808 = vld [vmem:[%s392 + $0x78] sm:$0xff]
        %v809 = vld [vmem:[%s403] sm:$0xff]
        %v810 = vld [vmem:[%s403 + $0x8] sm:$0xff]
        %v811 = vld [vmem:[%s403 + $0x10] sm:$0xff]
        %v812 = vld [vmem:[%s403 + $0x18] sm:$0xff]
        %v813 = vld [vmem:[%s403 + $0x20] sm:$0xff]
        %v814 = vld [vmem:[%s403 + $0x28] sm:$0xff]
        %v815 = vld [vmem:[%s403 + $0x30] sm:$0xff]
        %v816 = vld [vmem:[%s403 + $0x38] sm:$0xff]
        %v817 = vld [vmem:[%s403 + $0x40] sm:$0xff]
        %v818 = vld [vmem:[%s403 + $0x48] sm:$0xff]
        %v819 = vld [vmem:[%s403 + $0x50] sm:$0xff]
        %v820 = vld [vmem:[%s403 + $0x58] sm:$0xff]
        %v821 = vld [vmem:[%s403 + $0x60] sm:$0xff]
        %v822 = vld [vmem:[%s403 + $0x68] sm:$0xff]
        %v823 = vld [vmem:[%s403 + $0x70] sm:$0xff]
        %v824 = vld [vmem:[%s403 + $0x78] sm:$0xff]
        %v825 = vmul.f32 %v761, %v793
        %v826 = vmul.f32 %v762, %v794
        %v827 = vmul.f32 %v763, %v795
        %v828 = vmul.f32 %v764, %v796
        %v829 = vmul.f32 %v765, %v797
        %v830 = vmul.f32 %v766, %v798
        %v831 = vmul.f32 %v767, %v799
        %v832 = vmul.f32 %v768, %v800
        %v833 = vmul.f32 %v769, %v801
        %v834 = vmul.f32 %v770, %v802
        %v835 = vmul.f32 %v771, %v803
        %v836 = vmul.f32 %v772, %v804
        %v837 = vmul.f32 %v773, %v805
        %v838 = vmul.f32 %v774, %v806
        %v839 = vmul.f32 %v775, %v807
        %v840 = vmul.f32 %v776, %v808
        %v841 = vmul.f32 %v777, %v809
        %v842 = vmul.f32 %v778, %v810
        %v843 = vmul.f32 %v779, %v811
        %v844 = vmul.f32 %v780, %v812
        %v845 = vmul.f32 %v781, %v813
        %v846 = vmul.f32 %v782, %v814
        %v847 = vmul.f32 %v783, %v815
        %v848 = vmul.f32 %v784, %v816
        %v849 = vmul.f32 %v785, %v817
        %v850 = vmul.f32 %v786, %v818
        %v851 = vmul.f32 %v787, %v819
        %v852 = vmul.f32 %v788, %v820
        %v853 = vmul.f32 %v789, %v821
        %v854 = vmul.f32 %v790, %v822
        %v855 = vmul.f32 %v791, %v823
        %v856 = vmul.f32 %v792, %v824
        %v857 = vsub.f32 %v825, %v841
        %v858 = vsub.f32 %v826, %v842
        %v859 = vsub.f32 %v827, %v843
        %v860 = vsub.f32 %v828, %v844
        %v861 = vsub.f32 %v829, %v845
        %v862 = vsub.f32 %v830, %v846
        %v863 = vsub.f32 %v831, %v847
        %v864 = vsub.f32 %v832, %v848
        %v865 = vsub.f32 %v833, %v849
        %v866 = vsub.f32 %v834, %v850
        %v867 = vsub.f32 %v835, %v851
        %v868 = vsub.f32 %v836, %v852
        %v869 = vsub.f32 %v837, %v853
        %v870 = vsub.f32 %v838, %v854
        %v871 = vsub.f32 %v839, %v855
        %v872 = vsub.f32 %v840, %v856
        %873 = vst [vmem:[#allocation2] sm:$0xff] %v857
        %874 = vst [vmem:[#allocation2 + $0x8] sm:$0xff] %v858
        %875 = vst [vmem:[#allocation2 + $0x10] sm:$0xff] %v859
        %876 = vst [vmem:[#allocation2 + $0x18] sm:$0xff] %v860
        %877 = vst [vmem:[#allocation2 + $0x20] sm:$0xff] %v861
        %878 = vst [vmem:[#allocation2 + $0x28] sm:$0xff] %v862
        %879 = vst [vmem:[#allocation2 + $0x30] sm:$0xff] %v863
        %880 = vst [vmem:[#allocation2 + $0x38] sm:$0xff] %v864
        %881 = vst [vmem:[#allocation2 + $0x40] sm:$0xff] %v865
        %882 = vst [vmem:[#allocation2 + $0x48] sm:$0xff] %v866
        %883 = vst [vmem:[#allocation2 + $0x50] sm:$0xff] %v867
        %884 = vst [vmem:[#allocation2 + $0x58] sm:$0xff] %v868
        %885 = vst [vmem:[#allocation2 + $0x60] sm:$0xff] %v869
        %886 = vst [vmem:[#allocation2 + $0x68] sm:$0xff] %v870
        %887 = vst [vmem:[#allocation2 + $0x70] sm:$0xff] %v871
        %888 = vst [vmem:[#allocation2 + $0x78] sm:$0xff] %v872
        %v889 = vmul.f32 %v761, %v809
        %v890 = vmul.f32 %v762, %v810
        %v891 = vmul.f32 %v763, %v811
        %v892 = vmul.f32 %v764, %v812
        %v893 = vmul.f32 %v765, %v813
        %v894 = vmul.f32 %v766, %v814
        %v895 = vmul.f32 %v767, %v815
        %v896 = vmul.f32 %v768, %v816
        %v897 = vmul.f32 %v769, %v817
        %v898 = vmul.f32 %v770, %v818
        %v899 = vmul.f32 %v771, %v819
        %v900 = vmul.f32 %v772, %v820
        %v901 = vmul.f32 %v773, %v821
        %v902 = vmul.f32 %v774, %v822
        %v903 = vmul.f32 %v775, %v823
        %v904 = vmul.f32 %v776, %v824
        %v905 = vmul.f32 %v777, %v793
        %v906 = vmul.f32 %v778, %v794
        %v907 = vmul.f32 %v779, %v795
        %v908 = vmul.f32 %v780, %v796
        %v909 = vmul.f32 %v781, %v797
        %v910 = vmul.f32 %v782, %v798
        %v911 = vmul.f32 %v783, %v799
        %v912 = vmul.f32 %v784, %v800
        %v913 = vmul.f32 %v785, %v801
        %v914 = vmul.f32 %v786, %v802
        %v915 = vmul.f32 %v787, %v803
        %v916 = vmul.f32 %v788, %v804
        %v917 = vmul.f32 %v789, %v805
        %v918 = vmul.f32 %v790, %v806
        %v919 = vmul.f32 %v791, %v807
        %v920 = vmul.f32 %v792, %v808
        %v921 = vadd.f32 %v889, %v905
        %v922 = vadd.f32 %v890, %v906
        %v923 = vadd.f32 %v891, %v907
        %v924 = vadd.f32 %v892, %v908
        %v925 = vadd.f32 %v893, %v909
        %v926 = vadd.f32 %v894, %v910
        %v927 = vadd.f32 %v895, %v911
        %v928 = vadd.f32 %v896, %v912
        %v929 = vadd.f32 %v897, %v913
        %v930 = vadd.f32 %v898, %v914
        %v931 = vadd.f32 %v899, %v915
        %v932 = vadd.f32 %v900, %v916
        %v933 = vadd.f32 %v901, %v917
        %v934 = vadd.f32 %v902, %v918
        %v935 = vadd.f32 %v903, %v919
        %v936 = vadd.f32 %v904, %v920
        %937 = vst [vmem:[#allocation2 + $0x80] sm:$0xff] %v921
        %938 = vst [vmem:[#allocation2 + $0x88] sm:$0xff] %v922
        %939 = vst [vmem:[#allocation2 + $0x90] sm:$0xff] %v923
        %940 = vst [vmem:[#allocation2 + $0x98] sm:$0xff] %v924
        %941 = vst [vmem:[#allocation2 + $0xa0] sm:$0xff] %v925
        %942 = vst [vmem:[#allocation2 + $0xa8] sm:$0xff] %v926
        %943 = vst [vmem:[#allocation2 + $0xb0] sm:$0xff] %v927
        %944 = vst [vmem:[#allocation2 + $0xb8] sm:$0xff] %v928
        %945 = vst [vmem:[#allocation2 + $0xc0] sm:$0xff] %v929
        %946 = vst [vmem:[#allocation2 + $0xc8] sm:$0xff] %v930
        %947 = vst [vmem:[#allocation2 + $0xd0] sm:$0xff] %v931
        %948 = vst [vmem:[#allocation2 + $0xd8] sm:$0xff] %v932
        %949 = vst [vmem:[#allocation2 + $0xe0] sm:$0xff] %v933
        %950 = vst [vmem:[#allocation2 + $0xe8] sm:$0xff] %v934
        %951 = vst [vmem:[#allocation2 + $0xf0] sm:$0xff] %v935
        %952 = vst [vmem:[#allocation2 + $0xf8] sm:$0xff] %v936
        %v953 = vld [vmem:[%s1] sm:$0xff]
        %v954 = vld [vmem:[%s1 + $0x8] sm:$0xff]
        %v955 = vld [vmem:[%s1 + $0x10] sm:$0xff]
        %v956 = vld [vmem:[%s1 + $0x18] sm:$0xff]
        %v957 = vld [vmem:[%s1 + $0x20] sm:$0xff]
        %v958 = vld [vmem:[%s1 + $0x28] sm:$0xff]
        %v959 = vld [vmem:[%s1 + $0x30] sm:$0xff]
        %v960 = vld [vmem:[%s1 + $0x38] sm:$0xff]
        %v961 = vld [vmem:[%s1 + $0x40] sm:$0xff]
        %v962 = vld [vmem:[%s1 + $0x48] sm:$0xff]
        %v963 = vld [vmem:[%s1 + $0x50] sm:$0xff]
        %v964 = vld [vmem:[%s1 + $0x58] sm:$0xff]
        %v965 = vld [vmem:[%s1 + $0x60] sm:$0xff]
        %v966 = vld [vmem:[%s1 + $0x68] sm:$0xff]
        %v967 = vld [vmem:[%s1 + $0x70] sm:$0xff]
        %v968 = vld [vmem:[%s1 + $0x78] sm:$0xff]
        %v969 = vld [vmem:[%s1 + $0x80] sm:$0xff]
        %v970 = vld [vmem:[%s1 + $0x88] sm:$0xff]
        %v971 = vld [vmem:[%s1 + $0x90] sm:$0xff]
        %v972 = vld [vmem:[%s1 + $0x98] sm:$0xff]
        %v973 = vld [vmem:[%s1 + $0xa0] sm:$0xff]
        %v974 = vld [vmem:[%s1 + $0xa8] sm:$0xff]
        %v975 = vld [vmem:[%s1 + $0xb0] sm:$0xff]
        %v976 = vld [vmem:[%s1 + $0xb8] sm:$0xff]
        %v977 = vld [vmem:[%s1 + $0xc0] sm:$0xff]
        %v978 = vld [vmem:[%s1 + $0xc8] sm:$0xff]
        %v979 = vld [vmem:[%s1 + $0xd0] sm:$0xff]
        %v980 = vld [vmem:[%s1 + $0xd8] sm:$0xff]
        %v981 = vld [vmem:[%s1 + $0xe0] sm:$0xff]
        %v982 = vld [vmem:[%s1 + $0xe8] sm:$0xff]
        %v983 = vld [vmem:[%s1 + $0xf0] sm:$0xff]
        %v984 = vld [vmem:[%s1 + $0xf8] sm:$0xff]
        %v985 = vld [vmem:[#allocation2] sm:$0xff]
        %v986 = vld [vmem:[#allocation2 + $0x8] sm:$0xff]
        %v987 = vld [vmem:[#allocation2 + $0x10] sm:$0xff]
        %v988 = vld [vmem:[#allocation2 + $0x18] sm:$0xff]
        %v989 = vld [vmem:[#allocation2 + $0x20] sm:$0xff]
        %v990 = vld [vmem:[#allocation2 + $0x28] sm:$0xff]
        %v991 = vld [vmem:[#allocation2 + $0x30] sm:$0xff]
        %v992 = vld [vmem:[#allocation2 + $0x38] sm:$0xff]
        %v993 = vld [vmem:[#allocation2 + $0x40] sm:$0xff]
        %v994 = vld [vmem:[#allocation2 + $0x48] sm:$0xff]
        %v995 = vld [vmem:[#allocation2 + $0x50] sm:$0xff]
        %v996 = vld [vmem:[#allocation2 + $0x58] sm:$0xff]
        %v997 = vld [vmem:[#allocation2 + $0x60] sm:$0xff]
        %v998 = vld [vmem:[#allocation2 + $0x68] sm:$0xff]
        %v999 = vld [vmem:[#allocation2 + $0x70] sm:$0xff]
        %v1000 = vld [vmem:[#allocation2 + $0x78] sm:$0xff]
        %v1001 = vld [vmem:[#allocation2 + $0x80] sm:$0xff]
        %v1002 = vld [vmem:[#allocation2 + $0x88] sm:$0xff]
        %v1003 = vld [vmem:[#allocation2 + $0x90] sm:$0xff]
        %v1004 = vld [vmem:[#allocation2 + $0x98] sm:$0xff]
        %v1005 = vld [vmem:[#allocation2 + $0xa0] sm:$0xff]
        %v1006 = vld [vmem:[#allocation2 + $0xa8] sm:$0xff]
        %v1007 = vld [vmem:[#allocation2 + $0xb0] sm:$0xff]
        %v1008 = vld [vmem:[#allocation2 + $0xb8] sm:$0xff]
        %v1009 = vld [vmem:[#allocation2 + $0xc0] sm:$0xff]
        %v1010 = vld [vmem:[#allocation2 + $0xc8] sm:$0xff]
        %v1011 = vld [vmem:[#allocation2 + $0xd0] sm:$0xff]
        %v1012 = vld [vmem:[#allocation2 + $0xd8] sm:$0xff]
        %v1013 = vld [vmem:[#allocation2 + $0xe0] sm:$0xff]
        %v1014 = vld [vmem:[#allocation2 + $0xe8] sm:$0xff]
        %v1015 = vld [vmem:[#allocation2 + $0xf0] sm:$0xff]
        %v1016 = vld [vmem:[#allocation2 + $0xf8] sm:$0xff]
        %v1017 = vpack.c.bf16 %v986, %v985
        %v1018 = vpack.c.bf16 %v988, %v987
        %v1019 = vpack.c.bf16 %v990, %v989
        %v1020 = vpack.c.bf16 %v992, %v991
        %v1021 = vpack.c.bf16 %v994, %v993
        %v1022 = vpack.c.bf16 %v996, %v995
        %v1023 = vpack.c.bf16 %v998, %v997
        %v1024 = vpack.c.bf16 %v1000, %v999
        %v1025 = vpack.c.bf16 %v1002, %v1001
        %v1026 = vpack.c.bf16 %v1004, %v1003
        %v1027 = vpack.c.bf16 %v1006, %v1005
        %v1028 = vpack.c.bf16 %v1008, %v1007
        %v1029 = vpack.c.bf16 %v1010, %v1009
        %v1030 = vpack.c.bf16 %v1012, %v1011
        %v1031 = vpack.c.bf16 %v1014, %v1013
        %v1032 = vpack.c.bf16 %v1016, %v1015
        %v1065 = vunpack.c.l.b16 %v953
        %v1066 = vunpack.c.h.b16 %v953
        %v1067 = vunpack.c.l.b16 %v954
        %v1068 = vunpack.c.h.b16 %v954
        %v1069 = vunpack.c.l.b16 %v955
        %v1070 = vunpack.c.h.b16 %v955
        %v1071 = vunpack.c.l.b16 %v956
        %v1072 = vunpack.c.h.b16 %v956
        %v1073 = vunpack.c.l.b16 %v957
        %v1074 = vunpack.c.h.b16 %v957
        %v1075 = vunpack.c.l.b16 %v958
        %v1076 = vunpack.c.h.b16 %v958
        %v1077 = vunpack.c.l.b16 %v959
        %v1078 = vunpack.c.h.b16 %v959
        %v1079 = vunpack.c.l.b16 %v960
        %v1080 = vunpack.c.h.b16 %v960
        %v1081 = vunpack.c.l.b16 %v961
        %v1082 = vunpack.c.h.b16 %v961
        %v1083 = vunpack.c.l.b16 %v962
        %v1084 = vunpack.c.h.b16 %v962
        %v1085 = vunpack.c.l.b16 %v963
        %v1086 = vunpack.c.h.b16 %v963
        %v1087 = vunpack.c.l.b16 %v964
        %v1088 = vunpack.c.h.b16 %v964
        %v1089 = vunpack.c.l.b16 %v965
        %v1090 = vunpack.c.h.b16 %v965
        %v1091 = vunpack.c.l.b16 %v966
        %v1092 = vunpack.c.h.b16 %v966
        %v1093 = vunpack.c.l.b16 %v967
        %v1094 = vunpack.c.h.b16 %v967
        %v1095 = vunpack.c.l.b16 %v968
        %v1096 = vunpack.c.h.b16 %v968
        %v1097 = vunpack.c.l.b16 %v969
        %v1098 = vunpack.c.h.b16 %v969
        %v1099 = vunpack.c.l.b16 %v970
        %v1100 = vunpack.c.h.b16 %v970
        %v1101 = vunpack.c.l.b16 %v971
        %v1102 = vunpack.c.h.b16 %v971
        %v1103 = vunpack.c.l.b16 %v972
        %v1104 = vunpack.c.h.b16 %v972
        %v1105 = vunpack.c.l.b16 %v973
        %v1106 = vunpack.c.h.b16 %v973
        %v1107 = vunpack.c.l.b16 %v974
        %v1108 = vunpack.c.h.b16 %v974
        %v1109 = vunpack.c.l.b16 %v975
        %v1110 = vunpack.c.h.b16 %v975
        %v1111 = vunpack.c.l.b16 %v976
        %v1112 = vunpack.c.h.b16 %v976
        %v1113 = vunpack.c.l.b16 %v977
        %v1114 = vunpack.c.h.b16 %v977
        %v1115 = vunpack.c.l.b16 %v978
        %v1116 = vunpack.c.h.b16 %v978
        %v1117 = vunpack.c.l.b16 %v979
        %v1118 = vunpack.c.h.b16 %v979
        %v1119 = vunpack.c.l.b16 %v980
        %v1120 = vunpack.c.h.b16 %v980
        %v1121 = vunpack.c.l.b16 %v981
        %v1122 = vunpack.c.h.b16 %v981
        %v1123 = vunpack.c.l.b16 %v982
        %v1124 = vunpack.c.h.b16 %v982
        %v1125 = vunpack.c.l.b16 %v983
        %v1126 = vunpack.c.h.b16 %v983
        %v1127 = vunpack.c.l.b16 %v984
        %v1128 = vunpack.c.h.b16 %v984
        %v1129 = vpack.c.b16 %v1067, %v1065
        %v1130 = vpack.c.b16 %v1068, %v1066
        %v1131 = vpack.c.b16 %v1071, %v1069
        %v1132 = vpack.c.b16 %v1072, %v1070
        %v1133 = vpack.c.b16 %v1075, %v1073
        %v1134 = vpack.c.b16 %v1076, %v1074
        %v1135 = vpack.c.b16 %v1079, %v1077
        %v1136 = vpack.c.b16 %v1080, %v1078
        %v1137 = vpack.c.b16 %v1083, %v1081
        %v1138 = vpack.c.b16 %v1084, %v1082
        %v1139 = vpack.c.b16 %v1087, %v1085
        %v1140 = vpack.c.b16 %v1088, %v1086
        %v1141 = vpack.c.b16 %v1091, %v1089
        %v1142 = vpack.c.b16 %v1092, %v1090
        %v1143 = vpack.c.b16 %v1095, %v1093
        %v1144 = vpack.c.b16 %v1096, %v1094
        %v1145 = vpack.c.b16 %v1099, %v1097
        %v1146 = vpack.c.b16 %v1100, %v1098
        %v1147 = vpack.c.b16 %v1103, %v1101
        %v1148 = vpack.c.b16 %v1104, %v1102
        %v1149 = vpack.c.b16 %v1107, %v1105
        %v1150 = vpack.c.b16 %v1108, %v1106
        %v1151 = vpack.c.b16 %v1111, %v1109
        %v1152 = vpack.c.b16 %v1112, %v1110
        %v1153 = vpack.c.b16 %v1115, %v1113
        %v1154 = vpack.c.b16 %v1116, %v1114
        %v1155 = vpack.c.b16 %v1119, %v1117
        %v1156 = vpack.c.b16 %v1120, %v1118
        %v1157 = vpack.c.b16 %v1123, %v1121
        %v1158 = vpack.c.b16 %v1124, %v1122
        %v1159 = vpack.c.b16 %v1127, %v1125
        %v1160 = vpack.c.b16 %v1128, %v1126
        %1193 = vmatprep.subr.bf16.mxu0 0
        %1194 = vmatpush1.bf16.msra.mxu0 %v1024
        %1195 = vmatprep.subr.bf16.mxu0 0
        %1196 = vmatpush1.bf16.msra.mxu0 %v1023
        %1197 = vmatprep.subr.bf16.mxu0 0
        %1198 = vmatpush1.bf16.msra.mxu0 %v1022
        %1199 = vmatprep.subr.bf16.mxu0 0
        %1200 = vmatpush1.bf16.msra.mxu0 %v1021
        %1201 = vmatprep.subr.bf16.mxu0 0
        %1202 = vmatpush1.bf16.msra.mxu0 %v1020
        %1203 = vmatprep.subr.bf16.mxu0 0
        %1204 = vmatpush1.bf16.msra.mxu0 %v1019
        %1205 = vmatprep.subr.bf16.mxu0 0
        %1206 = vmatpush1.bf16.msra.mxu0 %v1018
        %1207 = vmatprep.subr.bf16.mxu0 0
        %1208 = vmatpush1.bf16.msra.mxu0 %v1017
        %1209 = vmatprep.subr.bf16.mxu0 0
        %1210 = vmatpush2.bf16.msra.mxu0 %v1032
        %1211 = vmatprep.subr.bf16.mxu0 0
        %1212 = vmatpush2.bf16.msra.mxu0 %v1031
        %1213 = vmatprep.subr.bf16.mxu0 0
        %1214 = vmatpush2.bf16.msra.mxu0 %v1030
        %1215 = vmatprep.subr.bf16.mxu0 0
        %1216 = vmatpush2.bf16.msra.mxu0 %v1029
        %1217 = vmatprep.subr.bf16.mxu0 0
        %1218 = vmatpush2.bf16.msra.mxu0 %v1028
        %1219 = vmatprep.subr.bf16.mxu0 0
        %1220 = vmatpush2.bf16.msra.mxu0 %v1027
        %1221 = vmatprep.subr.bf16.mxu0 0
        %1222 = vmatpush2.bf16.msra.mxu0 %v1026
        %1223 = vmatprep.subr.bf16.mxu0 0
        %1224 = vmatpush2.bf16.msra.mxu0 %v1025
        %1225 = vmatprep.mubr.bf16.mxu0 %v1130
        %1226 = vmatmul.mubr.bf16.gmra.mxu0 %v1129
        %v1227 = vpop.f32.mrf.mxu0
        %v1228 = vadd.f32 0.0, %v1227
        %v1229 = vpop.f32.mrf.mxu0
        %v1230 = vpop.f32.mrf.mxu0
        %v1231 = vadd.f32 0.0, %v1230
        %v1232 = vpop.f32.mrf.mxu0
        %1233 = vmatprep.mubr.bf16.mxu0 %v1132
        %1234 = vmatmul.mubr.bf16.gmra.mxu0 %v1131
        %v1235 = vpop.f32.mrf.mxu0
        %v1236 = vadd.f32 0.0, %v1235
        %v1237 = vpop.f32.mrf.mxu0
        %v1238 = vpop.f32.mrf.mxu0
        %v1239 = vadd.f32 0.0, %v1238
        %v1240 = vpop.f32.mrf.mxu0
        %1241 = vmatprep.mubr.bf16.mxu0 %v1134
        %1242 = vmatmul.mubr.bf16.gmra.mxu0 %v1133
        %v1243 = vpop.f32.mrf.mxu0
        %v1244 = vadd.f32 0.0, %v1243
        %v1245 = vpop.f32.mrf.mxu0
        %v1246 = vpop.f32.mrf.mxu0
        %v1247 = vadd.f32 0.0, %v1246
        %v1248 = vpop.f32.mrf.mxu0
        %1249 = vmatprep.mubr.bf16.mxu0 %v1136
        %1250 = vmatmul.mubr.bf16.gmra.mxu0 %v1135
        %v1251 = vpop.f32.mrf.mxu0
        %v1252 = vadd.f32 0.0, %v1251
        %v1253 = vpop.f32.mrf.mxu0
        %v1254 = vpop.f32.mrf.mxu0
        %v1255 = vadd.f32 0.0, %v1254
        %v1256 = vpop.f32.mrf.mxu0
        %1257 = vmatprep.mubr.bf16.mxu0 %v1138
        %1258 = vmatmul.mubr.bf16.gmra.mxu0 %v1137
        %v1259 = vpop.f32.mrf.mxu0
        %v1260 = vadd.f32 0.0, %v1259
        %v1261 = vpop.f32.mrf.mxu0
        %v1262 = vpop.f32.mrf.mxu0
        %v1263 = vadd.f32 0.0, %v1262
        %v1264 = vpop.f32.mrf.mxu0
        %1265 = vmatprep.mubr.bf16.mxu0 %v1140
        %1266 = vmatmul.mubr.bf16.gmra.mxu0 %v1139
        %v1267 = vpop.f32.mrf.mxu0
        %v1268 = vadd.f32 0.0, %v1267
        %v1269 = vpop.f32.mrf.mxu0
        %v1270 = vpop.f32.mrf.mxu0
        %v1271 = vadd.f32 0.0, %v1270
        %v1272 = vpop.f32.mrf.mxu0
        %1273 = vmatprep.mubr.bf16.mxu0 %v1142
        %1274 = vmatmul.mubr.bf16.gmra.mxu0 %v1141
        %v1275 = vpop.f32.mrf.mxu0
        %v1276 = vadd.f32 0.0, %v1275
        %v1277 = vpop.f32.mrf.mxu0
        %v1278 = vpop.f32.mrf.mxu0
        %v1279 = vadd.f32 0.0, %v1278
        %v1280 = vpop.f32.mrf.mxu0
        %1281 = vmatprep.mubr.bf16.mxu0 %v1144
        %1282 = vmatmul.mubr.bf16.gmra.mxu0 %v1143
        %v1283 = vpop.f32.mrf.mxu0
        %v1284 = vadd.f32 0.0, %v1283
        %v1285 = vpop.f32.mrf.mxu0
        %v1286 = vpop.f32.mrf.mxu0
        %v1287 = vadd.f32 0.0, %v1286
        %v1288 = vpop.f32.mrf.mxu0
        %1289 = vmatprep.mubr.bf16.mxu0 %v1146
        %1290 = vmatmul.mubr.bf16.gmra.mxu0 %v1145
        %v1291 = vpop.f32.mrf.mxu0
        %v1292 = vadd.f32 0.0, %v1291
        %v1293 = vpop.f32.mrf.mxu0
        %v1294 = vpop.f32.mrf.mxu0
        %v1295 = vadd.f32 0.0, %v1294
        %v1296 = vpop.f32.mrf.mxu0
        %1297 = vmatprep.mubr.bf16.mxu0 %v1148
        %1298 = vmatmul.mubr.bf16.gmra.mxu0 %v1147
        %v1299 = vpop.f32.mrf.mxu0
        %v1300 = vadd.f32 0.0, %v1299
        %v1301 = vpop.f32.mrf.mxu0
        %v1302 = vpop.f32.mrf.mxu0
        %v1303 = vadd.f32 0.0, %v1302
        %v1304 = vpop.f32.mrf.mxu0
        %1305 = vmatprep.mubr.bf16.mxu0 %v1150
        %1306 = vmatmul.mubr.bf16.gmra.mxu0 %v1149
        %v1307 = vpop.f32.mrf.mxu0
        %v1308 = vadd.f32 0.0, %v1307
        %v1309 = vpop.f32.mrf.mxu0
        %v1310 = vpop.f32.mrf.mxu0
        %v1311 = vadd.f32 0.0, %v1310
        %v1312 = vpop.f32.mrf.mxu0
        %1313 = vmatprep.mubr.bf16.mxu0 %v1152
        %1314 = vmatmul.mubr.bf16.gmra.mxu0 %v1151
        %v1315 = vpop.f32.mrf.mxu0
        %v1316 = vadd.f32 0.0, %v1315
        %v1317 = vpop.f32.mrf.mxu0
        %v1318 = vpop.f32.mrf.mxu0
        %v1319 = vadd.f32 0.0, %v1318
        %v1320 = vpop.f32.mrf.mxu0
        %1321 = vmatprep.mubr.bf16.mxu0 %v1154
        %1322 = vmatmul.mubr.bf16.gmra.mxu0 %v1153
        %v1323 = vpop.f32.mrf.mxu0
        %v1324 = vadd.f32 0.0, %v1323
        %v1325 = vpop.f32.mrf.mxu0
        %v1326 = vpop.f32.mrf.mxu0
        %v1327 = vadd.f32 0.0, %v1326
        %v1328 = vpop.f32.mrf.mxu0
        %1329 = vmatprep.mubr.bf16.mxu0 %v1156
        %1330 = vmatmul.mubr.bf16.gmra.mxu0 %v1155
        %v1331 = vpop.f32.mrf.mxu0
        %v1332 = vadd.f32 0.0, %v1331
        %v1333 = vpop.f32.mrf.mxu0
        %v1334 = vpop.f32.mrf.mxu0
        %v1335 = vadd.f32 0.0, %v1334
        %v1336 = vpop.f32.mrf.mxu0
        %1337 = vmatprep.mubr.bf16.mxu0 %v1158
        %1338 = vmatmul.mubr.bf16.gmra.mxu0 %v1157
        %v1339 = vpop.f32.mrf.mxu0
        %v1340 = vadd.f32 0.0, %v1339
        %v1341 = vpop.f32.mrf.mxu0
        %v1342 = vpop.f32.mrf.mxu0
        %v1343 = vadd.f32 0.0, %v1342
        %v1344 = vpop.f32.mrf.mxu0
        %1345 = vmatprep.mubr.bf16.mxu0 %v1160
        %1346 = vmatmul.mubr.bf16.gmra.mxu0 %v1159
        %v1347 = vpop.f32.mrf.mxu0
        %v1348 = vadd.f32 0.0, %v1347
        %v1349 = vpop.f32.mrf.mxu0
        %v1350 = vpop.f32.mrf.mxu0
        %v1351 = vadd.f32 0.0, %v1350
        %v1352 = vpop.f32.mrf.mxu0
        %1353 = vdwg.mxu0
        %1354 = vst [vmem:[#allocation3] sm:$0xff] %v1228
        %1355 = vst [vmem:[#allocation3 + $0x10] sm:$0xff] %v1231
        %1356 = vst [vmem:[#allocation3 + $0x20] sm:$0xff] %v1236
        %1357 = vst [vmem:[#allocation3 + $0x30] sm:$0xff] %v1239
        %1358 = vst [vmem:[#allocation3 + $0x40] sm:$0xff] %v1244
        %1359 = vst [vmem:[#allocation3 + $0x50] sm:$0xff] %v1247
        %1360 = vst [vmem:[#allocation3 + $0x60] sm:$0xff] %v1252
        %1361 = vst [vmem:[#allocation3 + $0x70] sm:$0xff] %v1255
        %1362 = vst [vmem:[#allocation3 + $0x80] sm:$0xff] %v1260
        %1363 = vst [vmem:[#allocation3 + $0x90] sm:$0xff] %v1263
        %1364 = vst [vmem:[#allocation3 + $0xa0] sm:$0xff] %v1268
        %1365 = vst [vmem:[#allocation3 + $0xb0] sm:$0xff] %v1271
        %1366 = vst [vmem:[#allocation3 + $0xc0] sm:$0xff] %v1276
        %1367 = vst [vmem:[#allocation3 + $0xd0] sm:$0xff] %v1279
        %1368 = vst [vmem:[#allocation3 + $0xe0] sm:$0xff] %v1284
        %1369 = vst [vmem:[#allocation3 + $0xf0] sm:$0xff] %v1287
        %1370 = vst [vmem:[#allocation3 + $0x8] sm:$0xff] %v1292
        %1371 = vst [vmem:[#allocation3 + $0x18] sm:$0xff] %v1295
        %1372 = vst [vmem:[#allocation3 + $0x28] sm:$0xff] %v1300
        %1373 = vst [vmem:[#allocation3 + $0x38] sm:$0xff] %v1303
        %1374 = vst [vmem:[#allocation3 + $0x48] sm:$0xff] %v1308
        %1375 = vst [vmem:[#allocation3 + $0x58] sm:$0xff] %v1311
        %1376 = vst [vmem:[#allocation3 + $0x68] sm:$0xff] %v1316
        %1377 = vst [vmem:[#allocation3 + $0x78] sm:$0xff] %v1319
        %1378 = vst [vmem:[#allocation3 + $0x88] sm:$0xff] %v1324
        %1379 = vst [vmem:[#allocation3 + $0x98] sm:$0xff] %v1327
        %1380 = vst [vmem:[#allocation3 + $0xa8] sm:$0xff] %v1332
        %1381 = vst [vmem:[#allocation3 + $0xb8] sm:$0xff] %v1335
        %1382 = vst [vmem:[#allocation3 + $0xc8] sm:$0xff] %v1340
        %1383 = vst [vmem:[#allocation3 + $0xd8] sm:$0xff] %v1343
        %1384 = vst [vmem:[#allocation3 + $0xe8] sm:$0xff] %v1348
        %1385 = vst [vmem:[#allocation3 + $0xf8] sm:$0xff] %v1351
      $region68: #{five_layer_diffractive_nn.1} parent=59 // pred_fallthru
        _
      %v1386 = vld [vmem:[#allocation3] sm:$0xff]
      %v1387 = vld [vmem:[#allocation3 + $0x8] sm:$0xff]
      %v1388 = vld [vmem:[#allocation3 + $0x10] sm:$0xff]
      %v1389 = vld [vmem:[#allocation3 + $0x18] sm:$0xff]
      %v1390 = vld [vmem:[#allocation3 + $0x20] sm:$0xff]
      %v1391 = vld [vmem:[#allocation3 + $0x28] sm:$0xff]
      %v1392 = vld [vmem:[#allocation3 + $0x30] sm:$0xff]
      %v1393 = vld [vmem:[#allocation3 + $0x38] sm:$0xff]
      %v1394 = vld [vmem:[#allocation3 + $0x40] sm:$0xff]
      %v1395 = vld [vmem:[#allocation3 + $0x48] sm:$0xff]
      %v1396 = vld [vmem:[#allocation3 + $0x50] sm:$0xff]
      %v1397 = vld [vmem:[#allocation3 + $0x58] sm:$0xff]
      %v1398 = vld [vmem:[#allocation3 + $0x60] sm:$0xff]
      %v1399 = vld [vmem:[#allocation3 + $0x68] sm:$0xff]
      %v1400 = vld [vmem:[#allocation3 + $0x70] sm:$0xff]
      %v1401 = vld [vmem:[#allocation3 + $0x78] sm:$0xff]
      %v1402 = vld [vmem:[#allocation3 + $0x80] sm:$0xff]
      %v1403 = vld [vmem:[#allocation3 + $0x88] sm:$0xff]
      %v1404 = vld [vmem:[#allocation3 + $0x90] sm:$0xff]
      %v1405 = vld [vmem:[#allocation3 + $0x98] sm:$0xff]
      %v1406 = vld [vmem:[#allocation3 + $0xa0] sm:$0xff]
      %v1407 = vld [vmem:[#allocation3 + $0xa8] sm:$0xff]
      %v1408 = vld [vmem:[#allocation3 + $0xb0] sm:$0xff]
      %v1409 = vld [vmem:[#allocation3 + $0xb8] sm:$0xff]
      %v1410 = vld [vmem:[#allocation3 + $0xc0] sm:$0xff]
      %v1411 = vld [vmem:[#allocation3 + $0xc8] sm:$0xff]
      %v1412 = vld [vmem:[#allocation3 + $0xd0] sm:$0xff]
      %v1413 = vld [vmem:[#allocation3 + $0xd8] sm:$0xff]
      %v1414 = vld [vmem:[#allocation3 + $0xe0] sm:$0xff]
      %v1415 = vld [vmem:[#allocation3 + $0xe8] sm:$0xff]
      %v1416 = vld [vmem:[#allocation3 + $0xf0] sm:$0xff]
      %v1417 = vld [vmem:[#allocation3 + $0xf8] sm:$0xff]
      %v1418 = vpack.c.bf16 %v1388, %v1386
      %v1419 = vpack.c.bf16 %v1389, %v1387
      %v1420 = vpack.c.bf16 %v1392, %v1390
      %v1421 = vpack.c.bf16 %v1393, %v1391
      %v1422 = vpack.c.bf16 %v1396, %v1394
      %v1423 = vpack.c.bf16 %v1397, %v1395
      %v1424 = vpack.c.bf16 %v1400, %v1398
      %v1425 = vpack.c.bf16 %v1401, %v1399
      %v1426 = vpack.c.bf16 %v1404, %v1402
      %v1427 = vpack.c.bf16 %v1405, %v1403
      %v1428 = vpack.c.bf16 %v1408, %v1406
      %v1429 = vpack.c.bf16 %v1409, %v1407
      %v1430 = vpack.c.bf16 %v1412, %v1410
      %v1431 = vpack.c.bf16 %v1413, %v1411
      %v1432 = vpack.c.bf16 %v1416, %v1414
      %v1433 = vpack.c.bf16 %v1417, %v1415
      %v1434 = vld [vmem:[%s2] sm:$0xff]
      %v1435 = vld [vmem:[%s2 + $0x8] sm:$0xff]
      %v1436 = vld [vmem:[%s2 + $0x10] sm:$0xff]
      %v1437 = vld [vmem:[%s2 + $0x18] sm:$0xff]
      %v1438 = vld [vmem:[%s2 + $0x20] sm:$0xff]
      %v1439 = vld [vmem:[%s2 + $0x28] sm:$0xff]
      %v1440 = vld [vmem:[%s2 + $0x30] sm:$0xff]
      %v1441 = vld [vmem:[%s2 + $0x38] sm:$0xff]
      %v1442 = vld [vmem:[%s2 + $0x40] sm:$0xff]
      %v1443 = vld [vmem:[%s2 + $0x48] sm:$0xff]
      %v1444 = vld [vmem:[%s2 + $0x50] sm:$0xff]
      %v1445 = vld [vmem:[%s2 + $0x58] sm:$0xff]
      %v1446 = vld [vmem:[%s2 + $0x60] sm:$0xff]
      %v1447 = vld [vmem:[%s2 + $0x68] sm:$0xff]
      %v1448 = vld [vmem:[%s2 + $0x70] sm:$0xff]
      %v1449 = vld [vmem:[%s2 + $0x78] sm:$0xff]
      %v1450 = vld [vmem:[%s2 + $0x80] sm:$0xff]
      %v1451 = vld [vmem:[%s2 + $0x88] sm:$0xff]
      %v1452 = vld [vmem:[%s2 + $0x90] sm:$0xff]
      %v1453 = vld [vmem:[%s2 + $0x98] sm:$0xff]
      %v1454 = vld [vmem:[%s2 + $0xa0] sm:$0xff]
      %v1455 = vld [vmem:[%s2 + $0xa8] sm:$0xff]
      %v1456 = vld [vmem:[%s2 + $0xb0] sm:$0xff]
      %v1457 = vld [vmem:[%s2 + $0xb8] sm:$0xff]
      %v1458 = vld [vmem:[%s2 + $0xc0] sm:$0xff]
      %v1459 = vld [vmem:[%s2 + $0xc8] sm:$0xff]
      %v1460 = vld [vmem:[%s2 + $0xd0] sm:$0xff]
      %v1461 = vld [vmem:[%s2 + $0xd8] sm:$0xff]
      %v1462 = vld [vmem:[%s2 + $0xe0] sm:$0xff]
      %v1463 = vld [vmem:[%s2 + $0xe8] sm:$0xff]
      %v1464 = vld [vmem:[%s2 + $0xf0] sm:$0xff]
      %v1465 = vld [vmem:[%s2 + $0xf8] sm:$0xff]
      %v1498 = vunpack.c.l.b16 %v1434
      %v1499 = vunpack.c.h.b16 %v1434
      %v1500 = vunpack.c.l.b16 %v1435
      %v1501 = vunpack.c.h.b16 %v1435
      %v1502 = vunpack.c.l.b16 %v1436
      %v1503 = vunpack.c.h.b16 %v1436
      %v1504 = vunpack.c.l.b16 %v1437
      %v1505 = vunpack.c.h.b16 %v1437
      %v1506 = vunpack.c.l.b16 %v1438
      %v1507 = vunpack.c.h.b16 %v1438
      %v1508 = vunpack.c.l.b16 %v1439
      %v1509 = vunpack.c.h.b16 %v1439
      %v1510 = vunpack.c.l.b16 %v1440
      %v1511 = vunpack.c.h.b16 %v1440
      %v1512 = vunpack.c.l.b16 %v1441
      %v1513 = vunpack.c.h.b16 %v1441
      %v1514 = vunpack.c.l.b16 %v1442
      %v1515 = vunpack.c.h.b16 %v1442
      %v1516 = vunpack.c.l.b16 %v1443
      %v1517 = vunpack.c.h.b16 %v1443
      %v1518 = vunpack.c.l.b16 %v1444
      %v1519 = vunpack.c.h.b16 %v1444
      %v1520 = vunpack.c.l.b16 %v1445
      %v1521 = vunpack.c.h.b16 %v1445
      %v1522 = vunpack.c.l.b16 %v1446
      %v1523 = vunpack.c.h.b16 %v1446
      %v1524 = vunpack.c.l.b16 %v1447
      %v1525 = vunpack.c.h.b16 %v1447
      %v1526 = vunpack.c.l.b16 %v1448
      %v1527 = vunpack.c.h.b16 %v1448
      %v1528 = vunpack.c.l.b16 %v1449
      %v1529 = vunpack.c.h.b16 %v1449
      %v1530 = vunpack.c.l.b16 %v1450
      %v1531 = vunpack.c.h.b16 %v1450
      %v1532 = vunpack.c.l.b16 %v1451
      %v1533 = vunpack.c.h.b16 %v1451
      %v1534 = vunpack.c.l.b16 %v1452
      %v1535 = vunpack.c.h.b16 %v1452
      %v1536 = vunpack.c.l.b16 %v1453
      %v1537 = vunpack.c.h.b16 %v1453
      %v1538 = vunpack.c.l.b16 %v1454
      %v1539 = vunpack.c.h.b16 %v1454
      %v1540 = vunpack.c.l.b16 %v1455
      %v1541 = vunpack.c.h.b16 %v1455
      %v1542 = vunpack.c.l.b16 %v1456
      %v1543 = vunpack.c.h.b16 %v1456
      %v1544 = vunpack.c.l.b16 %v1457
      %v1545 = vunpack.c.h.b16 %v1457
      %v1546 = vunpack.c.l.b16 %v1458
      %v1547 = vunpack.c.h.b16 %v1458
      %v1548 = vunpack.c.l.b16 %v1459
      %v1549 = vunpack.c.h.b16 %v1459
      %v1550 = vunpack.c.l.b16 %v1460
      %v1551 = vunpack.c.h.b16 %v1460
      %v1552 = vunpack.c.l.b16 %v1461
      %v1553 = vunpack.c.h.b16 %v1461
      %v1554 = vunpack.c.l.b16 %v1462
      %v1555 = vunpack.c.h.b16 %v1462
      %v1556 = vunpack.c.l.b16 %v1463
      %v1557 = vunpack.c.h.b16 %v1463
      %v1558 = vunpack.c.l.b16 %v1464
      %v1559 = vunpack.c.h.b16 %v1464
      %v1560 = vunpack.c.l.b16 %v1465
      %v1561 = vunpack.c.h.b16 %v1465
      %v1562 = vpack.c.b16 %v1500, %v1498
      %v1563 = vpack.c.b16 %v1501, %v1499
      %v1564 = vpack.c.b16 %v1504, %v1502
      %v1565 = vpack.c.b16 %v1505, %v1503
      %v1566 = vpack.c.b16 %v1508, %v1506
      %v1567 = vpack.c.b16 %v1509, %v1507
      %v1568 = vpack.c.b16 %v1512, %v1510
      %v1569 = vpack.c.b16 %v1513, %v1511
      %v1570 = vpack.c.b16 %v1516, %v1514
      %v1571 = vpack.c.b16 %v1517, %v1515
      %v1572 = vpack.c.b16 %v1520, %v1518
      %v1573 = vpack.c.b16 %v1521, %v1519
      %v1574 = vpack.c.b16 %v1524, %v1522
      %v1575 = vpack.c.b16 %v1525, %v1523
      %v1576 = vpack.c.b16 %v1528, %v1526
      %v1577 = vpack.c.b16 %v1529, %v1527
      %v1578 = vpack.c.b16 %v1532, %v1530
      %v1579 = vpack.c.b16 %v1533, %v1531
      %v1580 = vpack.c.b16 %v1536, %v1534
      %v1581 = vpack.c.b16 %v1537, %v1535
      %v1582 = vpack.c.b16 %v1540, %v1538
      %v1583 = vpack.c.b16 %v1541, %v1539
      %v1584 = vpack.c.b16 %v1544, %v1542
      %v1585 = vpack.c.b16 %v1545, %v1543
      %v1586 = vpack.c.b16 %v1548, %v1546
      %v1587 = vpack.c.b16 %v1549, %v1547
      %v1588 = vpack.c.b16 %v1552, %v1550
      %v1589 = vpack.c.b16 %v1553, %v1551
      %v1590 = vpack.c.b16 %v1556, %v1554
      %v1591 = vpack.c.b16 %v1557, %v1555
      %v1592 = vpack.c.b16 %v1560, %v1558
      %v1593 = vpack.c.b16 %v1561, %v1559
      %1626 = vmatprep.subr.bf16.mxu0 %v1577
      %1627 = vmatpush1.bf16.msra.mxu0 %v1576
      %1628 = vmatprep.subr.bf16.mxu0 %v1575
      %1629 = vmatpush1.bf16.msra.mxu0 %v1574
      %1630 = vmatprep.subr.bf16.mxu0 %v1573
      %1631 = vmatpush1.bf16.msra.mxu0 %v1572
      %1632 = vmatprep.subr.bf16.mxu0 %v1571
      %1633 = vmatpush1.bf16.msra.mxu0 %v1570
      %1634 = vmatprep.subr.bf16.mxu0 %v1569
      %1635 = vmatpush1.bf16.msra.mxu0 %v1568
      %1636 = vmatprep.subr.bf16.mxu0 %v1567
      %1637 = vmatpush1.bf16.msra.mxu0 %v1566
      %1638 = vmatprep.subr.bf16.mxu0 %v1565
      %1639 = vmatpush1.bf16.msra.mxu0 %v1564
      %1640 = vmatprep.subr.bf16.mxu0 %v1563
      %1641 = vmatpush1.bf16.msra.mxu0 %v1562
      %1642 = vmatprep.subr.bf16.mxu0 %v1593
      %1643 = vmatpush2.bf16.msra.mxu0 %v1592
      %1644 = vmatprep.subr.bf16.mxu0 %v1591
      %1645 = vmatpush2.bf16.msra.mxu0 %v1590
      %1646 = vmatprep.subr.bf16.mxu0 %v1589
      %1647 = vmatpush2.bf16.msra.mxu0 %v1588
      %1648 = vmatprep.subr.bf16.mxu0 %v1587
      %1649 = vmatpush2.bf16.msra.mxu0 %v1586
      %1650 = vmatprep.subr.bf16.mxu0 %v1585
      %1651 = vmatpush2.bf16.msra.mxu0 %v1584
      %1652 = vmatprep.subr.bf16.mxu0 %v1583
      %1653 = vmatpush2.bf16.msra.mxu0 %v1582
      %1654 = vmatprep.subr.bf16.mxu0 %v1581
      %1655 = vmatpush2.bf16.msra.mxu0 %v1580
      %1656 = vmatprep.subr.bf16.mxu0 %v1579
      %1657 = vmatpush2.bf16.msra.mxu0 %v1578
      %1658 = vmatprep.mubr.bf16.mxu0 %v1419
      %1659 = vmatmul.mubr.bf16.gmra.mxu0 %v1418
      %v1660 = vpop.f32.mrf.mxu0
      %v1661 = vadd.f32 0.0, %v1660
      %v1662 = vpop.f32.mrf.mxu0
      %v1663 = vadd.f32 0.0, %v1662
      %v1664 = vpop.f32.mrf.mxu0
      %v1665 = vadd.f32 0.0, %v1664
      %v1666 = vpop.f32.mrf.mxu0
      %v1667 = vadd.f32 0.0, %v1666
      %1668 = vmatprep.mubr.bf16.mxu0 %v1421
      %1669 = vmatmul.mubr.bf16.gmra.mxu0 %v1420
      %v1670 = vpop.f32.mrf.mxu0
      %v1671 = vadd.f32 0.0, %v1670
      %v1672 = vpop.f32.mrf.mxu0
      %v1673 = vadd.f32 0.0, %v1672
      %v1674 = vpop.f32.mrf.mxu0
      %v1675 = vadd.f32 0.0, %v1674
      %v1676 = vpop.f32.mrf.mxu0
      %v1677 = vadd.f32 0.0, %v1676
      %1678 = vmatprep.mubr.bf16.mxu0 %v1423
      %1679 = vmatmul.mubr.bf16.gmra.mxu0 %v1422
      %v1680 = vpop.f32.mrf.mxu0
      %v1681 = vadd.f32 0.0, %v1680
      %v1682 = vpop.f32.mrf.mxu0
      %v1683 = vadd.f32 0.0, %v1682
      %v1684 = vpop.f32.mrf.mxu0
      %v1685 = vadd.f32 0.0, %v1684
      %v1686 = vpop.f32.mrf.mxu0
      %v1687 = vadd.f32 0.0, %v1686
      %1688 = vmatprep.mubr.bf16.mxu0 %v1425
      %1689 = vmatmul.mubr.bf16.gmra.mxu0 %v1424
      %v1690 = vpop.f32.mrf.mxu0
      %v1691 = vadd.f32 0.0, %v1690
      %v1692 = vpop.f32.mrf.mxu0
      %v1693 = vadd.f32 0.0, %v1692
      %v1694 = vpop.f32.mrf.mxu0
      %v1695 = vadd.f32 0.0, %v1694
      %v1696 = vpop.f32.mrf.mxu0
      %v1697 = vadd.f32 0.0, %v1696
      %1698 = vmatprep.mubr.bf16.mxu0 %v1427
      %1699 = vmatmul.mubr.bf16.gmra.mxu0 %v1426
      %v1700 = vpop.f32.mrf.mxu0
      %v1701 = vadd.f32 0.0, %v1700
      %v1702 = vpop.f32.mrf.mxu0
      %v1703 = vadd.f32 0.0, %v1702
      %v1704 = vpop.f32.mrf.mxu0
      %v1705 = vadd.f32 0.0, %v1704
      %v1706 = vpop.f32.mrf.mxu0
      %v1707 = vadd.f32 0.0, %v1706
      %1708 = vmatprep.mubr.bf16.mxu0 %v1429
      %1709 = vmatmul.mubr.bf16.gmra.mxu0 %v1428
      %v1710 = vpop.f32.mrf.mxu0
      %v1711 = vadd.f32 0.0, %v1710
      %v1712 = vpop.f32.mrf.mxu0
      %v1713 = vadd.f32 0.0, %v1712
      %v1714 = vpop.f32.mrf.mxu0
      %v1715 = vadd.f32 0.0, %v1714
      %v1716 = vpop.f32.mrf.mxu0
      %v1717 = vadd.f32 0.0, %v1716
      %1718 = vmatprep.mubr.bf16.mxu0 %v1431
      %1719 = vmatmul.mubr.bf16.gmra.mxu0 %v1430
      %v1720 = vpop.f32.mrf.mxu0
      %v1721 = vadd.f32 0.0, %v1720
      %v1722 = vpop.f32.mrf.mxu0
      %v1723 = vadd.f32 0.0, %v1722
      %v1724 = vpop.f32.mrf.mxu0
      %v1725 = vadd.f32 0.0, %v1724
      %v1726 = vpop.f32.mrf.mxu0
      %v1727 = vadd.f32 0.0, %v1726
      %1728 = vmatprep.mubr.bf16.mxu0 %v1433
      %1729 = vmatmul.mubr.bf16.gmra.mxu0 %v1432
      %v1730 = vpop.f32.mrf.mxu0
      %v1731 = vadd.f32 0.0, %v1730
      %v1732 = vpop.f32.mrf.mxu0
      %v1733 = vadd.f32 0.0, %v1732
      %v1734 = vpop.f32.mrf.mxu0
      %v1735 = vadd.f32 0.0, %v1734
      %v1736 = vpop.f32.mrf.mxu0
      %v1737 = vadd.f32 0.0, %v1736
      %1738 = vdwg.mxu0
      %v1739 = vld [vmem:[%s6] sm:$0xff]
      %v1740 = vld [vmem:[%s6 + $0x8] sm:$0xff]
      %v1741 = vld [vmem:[%s6 + $0x10] sm:$0xff]
      %v1742 = vld [vmem:[%s6 + $0x18] sm:$0xff]
      %v1743 = vld [vmem:[%s6 + $0x20] sm:$0xff]
      %v1744 = vld [vmem:[%s6 + $0x28] sm:$0xff]
      %v1745 = vld [vmem:[%s6 + $0x30] sm:$0xff]
      %v1746 = vld [vmem:[%s6 + $0x38] sm:$0xff]
      %v1747 = vld [vmem:[%s6 + $0x40] sm:$0xff]
      %v1748 = vld [vmem:[%s6 + $0x48] sm:$0xff]
      %v1749 = vld [vmem:[%s6 + $0x50] sm:$0xff]
      %v1750 = vld [vmem:[%s6 + $0x58] sm:$0xff]
      %v1751 = vld [vmem:[%s6 + $0x60] sm:$0xff]
      %v1752 = vld [vmem:[%s6 + $0x68] sm:$0xff]
      %v1753 = vld [vmem:[%s6 + $0x70] sm:$0xff]
      %v1754 = vld [vmem:[%s6 + $0x78] sm:$0xff]
      %v1755 = vld [vmem:[%s7] sm:$0xff]
      %v1756 = vld [vmem:[%s7 + $0x8] sm:$0xff]
      %v1757 = vld [vmem:[%s7 + $0x10] sm:$0xff]
      %v1758 = vld [vmem:[%s7 + $0x18] sm:$0xff]
      %v1759 = vld [vmem:[%s7 + $0x20] sm:$0xff]
      %v1760 = vld [vmem:[%s7 + $0x28] sm:$0xff]
      %v1761 = vld [vmem:[%s7 + $0x30] sm:$0xff]
      %v1762 = vld [vmem:[%s7 + $0x38] sm:$0xff]
      %v1763 = vld [vmem:[%s7 + $0x40] sm:$0xff]
      %v1764 = vld [vmem:[%s7 + $0x48] sm:$0xff]
      %v1765 = vld [vmem:[%s7 + $0x50] sm:$0xff]
      %v1766 = vld [vmem:[%s7 + $0x58] sm:$0xff]
      %v1767 = vld [vmem:[%s7 + $0x60] sm:$0xff]
      %v1768 = vld [vmem:[%s7 + $0x68] sm:$0xff]
      %v1769 = vld [vmem:[%s7 + $0x70] sm:$0xff]
      %v1770 = vld [vmem:[%s7 + $0x78] sm:$0xff]
      %v1771 = vmul.f32 %v1661, %v1739
      %v1772 = vmul.f32 %v1665, %v1740
      %v1773 = vmul.f32 %v1671, %v1741
      %v1774 = vmul.f32 %v1675, %v1742
      %v1775 = vmul.f32 %v1681, %v1743
      %v1776 = vmul.f32 %v1685, %v1744
      %v1777 = vmul.f32 %v1691, %v1745
      %v1778 = vmul.f32 %v1695, %v1746
      %v1779 = vmul.f32 %v1701, %v1747
      %v1780 = vmul.f32 %v1705, %v1748
      %v1781 = vmul.f32 %v1711, %v1749
      %v1782 = vmul.f32 %v1715, %v1750
      %v1783 = vmul.f32 %v1721, %v1751
      %v1784 = vmul.f32 %v1725, %v1752
      %v1785 = vmul.f32 %v1731, %v1753
      %v1786 = vmul.f32 %v1735, %v1754
      %v1787 = vmul.f32 %v1663, %v1755
      %v1788 = vmul.f32 %v1667, %v1756
      %v1789 = vmul.f32 %v1673, %v1757
      %v1790 = vmul.f32 %v1677, %v1758
      %v1791 = vmul.f32 %v1683, %v1759
      %v1792 = vmul.f32 %v1687, %v1760
      %v1793 = vmul.f32 %v1693, %v1761
      %v1794 = vmul.f32 %v1697, %v1762
      %v1795 = vmul.f32 %v1703, %v1763
      %v1796 = vmul.f32 %v1707, %v1764
      %v1797 = vmul.f32 %v1713, %v1765
      %v1798 = vmul.f32 %v1717, %v1766
      %v1799 = vmul.f32 %v1723, %v1767
      %v1800 = vmul.f32 %v1727, %v1768
      %v1801 = vmul.f32 %v1733, %v1769
      %v1802 = vmul.f32 %v1737, %v1770
      %v1803 = vsub.f32 %v1771, %v1787
      %v1804 = vsub.f32 %v1772, %v1788
      %v1805 = vsub.f32 %v1773, %v1789
      %v1806 = vsub.f32 %v1774, %v1790
      %v1807 = vsub.f32 %v1775, %v1791
      %v1808 = vsub.f32 %v1776, %v1792
      %v1809 = vsub.f32 %v1777, %v1793
      %v1810 = vsub.f32 %v1778, %v1794
      %v1811 = vsub.f32 %v1779, %v1795
      %v1812 = vsub.f32 %v1780, %v1796
      %v1813 = vsub.f32 %v1781, %v1797
      %v1814 = vsub.f32 %v1782, %v1798
      %v1815 = vsub.f32 %v1783, %v1799
      %v1816 = vsub.f32 %v1784, %v1800
      %v1817 = vsub.f32 %v1785, %v1801
      %v1818 = vsub.f32 %v1786, %v1802
      %1819 = vst [vmem:[#allocation2] sm:$0xff] %v1803
      %1820 = vst [vmem:[#allocation2 + $0x8] sm:$0xff] %v1804
      %1821 = vst [vmem:[#allocation2 + $0x10] sm:$0xff] %v1805
      %1822 = vst [vmem:[#allocation2 + $0x18] sm:$0xff] %v1806
      %1823 = vst [vmem:[#allocation2 + $0x20] sm:$0xff] %v1807
      %1824 = vst [vmem:[#allocation2 + $0x28] sm:$0xff] %v1808
      %1825 = vst [vmem:[#allocation2 + $0x30] sm:$0xff] %v1809
      %1826 = vst [vmem:[#allocation2 + $0x38] sm:$0xff] %v1810
      %1827 = vst [vmem:[#allocation2 + $0x40] sm:$0xff] %v1811
      %1828 = vst [vmem:[#allocation2 + $0x48] sm:$0xff] %v1812
      %1829 = vst [vmem:[#allocation2 + $0x50] sm:$0xff] %v1813
      %1830 = vst [vmem:[#allocation2 + $0x58] sm:$0xff] %v1814
      %1831 = vst [vmem:[#allocation2 + $0x60] sm:$0xff] %v1815
      %1832 = vst [vmem:[#allocation2 + $0x68] sm:$0xff] %v1816
      %1833 = vst [vmem:[#allocation2 + $0x70] sm:$0xff] %v1817
      %1834 = vst [vmem:[#allocation2 + $0x78] sm:$0xff] %v1818
      %v1835 = vmul.f32 %v1661, %v1755
      %v1836 = vmul.f32 %v1665, %v1756
      %v1837 = vmul.f32 %v1671, %v1757
      %v1838 = vmul.f32 %v1675, %v1758
      %v1839 = vmul.f32 %v1681, %v1759
      %v1840 = vmul.f32 %v1685, %v1760
      %v1841 = vmul.f32 %v1691, %v1761
      %v1842 = vmul.f32 %v1695, %v1762
      %v1843 = vmul.f32 %v1701, %v1763
      %v1844 = vmul.f32 %v1705, %v1764
      %v1845 = vmul.f32 %v1711, %v1765
      %v1846 = vmul.f32 %v1715, %v1766
      %v1847 = vmul.f32 %v1721, %v1767
      %v1848 = vmul.f32 %v1725, %v1768
      %v1849 = vmul.f32 %v1731, %v1769
      %v1850 = vmul.f32 %v1735, %v1770
      %v1851 = vmul.f32 %v1663, %v1739
      %v1852 = vmul.f32 %v1667, %v1740
      %v1853 = vmul.f32 %v1673, %v1741
      %v1854 = vmul.f32 %v1677, %v1742
      %v1855 = vmul.f32 %v1683, %v1743
      %v1856 = vmul.f32 %v1687, %v1744
      %v1857 = vmul.f32 %v1693, %v1745
      %v1858 = vmul.f32 %v1697, %v1746
      %v1859 = vmul.f32 %v1703, %v1747
      %v1860 = vmul.f32 %v1707, %v1748
      %v1861 = vmul.f32 %v1713, %v1749
      %v1862 = vmul.f32 %v1717, %v1750
      %v1863 = vmul.f32 %v1723, %v1751
      %v1864 = vmul.f32 %v1727, %v1752
      %v1865 = vmul.f32 %v1733, %v1753
      %v1866 = vmul.f32 %v1737, %v1754
      %v1867 = vadd.f32 %v1835, %v1851
      %v1868 = vadd.f32 %v1836, %v1852
      %v1869 = vadd.f32 %v1837, %v1853
      %v1870 = vadd.f32 %v1838, %v1854
      %v1871 = vadd.f32 %v1839, %v1855
      %v1872 = vadd.f32 %v1840, %v1856
      %v1873 = vadd.f32 %v1841, %v1857
      %v1874 = vadd.f32 %v1842, %v1858
      %v1875 = vadd.f32 %v1843, %v1859
      %v1876 = vadd.f32 %v1844, %v1860
      %v1877 = vadd.f32 %v1845, %v1861
      %v1878 = vadd.f32 %v1846, %v1862
      %v1879 = vadd.f32 %v1847, %v1863
      %v1880 = vadd.f32 %v1848, %v1864
      %v1881 = vadd.f32 %v1849, %v1865
      %v1882 = vadd.f32 %v1850, %v1866
      %1883 = vst [vmem:[#allocation2 + $0x80] sm:$0xff] %v1867
      %1884 = vst [vmem:[#allocation2 + $0x88] sm:$0xff] %v1868
      %1885 = vst [vmem:[#allocation2 + $0x90] sm:$0xff] %v1869
      %1886 = vst [vmem:[#allocation2 + $0x98] sm:$0xff] %v1870
      %1887 = vst [vmem:[#allocation2 + $0xa0] sm:$0xff] %v1871
      %1888 = vst [vmem:[#allocation2 + $0xa8] sm:$0xff] %v1872
      %1889 = vst [vmem:[#allocation2 + $0xb0] sm:$0xff] %v1873
      %1890 = vst [vmem:[#allocation2 + $0xb8] sm:$0xff] %v1874
      %1891 = vst [vmem:[#allocation2 + $0xc0] sm:$0xff] %v1875
      %1892 = vst [vmem:[#allocation2 + $0xc8] sm:$0xff] %v1876
      %1893 = vst [vmem:[#allocation2 + $0xd0] sm:$0xff] %v1877
      %1894 = vst [vmem:[#allocation2 + $0xd8] sm:$0xff] %v1878
      %1895 = vst [vmem:[#allocation2 + $0xe0] sm:$0xff] %v1879
      %1896 = vst [vmem:[#allocation2 + $0xe8] sm:$0xff] %v1880
      %1897 = vst [vmem:[#allocation2 + $0xf0] sm:$0xff] %v1881
      %1898 = vst [vmem:[#allocation2 + $0xf8] sm:$0xff] %v1882
      %v1899 = vld [vmem:[%s3] sm:$0xff]
      %v1900 = vld [vmem:[%s3 + $0x8] sm:$0xff]
      %v1901 = vld [vmem:[%s3 + $0x10] sm:$0xff]
      %v1902 = vld [vmem:[%s3 + $0x18] sm:$0xff]
      %v1903 = vld [vmem:[%s3 + $0x20] sm:$0xff]
      %v1904 = vld [vmem:[%s3 + $0x28] sm:$0xff]
      %v1905 = vld [vmem:[%s3 + $0x30] sm:$0xff]
      %v1906 = vld [vmem:[%s3 + $0x38] sm:$0xff]
      %v1907 = vld [vmem:[%s3 + $0x40] sm:$0xff]
      %v1908 = vld [vmem:[%s3 + $0x48] sm:$0xff]
      %v1909 = vld [vmem:[%s3 + $0x50] sm:$0xff]
      %v1910 = vld [vmem:[%s3 + $0x58] sm:$0xff]
      %v1911 = vld [vmem:[%s3 + $0x60] sm:$0xff]
      %v1912 = vld [vmem:[%s3 + $0x68] sm:$0xff]
      %v1913 = vld [vmem:[%s3 + $0x70] sm:$0xff]
      %v1914 = vld [vmem:[%s3 + $0x78] sm:$0xff]
      %v1915 = vld [vmem:[%s3 + $0x80] sm:$0xff]
      %v1916 = vld [vmem:[%s3 + $0x88] sm:$0xff]
      %v1917 = vld [vmem:[%s3 + $0x90] sm:$0xff]
      %v1918 = vld [vmem:[%s3 + $0x98] sm:$0xff]
      %v1919 = vld [vmem:[%s3 + $0xa0] sm:$0xff]
      %v1920 = vld [vmem:[%s3 + $0xa8] sm:$0xff]
      %v1921 = vld [vmem:[%s3 + $0xb0] sm:$0xff]
      %v1922 = vld [vmem:[%s3 + $0xb8] sm:$0xff]
      %v1923 = vld [vmem:[%s3 + $0xc0] sm:$0xff]
      %v1924 = vld [vmem:[%s3 + $0xc8] sm:$0xff]
      %v1925 = vld [vmem:[%s3 + $0xd0] sm:$0xff]
      %v1926 = vld [vmem:[%s3 + $0xd8] sm:$0xff]
      %v1927 = vld [vmem:[%s3 + $0xe0] sm:$0xff]
      %v1928 = vld [vmem:[%s3 + $0xe8] sm:$0xff]
      %v1929 = vld [vmem:[%s3 + $0xf0] sm:$0xff]
      %v1930 = vld [vmem:[%s3 + $0xf8] sm:$0xff]
      %v1931 = vld [vmem:[#allocation2] sm:$0xff]
      %v1932 = vld [vmem:[#allocation2 + $0x8] sm:$0xff]
      %v1933 = vld [vmem:[#allocation2 + $0x10] sm:$0xff]
      %v1934 = vld [vmem:[#allocation2 + $0x18] sm:$0xff]
      %v1935 = vld [vmem:[#allocation2 + $0x20] sm:$0xff]
      %v1936 = vld [vmem:[#allocation2 + $0x28] sm:$0xff]
      %v1937 = vld [vmem:[#allocation2 + $0x30] sm:$0xff]
      %v1938 = vld [vmem:[#allocation2 + $0x38] sm:$0xff]
      %v1939 = vld [vmem:[#allocation2 + $0x40] sm:$0xff]
      %v1940 = vld [vmem:[#allocation2 + $0x48] sm:$0xff]
      %v1941 = vld [vmem:[#allocation2 + $0x50] sm:$0xff]
      %v1942 = vld [vmem:[#allocation2 + $0x58] sm:$0xff]
      %v1943 = vld [vmem:[#allocation2 + $0x60] sm:$0xff]
      %v1944 = vld [vmem:[#allocation2 + $0x68] sm:$0xff]
      %v1945 = vld [vmem:[#allocation2 + $0x70] sm:$0xff]
      %v1946 = vld [vmem:[#allocation2 + $0x78] sm:$0xff]
      %v1947 = vld [vmem:[#allocation2 + $0x80] sm:$0xff]
      %v1948 = vld [vmem:[#allocation2 + $0x88] sm:$0xff]
      %v1949 = vld [vmem:[#allocation2 + $0x90] sm:$0xff]
      %v1950 = vld [vmem:[#allocation2 + $0x98] sm:$0xff]
      %v1951 = vld [vmem:[#allocation2 + $0xa0] sm:$0xff]
      %v1952 = vld [vmem:[#allocation2 + $0xa8] sm:$0xff]
      %v1953 = vld [vmem:[#allocation2 + $0xb0] sm:$0xff]
      %v1954 = vld [vmem:[#allocation2 + $0xb8] sm:$0xff]
      %v1955 = vld [vmem:[#allocation2 + $0xc0] sm:$0xff]
      %v1956 = vld [vmem:[#allocation2 + $0xc8] sm:$0xff]
      %v1957 = vld [vmem:[#allocation2 + $0xd0] sm:$0xff]
      %v1958 = vld [vmem:[#allocation2 + $0xd8] sm:$0xff]
      %v1959 = vld [vmem:[#allocation2 + $0xe0] sm:$0xff]
      %v1960 = vld [vmem:[#allocation2 + $0xe8] sm:$0xff]
      %v1961 = vld [vmem:[#allocation2 + $0xf0] sm:$0xff]
      %v1962 = vld [vmem:[#allocation2 + $0xf8] sm:$0xff]
      %v1963 = vpack.c.bf16 %v1932, %v1931
      %v1964 = vpack.c.bf16 %v1934, %v1933
      %v1965 = vpack.c.bf16 %v1936, %v1935
      %v1966 = vpack.c.bf16 %v1938, %v1937
      %v1967 = vpack.c.bf16 %v1940, %v1939
      %v1968 = vpack.c.bf16 %v1942, %v1941
      %v1969 = vpack.c.bf16 %v1944, %v1943
      %v1970 = vpack.c.bf16 %v1946, %v1945
      %v1971 = vpack.c.bf16 %v1948, %v1947
      %v1972 = vpack.c.bf16 %v1950, %v1949
      %v1973 = vpack.c.bf16 %v1952, %v1951
      %v1974 = vpack.c.bf16 %v1954, %v1953
      %v1975 = vpack.c.bf16 %v1956, %v1955
      %v1976 = vpack.c.bf16 %v1958, %v1957
      %v1977 = vpack.c.bf16 %v1960, %v1959
      %v1978 = vpack.c.bf16 %v1962, %v1961
      %v2011 = vunpack.c.l.b16 %v1899
      %v2012 = vunpack.c.h.b16 %v1899
      %v2013 = vunpack.c.l.b16 %v1900
      %v2014 = vunpack.c.h.b16 %v1900
      %v2015 = vunpack.c.l.b16 %v1901
      %v2016 = vunpack.c.h.b16 %v1901
      %v2017 = vunpack.c.l.b16 %v1902
      %v2018 = vunpack.c.h.b16 %v1902
      %v2019 = vunpack.c.l.b16 %v1903
      %v2020 = vunpack.c.h.b16 %v1903
      %v2021 = vunpack.c.l.b16 %v1904
      %v2022 = vunpack.c.h.b16 %v1904
      %v2023 = vunpack.c.l.b16 %v1905
      %v2024 = vunpack.c.h.b16 %v1905
      %v2025 = vunpack.c.l.b16 %v1906
      %v2026 = vunpack.c.h.b16 %v1906
      %v2027 = vunpack.c.l.b16 %v1907
      %v2028 = vunpack.c.h.b16 %v1907
      %v2029 = vunpack.c.l.b16 %v1908
      %v2030 = vunpack.c.h.b16 %v1908
      %v2031 = vunpack.c.l.b16 %v1909
      %v2032 = vunpack.c.h.b16 %v1909
      %v2033 = vunpack.c.l.b16 %v1910
      %v2034 = vunpack.c.h.b16 %v1910
      %v2035 = vunpack.c.l.b16 %v1911
      %v2036 = vunpack.c.h.b16 %v1911
      %v2037 = vunpack.c.l.b16 %v1912
      %v2038 = vunpack.c.h.b16 %v1912
      %v2039 = vunpack.c.l.b16 %v1913
      %v2040 = vunpack.c.h.b16 %v1913
      %v2041 = vunpack.c.l.b16 %v1914
      %v2042 = vunpack.c.h.b16 %v1914
      %v2043 = vunpack.c.l.b16 %v1915
      %v2044 = vunpack.c.h.b16 %v1915
      %v2045 = vunpack.c.l.b16 %v1916
      %v2046 = vunpack.c.h.b16 %v1916
      %v2047 = vunpack.c.l.b16 %v1917
      %v2048 = vunpack.c.h.b16 %v1917
      %v2049 = vunpack.c.l.b16 %v1918
      %v2050 = vunpack.c.h.b16 %v1918
      %v2051 = vunpack.c.l.b16 %v1919
      %v2052 = vunpack.c.h.b16 %v1919
      %v2053 = vunpack.c.l.b16 %v1920
      %v2054 = vunpack.c.h.b16 %v1920
      %v2055 = vunpack.c.l.b16 %v1921
      %v2056 = vunpack.c.h.b16 %v1921
      %v2057 = vunpack.c.l.b16 %v1922
      %v2058 = vunpack.c.h.b16 %v1922
      %v2059 = vunpack.c.l.b16 %v1923
      %v2060 = vunpack.c.h.b16 %v1923
      %v2061 = vunpack.c.l.b16 %v1924
      %v2062 = vunpack.c.h.b16 %v1924
      %v2063 = vunpack.c.l.b16 %v1925
      %v2064 = vunpack.c.h.b16 %v1925
      %v2065 = vunpack.c.l.b16 %v1926
      %v2066 = vunpack.c.h.b16 %v1926
      %v2067 = vunpack.c.l.b16 %v1927
      %v2068 = vunpack.c.h.b16 %v1927
      %v2069 = vunpack.c.l.b16 %v1928
      %v2070 = vunpack.c.h.b16 %v1928
      %v2071 = vunpack.c.l.b16 %v1929
      %v2072 = vunpack.c.h.b16 %v1929
      %v2073 = vunpack.c.l.b16 %v1930
      %v2074 = vunpack.c.h.b16 %v1930
      %v2075 = vpack.c.b16 %v2013, %v2011
      %v2076 = vpack.c.b16 %v2014, %v2012
      %v2077 = vpack.c.b16 %v2017, %v2015
      %v2078 = vpack.c.b16 %v2018, %v2016
      %v2079 = vpack.c.b16 %v2021, %v2019
      %v2080 = vpack.c.b16 %v2022, %v2020
      %v2081 = vpack.c.b16 %v2025, %v2023
      %v2082 = vpack.c.b16 %v2026, %v2024
      %v2083 = vpack.c.b16 %v2029, %v2027
      %v2084 = vpack.c.b16 %v2030, %v2028
      %v2085 = vpack.c.b16 %v2033, %v2031
      %v2086 = vpack.c.b16 %v2034, %v2032
      %v2087 = vpack.c.b16 %v2037, %v2035
      %v2088 = vpack.c.b16 %v2038, %v2036
      %v2089 = vpack.c.b16 %v2041, %v2039
      %v2090 = vpack.c.b16 %v2042, %v2040
      %v2091 = vpack.c.b16 %v2045, %v2043
      %v2092 = vpack.c.b16 %v2046, %v2044
      %v2093 = vpack.c.b16 %v2049, %v2047
      %v2094 = vpack.c.b16 %v2050, %v2048
      %v2095 = vpack.c.b16 %v2053, %v2051
      %v2096 = vpack.c.b16 %v2054, %v2052
      %v2097 = vpack.c.b16 %v2057, %v2055
      %v2098 = vpack.c.b16 %v2058, %v2056
      %v2099 = vpack.c.b16 %v2061, %v2059
      %v2100 = vpack.c.b16 %v2062, %v2060
      %v2101 = vpack.c.b16 %v2065, %v2063
      %v2102 = vpack.c.b16 %v2066, %v2064
      %v2103 = vpack.c.b16 %v2069, %v2067
      %v2104 = vpack.c.b16 %v2070, %v2068
      %v2105 = vpack.c.b16 %v2073, %v2071
      %v2106 = vpack.c.b16 %v2074, %v2072
      %2139 = vmatprep.subr.bf16.mxu0 0
      %2140 = vmatpush1.bf16.msra.mxu0 %v1970
      %2141 = vmatprep.subr.bf16.mxu0 0
      %2142 = vmatpush1.bf16.msra.mxu0 %v1969
      %2143 = vmatprep.subr.bf16.mxu0 0
      %2144 = vmatpush1.bf16.msra.mxu0 %v1968
      %2145 = vmatprep.subr.bf16.mxu0 0
      %2146 = vmatpush1.bf16.msra.mxu0 %v1967
      %2147 = vmatprep.subr.bf16.mxu0 0
      %2148 = vmatpush1.bf16.msra.mxu0 %v1966
      %2149 = vmatprep.subr.bf16.mxu0 0
      %2150 = vmatpush1.bf16.msra.mxu0 %v1965
      %2151 = vmatprep.subr.bf16.mxu0 0
      %2152 = vmatpush1.bf16.msra.mxu0 %v1964
      %2153 = vmatprep.subr.bf16.mxu0 0
      %2154 = vmatpush1.bf16.msra.mxu0 %v1963
      %2155 = vmatprep.subr.bf16.mxu0 0
      %2156 = vmatpush2.bf16.msra.mxu0 %v1978
      %2157 = vmatprep.subr.bf16.mxu0 0
      %2158 = vmatpush2.bf16.msra.mxu0 %v1977
      %2159 = vmatprep.subr.bf16.mxu0 0
      %2160 = vmatpush2.bf16.msra.mxu0 %v1976
      %2161 = vmatprep.subr.bf16.mxu0 0
      %2162 = vmatpush2.bf16.msra.mxu0 %v1975
      %2163 = vmatprep.subr.bf16.mxu0 0
      %2164 = vmatpush2.bf16.msra.mxu0 %v1974
      %2165 = vmatprep.subr.bf16.mxu0 0
      %2166 = vmatpush2.bf16.msra.mxu0 %v1973
      %2167 = vmatprep.subr.bf16.mxu0 0
      %2168 = vmatpush2.bf16.msra.mxu0 %v1972
      %2169 = vmatprep.subr.bf16.mxu0 0
      %2170 = vmatpush2.bf16.msra.mxu0 %v1971
      %2171 = vmatprep.mubr.bf16.mxu0 %v2076
      %2172 = vmatmul.mubr.bf16.gmra.mxu0 %v2075
      %v2173 = vpop.f32.mrf.mxu0
      %v2174 = vadd.f32 0.0, %v2173
      %v2175 = vpop.f32.mrf.mxu0
      %v2176 = vpop.f32.mrf.mxu0
      %v2177 = vadd.f32 0.0, %v2176
      %v2178 = vpop.f32.mrf.mxu0
      %2179 = vmatprep.mubr.bf16.mxu0 %v2078
      %2180 = vmatmul.mubr.bf16.gmra.mxu0 %v2077
      %v2181 = vpop.f32.mrf.mxu0
      %v2182 = vadd.f32 0.0, %v2181
      %v2183 = vpop.f32.mrf.mxu0
      %v2184 = vpop.f32.mrf.mxu0
      %v2185 = vadd.f32 0.0, %v2184
      %v2186 = vpop.f32.mrf.mxu0
      %2187 = vmatprep.mubr.bf16.mxu0 %v2080
      %2188 = vmatmul.mubr.bf16.gmra.mxu0 %v2079
      %v2189 = vpop.f32.mrf.mxu0
      %v2190 = vadd.f32 0.0, %v2189
      %v2191 = vpop.f32.mrf.mxu0
      %v2192 = vpop.f32.mrf.mxu0
      %v2193 = vadd.f32 0.0, %v2192
      %v2194 = vpop.f32.mrf.mxu0
      %2195 = vmatprep.mubr.bf16.mxu0 %v2082
      %2196 = vmatmul.mubr.bf16.gmra.mxu0 %v2081
      %v2197 = vpop.f32.mrf.mxu0
      %v2198 = vadd.f32 0.0, %v2197
      %v2199 = vpop.f32.mrf.mxu0
      %v2200 = vpop.f32.mrf.mxu0
      %v2201 = vadd.f32 0.0, %v2200
      %v2202 = vpop.f32.mrf.mxu0
      %2203 = vmatprep.mubr.bf16.mxu0 %v2084
      %2204 = vmatmul.mubr.bf16.gmra.mxu0 %v2083
      %v2205 = vpop.f32.mrf.mxu0
      %v2206 = vadd.f32 0.0, %v2205
      %v2207 = vpop.f32.mrf.mxu0
      %v2208 = vpop.f32.mrf.mxu0
      %v2209 = vadd.f32 0.0, %v2208
      %v2210 = vpop.f32.mrf.mxu0
      %2211 = vmatprep.mubr.bf16.mxu0 %v2086
      %2212 = vmatmul.mubr.bf16.gmra.mxu0 %v2085
      %v2213 = vpop.f32.mrf.mxu0
      %v2214 = vadd.f32 0.0, %v2213
      %v2215 = vpop.f32.mrf.mxu0
      %v2216 = vpop.f32.mrf.mxu0
      %v2217 = vadd.f32 0.0, %v2216
      %v2218 = vpop.f32.mrf.mxu0
      %2219 = vmatprep.mubr.bf16.mxu0 %v2088
      %2220 = vmatmul.mubr.bf16.gmra.mxu0 %v2087
      %v2221 = vpop.f32.mrf.mxu0
      %v2222 = vadd.f32 0.0, %v2221
      %v2223 = vpop.f32.mrf.mxu0
      %v2224 = vpop.f32.mrf.mxu0
      %v2225 = vadd.f32 0.0, %v2224
      %v2226 = vpop.f32.mrf.mxu0
      %2227 = vmatprep.mubr.bf16.mxu0 %v2090
      %2228 = vmatmul.mubr.bf16.gmra.mxu0 %v2089
      %v2229 = vpop.f32.mrf.mxu0
      %v2230 = vadd.f32 0.0, %v2229
      %v2231 = vpop.f32.mrf.mxu0
      %v2232 = vpop.f32.mrf.mxu0
      %v2233 = vadd.f32 0.0, %v2232
      %v2234 = vpop.f32.mrf.mxu0
      %2235 = vmatprep.mubr.bf16.mxu0 %v2092
      %2236 = vmatmul.mubr.bf16.gmra.mxu0 %v2091
      %v2237 = vpop.f32.mrf.mxu0
      %v2238 = vadd.f32 0.0, %v2237
      %v2239 = vpop.f32.mrf.mxu0
      %v2240 = vpop.f32.mrf.mxu0
      %v2241 = vadd.f32 0.0, %v2240
      %v2242 = vpop.f32.mrf.mxu0
      %2243 = vmatprep.mubr.bf16.mxu0 %v2094
      %2244 = vmatmul.mubr.bf16.gmra.mxu0 %v2093
      %v2245 = vpop.f32.mrf.mxu0
      %v2246 = vadd.f32 0.0, %v2245
      %v2247 = vpop.f32.mrf.mxu0
      %v2248 = vpop.f32.mrf.mxu0
      %v2249 = vadd.f32 0.0, %v2248
      %v2250 = vpop.f32.mrf.mxu0
      %2251 = vmatprep.mubr.bf16.mxu0 %v2096
      %2252 = vmatmul.mubr.bf16.gmra.mxu0 %v2095
      %v2253 = vpop.f32.mrf.mxu0
      %v2254 = vadd.f32 0.0, %v2253
      %v2255 = vpop.f32.mrf.mxu0
      %v2256 = vpop.f32.mrf.mxu0
      %v2257 = vadd.f32 0.0, %v2256
      %v2258 = vpop.f32.mrf.mxu0
      %2259 = vmatprep.mubr.bf16.mxu0 %v2098
      %2260 = vmatmul.mubr.bf16.gmra.mxu0 %v2097
      %v2261 = vpop.f32.mrf.mxu0
      %v2262 = vadd.f32 0.0, %v2261
      %v2263 = vpop.f32.mrf.mxu0
      %v2264 = vpop.f32.mrf.mxu0
      %v2265 = vadd.f32 0.0, %v2264
      %v2266 = vpop.f32.mrf.mxu0
      %2267 = vmatprep.mubr.bf16.mxu0 %v2100
      %2268 = vmatmul.mubr.bf16.gmra.mxu0 %v2099
      %v2269 = vpop.f32.mrf.mxu0
      %v2270 = vadd.f32 0.0, %v2269
      %v2271 = vpop.f32.mrf.mxu0
      %v2272 = vpop.f32.mrf.mxu0
      %v2273 = vadd.f32 0.0, %v2272
      %v2274 = vpop.f32.mrf.mxu0
      %2275 = vmatprep.mubr.bf16.mxu0 %v2102
      %2276 = vmatmul.mubr.bf16.gmra.mxu0 %v2101
      %v2277 = vpop.f32.mrf.mxu0
      %v2278 = vadd.f32 0.0, %v2277
      %v2279 = vpop.f32.mrf.mxu0
      %v2280 = vpop.f32.mrf.mxu0
      %v2281 = vadd.f32 0.0, %v2280
      %v2282 = vpop.f32.mrf.mxu0
      %2283 = vmatprep.mubr.bf16.mxu0 %v2104
      %2284 = vmatmul.mubr.bf16.gmra.mxu0 %v2103
      %v2285 = vpop.f32.mrf.mxu0
      %v2286 = vadd.f32 0.0, %v2285
      %v2287 = vpop.f32.mrf.mxu0
      %v2288 = vpop.f32.mrf.mxu0
      %v2289 = vadd.f32 0.0, %v2288
      %v2290 = vpop.f32.mrf.mxu0
      %2291 = vmatprep.mubr.bf16.mxu0 %v2106
      %2292 = vmatmul.mubr.bf16.gmra.mxu0 %v2105
      %v2293 = vpop.f32.mrf.mxu0
      %v2294 = vadd.f32 0.0, %v2293
      %v2295 = vpop.f32.mrf.mxu0
      %v2296 = vpop.f32.mrf.mxu0
      %v2297 = vadd.f32 0.0, %v2296
      %v2298 = vpop.f32.mrf.mxu0
      %2299 = vdwg.mxu0
      %2300 = vst [vmem:[#allocation3] sm:$0xff] %v2174
      %2301 = vst [vmem:[#allocation3 + $0x10] sm:$0xff] %v2177
      %2302 = vst [vmem:[#allocation3 + $0x20] sm:$0xff] %v2182
      %2303 = vst [vmem:[#allocation3 + $0x30] sm:$0xff] %v2185
      %2304 = vst [vmem:[#allocation3 + $0x40] sm:$0xff] %v2190
      %2305 = vst [vmem:[#allocation3 + $0x50] sm:$0xff] %v2193
      %2306 = vst [vmem:[#allocation3 + $0x60] sm:$0xff] %v2198
      %2307 = vst [vmem:[#allocation3 + $0x70] sm:$0xff] %v2201
      %2308 = vst [vmem:[#allocation3 + $0x80] sm:$0xff] %v2206
      %2309 = vst [vmem:[#allocation3 + $0x90] sm:$0xff] %v2209
      %2310 = vst [vmem:[#allocation3 + $0xa0] sm:$0xff] %v2214
      %2311 = vst [vmem:[#allocation3 + $0xb0] sm:$0xff] %v2217
      %2312 = vst [vmem:[#allocation3 + $0xc0] sm:$0xff] %v2222
      %2313 = vst [vmem:[#allocation3 + $0xd0] sm:$0xff] %v2225
      %2314 = vst [vmem:[#allocation3 + $0xe0] sm:$0xff] %v2230
      %2315 = vst [vmem:[#allocation3 + $0xf0] sm:$0xff] %v2233
      %2316 = vst [vmem:[#allocation3 + $0x8] sm:$0xff] %v2238
      %2317 = vst [vmem:[#allocation3 + $0x18] sm:$0xff] %v2241
      %2318 = vst [vmem:[#allocation3 + $0x28] sm:$0xff] %v2246
      %2319 = vst [vmem:[#allocation3 + $0x38] sm:$0xff] %v2249
      %2320 = vst [vmem:[#allocation3 + $0x48] sm:$0xff] %v2254
      %2321 = vst [vmem:[#allocation3 + $0x58] sm:$0xff] %v2257
      %2322 = vst [vmem:[#allocation3 + $0x68] sm:$0xff] %v2262
      %2323 = vst [vmem:[#allocation3 + $0x78] sm:$0xff] %v2265
      %2324 = vst [vmem:[#allocation3 + $0x88] sm:$0xff] %v2270
      %2325 = vst [vmem:[#allocation3 + $0x98] sm:$0xff] %v2273
      %2326 = vst [vmem:[#allocation3 + $0xa8] sm:$0xff] %v2278
      %2327 = vst [vmem:[#allocation3 + $0xb8] sm:$0xff] %v2281
      %2328 = vst [vmem:[#allocation3 + $0xc8] sm:$0xff] %v2286
      %2329 = vst [vmem:[#allocation3 + $0xd8] sm:$0xff] %v2289
      %2330 = vst [vmem:[#allocation3 + $0xe8] sm:$0xff] %v2294
      %2331 = vst [vmem:[#allocation3 + $0xf8] sm:$0xff] %v2297
      %v2332 = vld [vmem:[#allocation3] sm:$0xff]
      %v2333 = vld [vmem:[#allocation3 + $0x8] sm:$0xff]
      %v2334 = vld [vmem:[#allocation3 + $0x10] sm:$0xff]
      %v2335 = vld [vmem:[#allocation3 + $0x18] sm:$0xff]
      %v2336 = vld [vmem:[#allocation3 + $0x20] sm:$0xff]
      %v2337 = vld [vmem:[#allocation3 + $0x28] sm:$0xff]
      %v2338 = vld [vmem:[#allocation3 + $0x30] sm:$0xff]
      %v2339 = vld [vmem:[#allocation3 + $0x38] sm:$0xff]
      %v2340 = vld [vmem:[#allocation3 + $0x40] sm:$0xff]
      %v2341 = vld [vmem:[#allocation3 + $0x48] sm:$0xff]
      %v2342 = vld [vmem:[#allocation3 + $0x50] sm:$0xff]
      %v2343 = vld [vmem:[#allocation3 + $0x58] sm:$0xff]
      %v2344 = vld [vmem:[#allocation3 + $0x60] sm:$0xff]
      %v2345 = vld [vmem:[#allocation3 + $0x68] sm:$0xff]
      %v2346 = vld [vmem:[#allocation3 + $0x70] sm:$0xff]
      %v2347 = vld [vmem:[#allocation3 + $0x78] sm:$0xff]
      %v2348 = vld [vmem:[#allocation3 + $0x80] sm:$0xff]
      %v2349 = vld [vmem:[#allocation3 + $0x88] sm:$0xff]
      %v2350 = vld [vmem:[#allocation3 + $0x90] sm:$0xff]
      %v2351 = vld [vmem:[#allocation3 + $0x98] sm:$0xff]
      %v2352 = vld [vmem:[#allocation3 + $0xa0] sm:$0xff]
      %v2353 = vld [vmem:[#allocation3 + $0xa8] sm:$0xff]
      %v2354 = vld [vmem:[#allocation3 + $0xb0] sm:$0xff]
      %v2355 = vld [vmem:[#allocation3 + $0xb8] sm:$0xff]
      %v2356 = vld [vmem:[#allocation3 + $0xc0] sm:$0xff]
      %v2357 = vld [vmem:[#allocation3 + $0xc8] sm:$0xff]
      %v2358 = vld [vmem:[#allocation3 + $0xd0] sm:$0xff]
      %v2359 = vld [vmem:[#allocation3 + $0xd8] sm:$0xff]
      %v2360 = vld [vmem:[#allocation3 + $0xe0] sm:$0xff]
      %v2361 = vld [vmem:[#allocation3 + $0xe8] sm:$0xff]
      %v2362 = vld [vmem:[#allocation3 + $0xf0] sm:$0xff]
      %v2363 = vld [vmem:[#allocation3 + $0xf8] sm:$0xff]
      %v2364 = vpack.c.bf16 %v2334, %v2332
      %v2365 = vpack.c.bf16 %v2335, %v2333
      %v2366 = vpack.c.bf16 %v2338, %v2336
      %v2367 = vpack.c.bf16 %v2339, %v2337
      %v2368 = vpack.c.bf16 %v2342, %v2340
      %v2369 = vpack.c.bf16 %v2343, %v2341
      %v2370 = vpack.c.bf16 %v2346, %v2344
      %v2371 = vpack.c.bf16 %v2347, %v2345
      %v2372 = vpack.c.bf16 %v2350, %v2348
      %v2373 = vpack.c.bf16 %v2351, %v2349
      %v2374 = vpack.c.bf16 %v2354, %v2352
      %v2375 = vpack.c.bf16 %v2355, %v2353
      %v2376 = vpack.c.bf16 %v2358, %v2356
      %v2377 = vpack.c.bf16 %v2359, %v2357
      %v2378 = vpack.c.bf16 %v2362, %v2360
      %v2379 = vpack.c.bf16 %v2363, %v2361
      %v2380 = vld [vmem:[%s4] sm:$0xff]
      %v2381 = vld [vmem:[%s4 + $0x8] sm:$0xff]
      %v2382 = vld [vmem:[%s4 + $0x10] sm:$0xff]
      %v2383 = vld [vmem:[%s4 + $0x18] sm:$0xff]
      %v2384 = vld [vmem:[%s4 + $0x20] sm:$0xff]
      %v2385 = vld [vmem:[%s4 + $0x28] sm:$0xff]
      %v2386 = vld [vmem:[%s4 + $0x30] sm:$0xff]
      %v2387 = vld [vmem:[%s4 + $0x38] sm:$0xff]
      %v2388 = vld [vmem:[%s4 + $0x40] sm:$0xff]
      %v2389 = vld [vmem:[%s4 + $0x48] sm:$0xff]
      %v2390 = vld [vmem:[%s4 + $0x50] sm:$0xff]
      %v2391 = vld [vmem:[%s4 + $0x58] sm:$0xff]
      %v2392 = vld [vmem:[%s4 + $0x60] sm:$0xff]
      %v2393 = vld [vmem:[%s4 + $0x68] sm:$0xff]
      %v2394 = vld [vmem:[%s4 + $0x70] sm:$0xff]
      %v2395 = vld [vmem:[%s4 + $0x78] sm:$0xff]
      %v2396 = vld [vmem:[%s4 + $0x80] sm:$0xff]
      %v2397 = vld [vmem:[%s4 + $0x88] sm:$0xff]
      %v2398 = vld [vmem:[%s4 + $0x90] sm:$0xff]
      %v2399 = vld [vmem:[%s4 + $0x98] sm:$0xff]
      %v2400 = vld [vmem:[%s4 + $0xa0] sm:$0xff]
      %v2401 = vld [vmem:[%s4 + $0xa8] sm:$0xff]
      %v2402 = vld [vmem:[%s4 + $0xb0] sm:$0xff]
      %v2403 = vld [vmem:[%s4 + $0xb8] sm:$0xff]
      %v2404 = vld [vmem:[%s4 + $0xc0] sm:$0xff]
      %v2405 = vld [vmem:[%s4 + $0xc8] sm:$0xff]
      %v2406 = vld [vmem:[%s4 + $0xd0] sm:$0xff]
      %v2407 = vld [vmem:[%s4 + $0xd8] sm:$0xff]
      %v2408 = vld [vmem:[%s4 + $0xe0] sm:$0xff]
      %v2409 = vld [vmem:[%s4 + $0xe8] sm:$0xff]
      %v2410 = vld [vmem:[%s4 + $0xf0] sm:$0xff]
      %v2411 = vld [vmem:[%s4 + $0xf8] sm:$0xff]
      %v2444 = vunpack.c.l.b16 %v2380
      %v2445 = vunpack.c.h.b16 %v2380
      %v2446 = vunpack.c.l.b16 %v2381
      %v2447 = vunpack.c.h.b16 %v2381
      %v2448 = vunpack.c.l.b16 %v2382
      %v2449 = vunpack.c.h.b16 %v2382
      %v2450 = vunpack.c.l.b16 %v2383
      %v2451 = vunpack.c.h.b16 %v2383
      %v2452 = vunpack.c.l.b16 %v2384
      %v2453 = vunpack.c.h.b16 %v2384
      %v2454 = vunpack.c.l.b16 %v2385
      %v2455 = vunpack.c.h.b16 %v2385
      %v2456 = vunpack.c.l.b16 %v2386
      %v2457 = vunpack.c.h.b16 %v2386
      %v2458 = vunpack.c.l.b16 %v2387
      %v2459 = vunpack.c.h.b16 %v2387
      %v2460 = vunpack.c.l.b16 %v2388
      %v2461 = vunpack.c.h.b16 %v2388
      %v2462 = vunpack.c.l.b16 %v2389
      %v2463 = vunpack.c.h.b16 %v2389
      %v2464 = vunpack.c.l.b16 %v2390
      %v2465 = vunpack.c.h.b16 %v2390
      %v2466 = vunpack.c.l.b16 %v2391
      %v2467 = vunpack.c.h.b16 %v2391
      %v2468 = vunpack.c.l.b16 %v2392
      %v2469 = vunpack.c.h.b16 %v2392
      %v2470 = vunpack.c.l.b16 %v2393
      %v2471 = vunpack.c.h.b16 %v2393
      %v2472 = vunpack.c.l.b16 %v2394
      %v2473 = vunpack.c.h.b16 %v2394
      %v2474 = vunpack.c.l.b16 %v2395
      %v2475 = vunpack.c.h.b16 %v2395
      %v2476 = vunpack.c.l.b16 %v2396
      %v2477 = vunpack.c.h.b16 %v2396
      %v2478 = vunpack.c.l.b16 %v2397
      %v2479 = vunpack.c.h.b16 %v2397
      %v2480 = vunpack.c.l.b16 %v2398
      %v2481 = vunpack.c.h.b16 %v2398
      %v2482 = vunpack.c.l.b16 %v2399
      %v2483 = vunpack.c.h.b16 %v2399
      %v2484 = vunpack.c.l.b16 %v2400
      %v2485 = vunpack.c.h.b16 %v2400
      %v2486 = vunpack.c.l.b16 %v2401
      %v2487 = vunpack.c.h.b16 %v2401
      %v2488 = vunpack.c.l.b16 %v2402
      %v2489 = vunpack.c.h.b16 %v2402
      %v2490 = vunpack.c.l.b16 %v2403
      %v2491 = vunpack.c.h.b16 %v2403
      %v2492 = vunpack.c.l.b16 %v2404
      %v2493 = vunpack.c.h.b16 %v2404
      %v2494 = vunpack.c.l.b16 %v2405
      %v2495 = vunpack.c.h.b16 %v2405
      %v2496 = vunpack.c.l.b16 %v2406
      %v2497 = vunpack.c.h.b16 %v2406
      %v2498 = vunpack.c.l.b16 %v2407
      %v2499 = vunpack.c.h.b16 %v2407
      %v2500 = vunpack.c.l.b16 %v2408
      %v2501 = vunpack.c.h.b16 %v2408
      %v2502 = vunpack.c.l.b16 %v2409
      %v2503 = vunpack.c.h.b16 %v2409
      %v2504 = vunpack.c.l.b16 %v2410
      %v2505 = vunpack.c.h.b16 %v2410
      %v2506 = vunpack.c.l.b16 %v2411
      %v2507 = vunpack.c.h.b16 %v2411
      %v2508 = vpack.c.b16 %v2446, %v2444
      %v2509 = vpack.c.b16 %v2447, %v2445
      %v2510 = vpack.c.b16 %v2450, %v2448
      %v2511 = vpack.c.b16 %v2451, %v2449
      %v2512 = vpack.c.b16 %v2454, %v2452
      %v2513 = vpack.c.b16 %v2455, %v2453
      %v2514 = vpack.c.b16 %v2458, %v2456
      %v2515 = vpack.c.b16 %v2459, %v2457
      %v2516 = vpack.c.b16 %v2462, %v2460
      %v2517 = vpack.c.b16 %v2463, %v2461
      %v2518 = vpack.c.b16 %v2466, %v2464
      %v2519 = vpack.c.b16 %v2467, %v2465
      %v2520 = vpack.c.b16 %v2470, %v2468
      %v2521 = vpack.c.b16 %v2471, %v2469
      %v2522 = vpack.c.b16 %v2474, %v2472
      %v2523 = vpack.c.b16 %v2475, %v2473
      %v2524 = vpack.c.b16 %v2478, %v2476
      %v2525 = vpack.c.b16 %v2479, %v2477
      %v2526 = vpack.c.b16 %v2482, %v2480
      %v2527 = vpack.c.b16 %v2483, %v2481
      %v2528 = vpack.c.b16 %v2486, %v2484
      %v2529 = vpack.c.b16 %v2487, %v2485
      %v2530 = vpack.c.b16 %v2490, %v2488
      %v2531 = vpack.c.b16 %v2491, %v2489
      %v2532 = vpack.c.b16 %v2494, %v2492
      %v2533 = vpack.c.b16 %v2495, %v2493
      %v2534 = vpack.c.b16 %v2498, %v2496
      %v2535 = vpack.c.b16 %v2499, %v2497
      %v2536 = vpack.c.b16 %v2502, %v2500
      %v2537 = vpack.c.b16 %v2503, %v2501
      %v2538 = vpack.c.b16 %v2506, %v2504
      %v2539 = vpack.c.b16 %v2507, %v2505
      %2572 = vmatprep.subr.bf16.mxu0 %v2523
      %2573 = vmatpush1.bf16.msra.mxu0 %v2522
      %2574 = vmatprep.subr.bf16.mxu0 %v2521
      %2575 = vmatpush1.bf16.msra.mxu0 %v2520
      %2576 = vmatprep.subr.bf16.mxu0 %v2519
      %2577 = vmatpush1.bf16.msra.mxu0 %v2518
      %2578 = vmatprep.subr.bf16.mxu0 %v2517
      %2579 = vmatpush1.bf16.msra.mxu0 %v2516
      %2580 = vmatprep.subr.bf16.mxu0 %v2515
      %2581 = vmatpush1.bf16.msra.mxu0 %v2514
      %2582 = vmatprep.subr.bf16.mxu0 %v2513
      %2583 = vmatpush1.bf16.msra.mxu0 %v2512
      %2584 = vmatprep.subr.bf16.mxu0 %v2511
      %2585 = vmatpush1.bf16.msra.mxu0 %v2510
      %2586 = vmatprep.subr.bf16.mxu0 %v2509
      %2587 = vmatpush1.bf16.msra.mxu0 %v2508
      %2588 = vmatprep.subr.bf16.mxu0 %v2539
      %2589 = vmatpush2.bf16.msra.mxu0 %v2538
      %2590 = vmatprep.subr.bf16.mxu0 %v2537
      %2591 = vmatpush2.bf16.msra.mxu0 %v2536
      %2592 = vmatprep.subr.bf16.mxu0 %v2535
      %2593 = vmatpush2.bf16.msra.mxu0 %v2534
      %2594 = vmatprep.subr.bf16.mxu0 %v2533
      %2595 = vmatpush2.bf16.msra.mxu0 %v2532
      %2596 = vmatprep.subr.bf16.mxu0 %v2531
      %2597 = vmatpush2.bf16.msra.mxu0 %v2530
      %2598 = vmatprep.subr.bf16.mxu0 %v2529
      %2599 = vmatpush2.bf16.msra.mxu0 %v2528
      %2600 = vmatprep.subr.bf16.mxu0 %v2527
      %2601 = vmatpush2.bf16.msra.mxu0 %v2526
      %2602 = vmatprep.subr.bf16.mxu0 %v2525
      %2603 = vmatpush2.bf16.msra.mxu0 %v2524
      %2604 = vmatprep.mubr.bf16.mxu0 %v2365
      %2605 = vmatmul.mubr.bf16.gmra.mxu0 %v2364
      %v2606 = vpop.f32.mrf.mxu0
      %v2607 = vadd.f32 0.0, %v2606
      %v2608 = vpop.f32.mrf.mxu0
      %v2609 = vadd.f32 0.0, %v2608
      %v2610 = vpop.f32.mrf.mxu0
      %v2611 = vadd.f32 0.0, %v2610
      %v2612 = vpop.f32.mrf.mxu0
      %v2613 = vadd.f32 0.0, %v2612
      %2614 = vmatprep.mubr.bf16.mxu0 %v2367
      %2615 = vmatmul.mubr.bf16.gmra.mxu0 %v2366
      %v2616 = vpop.f32.mrf.mxu0
      %v2617 = vadd.f32 0.0, %v2616
      %v2618 = vpop.f32.mrf.mxu0
      %v2619 = vadd.f32 0.0, %v2618
      %v2620 = vpop.f32.mrf.mxu0
      %v2621 = vadd.f32 0.0, %v2620
      %v2622 = vpop.f32.mrf.mxu0
      %v2623 = vadd.f32 0.0, %v2622
      %2624 = vmatprep.mubr.bf16.mxu0 %v2369
      %2625 = vmatmul.mubr.bf16.gmra.mxu0 %v2368
      %v2626 = vpop.f32.mrf.mxu0
      %v2627 = vadd.f32 0.0, %v2626
      %v2628 = vpop.f32.mrf.mxu0
      %v2629 = vadd.f32 0.0, %v2628
      %v2630 = vpop.f32.mrf.mxu0
      %v2631 = vadd.f32 0.0, %v2630
      %v2632 = vpop.f32.mrf.mxu0
      %v2633 = vadd.f32 0.0, %v2632
      %2634 = vmatprep.mubr.bf16.mxu0 %v2371
      %2635 = vmatmul.mubr.bf16.gmra.mxu0 %v2370
      %v2636 = vpop.f32.mrf.mxu0
      %v2637 = vadd.f32 0.0, %v2636
      %v2638 = vpop.f32.mrf.mxu0
      %v2639 = vadd.f32 0.0, %v2638
      %v2640 = vpop.f32.mrf.mxu0
      %v2641 = vadd.f32 0.0, %v2640
      %v2642 = vpop.f32.mrf.mxu0
      %v2643 = vadd.f32 0.0, %v2642
      %2644 = vmatprep.mubr.bf16.mxu0 %v2373
      %2645 = vmatmul.mubr.bf16.gmra.mxu0 %v2372
      %v2646 = vpop.f32.mrf.mxu0
      %v2647 = vadd.f32 0.0, %v2646
      %v2648 = vpop.f32.mrf.mxu0
      %v2649 = vadd.f32 0.0, %v2648
      %v2650 = vpop.f32.mrf.mxu0
      %v2651 = vadd.f32 0.0, %v2650
      %v2652 = vpop.f32.mrf.mxu0
      %v2653 = vadd.f32 0.0, %v2652
      %2654 = vmatprep.mubr.bf16.mxu0 %v2375
      %2655 = vmatmul.mubr.bf16.gmra.mxu0 %v2374
      %v2656 = vpop.f32.mrf.mxu0
      %v2657 = vadd.f32 0.0, %v2656
      %v2658 = vpop.f32.mrf.mxu0
      %v2659 = vadd.f32 0.0, %v2658
      %v2660 = vpop.f32.mrf.mxu0
      %v2661 = vadd.f32 0.0, %v2660
      %v2662 = vpop.f32.mrf.mxu0
      %v2663 = vadd.f32 0.0, %v2662
      %2664 = vmatprep.mubr.bf16.mxu0 %v2377
      %2665 = vmatmul.mubr.bf16.gmra.mxu0 %v2376
      %v2666 = vpop.f32.mrf.mxu0
      %v2667 = vadd.f32 0.0, %v2666
      %v2668 = vpop.f32.mrf.mxu0
      %v2669 = vadd.f32 0.0, %v2668
      %v2670 = vpop.f32.mrf.mxu0
      %v2671 = vadd.f32 0.0, %v2670
      %v2672 = vpop.f32.mrf.mxu0
      %v2673 = vadd.f32 0.0, %v2672
      %2674 = vmatprep.mubr.bf16.mxu0 %v2379
      %2675 = vmatmul.mubr.bf16.gmra.mxu0 %v2378
      %v2676 = vpop.f32.mrf.mxu0
      %v2677 = vadd.f32 0.0, %v2676
      %v2678 = vpop.f32.mrf.mxu0
      %v2679 = vadd.f32 0.0, %v2678
      %v2680 = vpop.f32.mrf.mxu0
      %v2681 = vadd.f32 0.0, %v2680
      %v2682 = vpop.f32.mrf.mxu0
      %v2683 = vadd.f32 0.0, %v2682
      %2684 = vdwg.mxu0
      %2685 = vst [vmem:[#allocation2] sm:$0xff] %v2607
      %2686 = vst [vmem:[#allocation2 + $0x8] sm:$0xff] %v2611
      %2687 = vst [vmem:[#allocation2 + $0x10] sm:$0xff] %v2617
      %2688 = vst [vmem:[#allocation2 + $0x18] sm:$0xff] %v2621
      %2689 = vst [vmem:[#allocation2 + $0x20] sm:$0xff] %v2627
      %2690 = vst [vmem:[#allocation2 + $0x28] sm:$0xff] %v2631
      %2691 = vst [vmem:[#allocation2 + $0x30] sm:$0xff] %v2637
      %2692 = vst [vmem:[#allocation2 + $0x38] sm:$0xff] %v2641
      %2693 = vst [vmem:[#allocation2 + $0x40] sm:$0xff] %v2647
      %2694 = vst [vmem:[#allocation2 + $0x48] sm:$0xff] %v2651
      %2695 = vst [vmem:[#allocation2 + $0x50] sm:$0xff] %v2657
      %2696 = vst [vmem:[#allocation2 + $0x58] sm:$0xff] %v2661
      %2697 = vst [vmem:[#allocation2 + $0x60] sm:$0xff] %v2667
      %2698 = vst [vmem:[#allocation2 + $0x68] sm:$0xff] %v2671
      %2699 = vst [vmem:[#allocation2 + $0x70] sm:$0xff] %v2677
      %2700 = vst [vmem:[#allocation2 + $0x78] sm:$0xff] %v2681
      %2701 = vst [vmem:[#allocation2 + $0x80] sm:$0xff] %v2609
      %2702 = vst [vmem:[#allocation2 + $0x88] sm:$0xff] %v2613
      %2703 = vst [vmem:[#allocation2 + $0x90] sm:$0xff] %v2619
      %2704 = vst [vmem:[#allocation2 + $0x98] sm:$0xff] %v2623
      %2705 = vst [vmem:[#allocation2 + $0xa0] sm:$0xff] %v2629
      %2706 = vst [vmem:[#allocation2 + $0xa8] sm:$0xff] %v2633
      %2707 = vst [vmem:[#allocation2 + $0xb0] sm:$0xff] %v2639
      %2708 = vst [vmem:[#allocation2 + $0xb8] sm:$0xff] %v2643
      %2709 = vst [vmem:[#allocation2 + $0xc0] sm:$0xff] %v2649
      %2710 = vst [vmem:[#allocation2 + $0xc8] sm:$0xff] %v2653
      %2711 = vst [vmem:[#allocation2 + $0xd0] sm:$0xff] %v2659
      %2712 = vst [vmem:[#allocation2 + $0xd8] sm:$0xff] %v2663
      %2713 = vst [vmem:[#allocation2 + $0xe0] sm:$0xff] %v2669
      %2714 = vst [vmem:[#allocation2 + $0xe8] sm:$0xff] %v2673
      %2715 = vst [vmem:[#allocation2 + $0xf0] sm:$0xff] %v2679
      %2716 = vst [vmem:[#allocation2 + $0xf8] sm:$0xff] %v2683
      %p2717 = scmp.eq.s32.totalorder %s21, 5
      // Predicated region
      $region69: #{five_layer_diffractive_nn.1} parent=59 // pred_check
        %p2718 = pneg %p2717
      $region70: #{five_layer_diffractive_nn.1} parent=59 // pred_check_branch
        %2720 = sbr.rel (%p2718) target = $region72
      $region71: #{five_layer_diffractive_nn.1} parent=59 // pred_region
        %v2721 = vld [vmem:[#allocation2] sm:$0xff]
        %v2722 = vld [vmem:[#allocation2 + $0x8] sm:$0xff]
        %v2723 = vld [vmem:[#allocation2 + $0x10] sm:$0xff]
        %v2724 = vld [vmem:[#allocation2 + $0x18] sm:$0xff]
        %v2725 = vld [vmem:[#allocation2 + $0x20] sm:$0xff]
        %v2726 = vld [vmem:[#allocation2 + $0x28] sm:$0xff]
        %v2727 = vld [vmem:[#allocation2 + $0x30] sm:$0xff]
        %v2728 = vld [vmem:[#allocation2 + $0x38] sm:$0xff]
        %v2729 = vld [vmem:[#allocation2 + $0x40] sm:$0xff]
        %v2730 = vld [vmem:[#allocation2 + $0x48] sm:$0xff]
        %v2731 = vld [vmem:[#allocation2 + $0x50] sm:$0xff]
        %v2732 = vld [vmem:[#allocation2 + $0x58] sm:$0xff]
        %v2733 = vld [vmem:[#allocation2 + $0x60] sm:$0xff]
        %v2734 = vld [vmem:[#allocation2 + $0x68] sm:$0xff]
        %v2735 = vld [vmem:[#allocation2 + $0x70] sm:$0xff]
        %v2736 = vld [vmem:[#allocation2 + $0x78] sm:$0xff]
        %v2737 = vld [vmem:[#allocation2 + $0x80] sm:$0xff]
        %v2738 = vld [vmem:[#allocation2 + $0x88] sm:$0xff]
        %v2739 = vld [vmem:[#allocation2 + $0x90] sm:$0xff]
        %v2740 = vld [vmem:[#allocation2 + $0x98] sm:$0xff]
        %v2741 = vld [vmem:[#allocation2 + $0xa0] sm:$0xff]
        %v2742 = vld [vmem:[#allocation2 + $0xa8] sm:$0xff]
        %v2743 = vld [vmem:[#allocation2 + $0xb0] sm:$0xff]
        %v2744 = vld [vmem:[#allocation2 + $0xb8] sm:$0xff]
        %v2745 = vld [vmem:[#allocation2 + $0xc0] sm:$0xff]
        %v2746 = vld [vmem:[#allocation2 + $0xc8] sm:$0xff]
        %v2747 = vld [vmem:[#allocation2 + $0xd0] sm:$0xff]
        %v2748 = vld [vmem:[#allocation2 + $0xd8] sm:$0xff]
        %v2749 = vld [vmem:[#allocation2 + $0xe0] sm:$0xff]
        %v2750 = vld [vmem:[#allocation2 + $0xe8] sm:$0xff]
        %v2751 = vld [vmem:[#allocation2 + $0xf0] sm:$0xff]
        %v2752 = vld [vmem:[#allocation2 + $0xf8] sm:$0xff]
        %v2753 = vmul.f32 %v2721, %v2721
        %v2754 = vmul.f32 %v2722, %v2722
        %v2755 = vmul.f32 %v2723, %v2723
        %v2756 = vmul.f32 %v2724, %v2724
        %v2757 = vmul.f32 %v2725, %v2725
        %v2758 = vmul.f32 %v2726, %v2726
        %v2759 = vmul.f32 %v2727, %v2727
        %v2760 = vmul.f32 %v2728, %v2728
        %v2761 = vmul.f32 %v2729, %v2729
        %v2762 = vmul.f32 %v2730, %v2730
        %v2763 = vmul.f32 %v2731, %v2731
        %v2764 = vmul.f32 %v2732, %v2732
        %v2765 = vmul.f32 %v2733, %v2733
        %v2766 = vmul.f32 %v2734, %v2734
        %v2767 = vmul.f32 %v2735, %v2735
        %v2768 = vmul.f32 %v2736, %v2736
        %v2769 = vmul.f32 %v2737, %v2737
        %v2770 = vmul.f32 %v2738, %v2738
        %v2771 = vmul.f32 %v2739, %v2739
        %v2772 = vmul.f32 %v2740, %v2740
        %v2773 = vmul.f32 %v2741, %v2741
        %v2774 = vmul.f32 %v2742, %v2742
        %v2775 = vmul.f32 %v2743, %v2743
        %v2776 = vmul.f32 %v2744, %v2744
        %v2777 = vmul.f32 %v2745, %v2745
        %v2778 = vmul.f32 %v2746, %v2746
        %v2779 = vmul.f32 %v2747, %v2747
        %v2780 = vmul.f32 %v2748, %v2748
        %v2781 = vmul.f32 %v2749, %v2749
        %v2782 = vmul.f32 %v2750, %v2750
        %v2783 = vmul.f32 %v2751, %v2751
        %v2784 = vmul.f32 %v2752, %v2752
        %v2785 = vadd.f32 %v2753, %v2769
        %v2786 = vadd.f32 %v2754, %v2770
        %v2787 = vadd.f32 %v2755, %v2771
        %v2788 = vadd.f32 %v2756, %v2772
        %v2789 = vadd.f32 %v2757, %v2773
        %v2790 = vadd.f32 %v2758, %v2774
        %v2791 = vadd.f32 %v2759, %v2775
        %v2792 = vadd.f32 %v2760, %v2776
        %v2793 = vadd.f32 %v2761, %v2777
        %v2794 = vadd.f32 %v2762, %v2778
        %v2795 = vadd.f32 %v2763, %v2779
        %v2796 = vadd.f32 %v2764, %v2780
        %v2797 = vadd.f32 %v2765, %v2781
        %v2798 = vadd.f32 %v2766, %v2782
        %v2799 = vadd.f32 %v2767, %v2783
        %v2800 = vadd.f32 %v2768, %v2784
        %2801 = vst [vmem:[%s10] sm:$0xff] %v2785
        %2802 = vst [vmem:[%s10 + $0x8] sm:$0xff] %v2786
        %2803 = vst [vmem:[%s10 + $0x10] sm:$0xff] %v2787
        %2804 = vst [vmem:[%s10 + $0x18] sm:$0xff] %v2788
        %2805 = vst [vmem:[%s10 + $0x20] sm:$0xff] %v2789
        %2806 = vst [vmem:[%s10 + $0x28] sm:$0xff] %v2790
        %2807 = vst [vmem:[%s10 + $0x30] sm:$0xff] %v2791
        %2808 = vst [vmem:[%s10 + $0x38] sm:$0xff] %v2792
        %2809 = vst [vmem:[%s10 + $0x40] sm:$0xff] %v2793
        %2810 = vst [vmem:[%s10 + $0x48] sm:$0xff] %v2794
        %2811 = vst [vmem:[%s10 + $0x50] sm:$0xff] %v2795
        %2812 = vst [vmem:[%s10 + $0x58] sm:$0xff] %v2796
        %2813 = vst [vmem:[%s10 + $0x60] sm:$0xff] %v2797
        %2814 = vst [vmem:[%s10 + $0x68] sm:$0xff] %v2798
        %2815 = vst [vmem:[%s10 + $0x70] sm:$0xff] %v2799
        %2816 = vst [vmem:[%s10 + $0x78] sm:$0xff] %v2800
      $region72: #{five_layer_diffractive_nn.1} parent=59 // pred_fallthru
        _
      // Predicated region
      $region73: #{five_layer_diffractive_nn.1} parent=59 // pred_check
        %p2817 = pneg %p266
      $region74: #{five_layer_diffractive_nn.1} parent=59 // pred_check_branch
        %2819 = sbr.rel (%p2817) target = $region76
      $region75: #{five_layer_diffractive_nn.1} parent=59 // pred_region
        _
      $region76: #{five_layer_diffractive_nn.1} parent=59 // pred_fallthru
        _
      // Predicated region
      $region77: #{five_layer_diffractive_nn.1} parent=59 // pred_check
        %p2820 = pneg %p266
      $region78: #{five_layer_diffractive_nn.1} parent=59 // pred_check_branch
        %2822 = sbr.rel (%p2820) target = $region80
      $region79: #{five_layer_diffractive_nn.1} parent=59 // pred_region
        _
      $region80: #{five_layer_diffractive_nn.1} parent=59 // pred_fallthru
        _
    $region60: #{five_layer_diffractive_nn.1} parent=5 // pred_fallthru
      _
    %p2823 = scmp.le.s32.totalorder 2, %s16
    // Predicated region
    $region81: #{five_layer_diffractive_nn.1} parent=5 // pred_check
      %p2824 = pneg %p2823
    $region82: #{five_layer_diffractive_nn.1} parent=5 // pred_check_branch
      %2826 = sbr.rel (%p2824) target = $region84
    $region83: #{five_layer_diffractive_nn.1} parent=5 // pred_region
      %s2827 = ssub.s32 %s16, 2
    $region84: #{five_layer_diffractive_nn.1} parent=5 // pred_fallthru
      _
  $region6: #{five_layer_diffractive_nn.1} parent=0 // loop_footer
    %s20 = sadd.s32 1, %s16
  $region7: #{five_layer_diffractive_nn.1} parent=0 // loop_footer_branch
    %15 = sbr.rel target = $region3
  $region8: #{five_layer_diffractive_nn.1} parent=0 // loop_exit
    _

</llo_original>
